<compile_context>
chip_gen: v5e
topology: v5e:2x2
jax: 0.10.0
libtpu: 0.0.40
codegen_flags: <defaults>
</compile_context>

<pallas_src>
import jax
import jax.numpy as jnp
from jax.experimental import pallas as pl
from jax.experimental.pallas import tpu as pltpu

INPUT_DIM = 768
LATENT_DIM = 128
HIDDEN_DIMS = (512, 256, 128)
CLS_HIDDEN = 64
NUM_CLASSES = 2
LOGIT_PAD = 128          # lane-dense logits slab; real logits are [:, :NUM_CLASSES]
LN_EPS = 1e-5


def _round_up(n, m):
    return ((n + m - 1) // m) * m


# ----------------------------------------------------------------------------
# Packed bias / LayerNorm-parameter vector layout.
# Every segment starts on a 128-lane boundary so in-kernel static slices are
# lane-aligned.  One (1, VEC_TOTAL) f32 array replaces 19 tiny DMAs.
# ----------------------------------------------------------------------------
_VEC_TABLE = (
    # (layout name, param name, field, width)
    ("e0b",  "enc0", "b",  HIDDEN_DIMS[0]),
    ("e1b",  "enc1", "b",  HIDDEN_DIMS[1]),
    ("e2b",  "enc2", "b",  LATENT_DIM),
    ("d0b",  "dec0", "b",  HIDDEN_DIMS[1]),
    ("d1b",  "dec1", "b",  HIDDEN_DIMS[0]),
    ("d2b",  "dec2", "b",  INPUT_DIM),
    ("c0b",  "cls0", "b",  CLS_HIDDEN),
    ("c1b",  "cls1", "b",  CLS_HIDDEN),
    ("c2b",  "cls2", "b",  LOGIT_PAD),
    ("e0g",  "enc0", "g",  HIDDEN_DIMS[0]),
    ("e0be", "enc0", "be", HIDDEN_DIMS[0]),
    ("e1g",  "enc1", "g",  HIDDEN_DIMS[1]),
    ("e1be", "enc1", "be", HIDDEN_DIMS[1]),
    ("e2g",  "enc2", "g",  LATENT_DIM),
    ("e2be", "enc2", "be", LATENT_DIM),
    ("c0g",  "cls0", "g",  CLS_HIDDEN),
    ("c0be", "cls0", "be", CLS_HIDDEN),
    ("c1g",  "cls1", "g",  CLS_HIDDEN),
    ("c1be", "cls1", "be", CLS_HIDDEN),
)

_VEC_LAYOUT = {}
_off = 0
for _name, _, _, _w in _VEC_TABLE:
    _VEC_LAYOUT[_name] = (_off, _w)
    _off += _round_up(_w, 128)
VEC_TOTAL = _off
del _off

_WEIGHT_ORDER = ("enc0", "enc1", "enc2", "dec0", "dec1", "dec2",
                 "cls0", "cls1", "cls2")


# ----------------------------------------------------------------------------
# Fused kernel
# ----------------------------------------------------------------------------
def sae_fused_kernel(x_ref,
                     e0w, e1w, e2w,       # encoder weights (in, out), bf16
                     d0w, d1w, d2w,       # decoder weights
                     c0w, c1w, c2w,       # classifier weights (head padded to 128)
                     vec_ref,             # packed biases / LN gammas / betas, f32
                     logits_ref, recon_ref):
    def vs(name):
        off, width = _VEC_LAYOUT[name]
        return vec_ref[:, off:off + width]          # (1, width) f32, static slice

    def linear(h_bf16, w_ref, bias_name):
        # bf16 x bf16 on the MXU, f32 accumulation, f32 bias add.
        return jnp.dot(h_bf16, w_ref[...],
                       preferred_element_type=jnp.float32) + vs(bias_name)

    def layernorm(y, g_name, b_name):
        # Two-pass subtract-mean form kept for numerical robustness; the
        # reductions are a negligible fraction of this kernel.
        mean = jnp.mean(y, axis=-1, keepdims=True)
        var = jnp.mean(jnp.square(y - mean), axis=-1, keepdims=True)
        return (y - mean) * jax.lax.rsqrt(var + LN_EPS) * vs(g_name) + vs(b_name)

    def relu_bf16(y_f32):
        # Cast to bf16 right after the ReLU: every consumer is a bf16 matmul,
        # so this is numerically identical to casting at the matmul input but
        # halves live activation footprint (vreg pressure / spill traffic).
        return jnp.maximum(y_f32, 0.0).astype(jnp.bfloat16)

    x = x_ref[...].astype(jnp.bfloat16)

    # ---- encoder: (Linear -> LayerNorm -> ReLU [-> Dropout]) x 3 ----
    h = relu_bf16(layernorm(linear(x, e0w, "e0b"), "e0g", "e0be"))
    # Dropout(0.3) -> identity in eval mode
    h = relu_bf16(layernorm(linear(h, e1w, "e1b"), "e1g", "e1be"))
    # Dropout(0.3) -> identity in eval mode
    z = relu_bf16(layernorm(linear(h, e2w, "e2b"), "e2g", "e2be"))

    # ---- decoder: Linear -> ReLU -> Linear -> ReLU -> Linear ----
    h = relu_bf16(linear(z, d0w, "d0b"))
    h = relu_bf16(linear(h, d1w, "d1b"))
    recon_ref[...] = linear(h, d2w, "d2b").astype(recon_ref.dtype)

    # ---- classifier: (Linear -> LayerNorm -> ReLU [-> Dropout]) x 2, Linear ----
    h = relu_bf16(layernorm(linear(z, c0w, "c0b"), "c0g", "c0be"))
    # Dropout(0.3) -> identity in eval mode
    h = relu_bf16(layernorm(linear(h, c1w, "c1b"), "c1g", "c1be"))
    # Dropout(0.3) -> identity in eval mode
    logits_ref[...] = linear(h, c2w, "c2b").astype(logits_ref.dtype)   # lane-dense 128


# ----------------------------------------------------------------------------
# Parameter construction (PyTorch-default-style init; weights bf16, transposed)
# ----------------------------------------------------------------------------
def make_linear_params(key, in_dim, out_dim, pad_out=None):
    k_w, k_b = jax.random.split(key)
    bound = 1.0 / (in_dim ** 0.5)
    w = jax.random.uniform(k_w, (out_dim, in_dim), jnp.float32, -bound, bound)
    b = jax.random.uniform(k_b, (out_dim,), jnp.float32, -bound, bound)
    w_t = w.T                                   # (in, out)  -> y = x @ W^T + b
    b = b.reshape(1, out_dim)
    if pad_out is not None and pad_out > out_dim:
        w_t = jnp.pad(w_t, ((0, 0), (0, pad_out - out_dim)))
        b = jnp.pad(b, ((0, 0), (0, pad_out - out_dim)))
    return {"w": w_t.astype(jnp.bfloat16), "b": b.astype(jnp.float32)}


def make_ln_params(dim):
    return {"g": jnp.ones((1, dim), jnp.float32),
            "be": jnp.zeros((1, dim), jnp.float32)}


def init_sae_params(key):
    ks = jax.random.split(key, 9)
    return {
        "enc0": {**make_linear_params(ks[0], INPUT_DIM, HIDDEN_DIMS[0]),
                 **make_ln_params(HIDDEN_DIMS[0])},
        "enc1": {**make_linear_params(ks[1], HIDDEN_DIMS[0], HIDDEN_DIMS[1]),
                 **make_ln_params(HIDDEN_DIMS[1])},
        "enc2": {**make_linear_params(ks[2], HIDDEN_DIMS[1], LATENT_DIM),
                 **make_ln_params(LATENT_DIM)},
        "dec0": make_linear_params(ks[3], LATENT_DIM, HIDDEN_DIMS[1]),
        "dec1": make_linear_params(ks[4], HIDDEN_DIMS[1], HIDDEN_DIMS[0]),
        "dec2": make_linear_params(ks[5], HIDDEN_DIMS[0], INPUT_DIM),
        "cls0": {**make_linear_params(ks[6], LATENT_DIM, CLS_HIDDEN),
                 **make_ln_params(CLS_HIDDEN)},
        "cls1": {**make_linear_params(ks[7], CLS_HIDDEN, CLS_HIDDEN),
                 **make_ln_params(CLS_HIDDEN)},
        # classifier head padded to a lane-dense 128-wide output
        "cls2": make_linear_params(ks[8], CLS_HIDDEN, NUM_CLASSES, pad_out=LOGIT_PAD),
    }


def _pack_params(params):
    """Return (weights in kernel order, packed (1, VEC_TOTAL) f32 vector)."""
    weights = [params[n]["w"] for n in _WEIGHT_ORDER]
    segs = []
    for name, pname, field, width in _VEC_TABLE:
        a = params[pname][field].reshape(1, -1).astype(jnp.float32)
        assert a.shape[1] == width, (name, a.shape)
        pad = _round_up(width, 128) - width
        if pad:
            a = jnp.pad(a, ((0, 0), (0, pad)))
        segs.append(a)
    return weights, jnp.concatenate(segs, axis=1)


# ----------------------------------------------------------------------------
# Forward pass: single fused pallas_call, batch tiled on a "parallel" grid axis
# ----------------------------------------------------------------------------
def sae_classifier_forward(params, x, recon_dtype=jnp.float32):
    B, din = x.shape
    assert din == INPUT_DIM, din

    # Batch tiling: pad to a multiple of 16 (bf16 sublane pack).  Tile cap is
    # 512 rows; when the batch is big enough we force >= 2 grid steps so both
    # of v7x's TensorCores get work on the "parallel" axis.
    b16 = _round_up(B, 16)
    if b16 >= 32:
        tb = min(512, max(16, (b16 // 2) // 16 * 16))
    else:
        tb = b16
    b_pad = _round_up(b16, tb)
    if b_pad != B:
        x = jnp.pad(x, ((0, b_pad - B), (0, 0)))

    weights, vec = _pack_params(params)

    in_specs = [pl.BlockSpec((tb, INPUT_DIM), lambda i: (i, 0))]
    # Constant blocks: same (0, 0) block index on every grid step, so the DMA
    # is not re-issued across steps.  (pl.Buffered(1) would also halve their
    # double-buffered VMEM, but pipeline_mode support on top-level pallas_call
    # specs is not universal and ~2.2 MiB of weights is cheap; revisit on v7x.)
    in_specs += [pl.BlockSpec(w.shape, lambda i: (0, 0)) for w in weights]
    in_specs += [pl.BlockSpec((1, VEC_TOTAL), lambda i: (0, 0))]

    out_shape = (jax.ShapeDtypeStruct((b_pad, LOGIT_PAD), jnp.float32),
                 jax.ShapeDtypeStruct((b_pad, INPUT_DIM), recon_dtype))
    out_specs = (pl.BlockSpec((tb, LOGIT_PAD), lambda i: (i, 0)),
                 pl.BlockSpec((tb, INPUT_DIM), lambda i: (i, 0)))

    # Advisory cost estimate for XLA's scheduler (kernel is memory-bound at
    # small batch, near the compute roofline with resident weights at large).
    weight_flops = sum(2 * b_pad * w.shape[0] * w.shape[1] for w in weights)
    bytes_accessed = (x.size * x.dtype.itemsize
                      + sum(w.size * w.dtype.itemsize for w in weights)
                      + vec.size * 4
                      + b_pad * LOGIT_PAD * 4
                      + b_pad * INPUT_DIM * jnp.dtype(recon_dtype).itemsize)
    cost = pl.CostEstimate(flops=weight_flops,
                           transcendentals=5 * b_pad,      # one rsqrt per LN row
                           bytes_accessed=bytes_accessed)

    cp_kwargs = dict(dimension_semantics=("parallel",))
    if tb >= 256:
        # Large tiles need headroom over the scoped-VMEM default (16 MiB v5e /
        # 32 MiB v6e, v7x).  48 MiB still leaves slack on v7x's 64 MiB VMEM.
        cp_kwargs["vmem_limit_bytes"] = 48 * 1024 * 1024

    logits_pad, recon = pl.pallas_call(
        sae_fused_kernel,
        out_shape=out_shape,
        grid=(b_pad // tb,),
        in_specs=in_specs,
        out_specs=out_specs,
        compiler_params=pltpu.CompilerParams(**cp_kwargs),
        cost_estimate=cost,
    )(x, *weights, vec)

    return logits_pad[:B, :NUM_CLASSES], recon[:B]


# ----------------------------------------------------------------------------
# Pure-JAX reference (same bf16 matmul recipe) for a sanity check
# ----------------------------------------------------------------------------
def _layernorm_ref(y, gamma, beta, eps=LN_EPS):
    mean = jnp.mean(y, axis=-1, keepdims=True)
    var = jnp.mean(jnp.square(y - mean), axis=-1, keepdims=True)
    return (y - mean) * jax.lax.rsqrt(var + eps) * gamma + beta


def sae_reference(params, x):
    def lin(h, p):
        return jnp.dot(h.astype(jnp.bfloat16), p["w"],
                       preferred_element_type=jnp.float32) + p["b"]

    h = x
    for name in ("enc0", "enc1", "enc2"):
        p = params[name]
        h = jnp.maximum(_layernorm_ref(lin(h, p), p["g"], p["be"]), 0.0)
    z = h
    h = z
    for name, relu in (("dec0", True), ("dec1", True), ("dec2", False)):
        h = lin(h, params[name])
        if relu:
            h = jnp.maximum(h, 0.0)
    recon = h
    h = z
    for name in ("cls0", "cls1"):
        p = params[name]
        h = jnp.maximum(_layernorm_ref(lin(h, p), p["g"], p["be"]), 0.0)
    logits = lin(h, params["cls2"])[:, :NUM_CLASSES]
    return logits, recon


# ----------------------------------------------------------------------------
if __name__ == "__main__":
    key = jax.random.PRNGKey(0)
    k_params, k_x = jax.random.split(key)
    params = init_sae_params(k_params)

    fwd = jax.jit(sae_classifier_forward)
    ref = jax.jit(sae_reference)

    for batch in (8, 40):       # 40 exercises batch padding + a multi-step grid
        x = jax.random.normal(jax.random.fold_in(k_x, batch),
                              (batch, INPUT_DIM), jnp.float32)

        out, x_recon = fwd(params, x)
        jax.block_until_ready((out, x_recon))

        assert out.shape == (batch, NUM_CLASSES), out.shape
        assert x_recon.shape == (batch, INPUT_DIM), x_recon.shape

        # sanity-check against a plain-JAX reference using the same bf16 weights
        out_r, recon_r = ref(params, x)
        assert jnp.allclose(out, out_r, atol=1e-1, rtol=1e-1)
        assert jnp.allclose(x_recon, recon_r, atol=1e-1, rtol=1e-1)

    print("KERNEL_OK")
</pallas_src>

<mosaic_0001>
module attributes {stable_mosaic.version = 11 : i64} {
  func.func @sae_fused_kernel(%arg0: i32, %arg1: memref<16x768xf32, #tpu.memory_space<vmem>>, %arg2: memref<768x512xbf16, #tpu.memory_space<vmem>>, %arg3: memref<512x256xbf16, #tpu.memory_space<vmem>>, %arg4: memref<256x128xbf16, #tpu.memory_space<vmem>>, %arg5: memref<128x256xbf16, #tpu.memory_space<vmem>>, %arg6: memref<256x512xbf16, #tpu.memory_space<vmem>>, %arg7: memref<512x768xbf16, #tpu.memory_space<vmem>>, %arg8: memref<128x64xbf16, #tpu.memory_space<vmem>>, %arg9: memref<64x64xbf16, #tpu.memory_space<vmem>>, %arg10: memref<64x128xbf16, #tpu.memory_space<vmem>>, %arg11: memref<1x5120xf32, #tpu.memory_space<vmem>>, %arg12: memref<16x128xf32, #tpu.memory_space<vmem>>, %arg13: memref<16x768xf32, #tpu.memory_space<vmem>>) attributes {dimension_semantics = [#tpu.dimension_semantics<parallel>], iteration_bounds = array<i64: 1>, scalar_prefetch = 0 : i64, scratch_operands = 0 : i64, tpu.core_type = #tpu.core_type<tc>, window_params = [{transform_indices = @transform_0, window_bounds = array<i64: 16, 768>}, {pipeline_mode = #tpu.pipeline_mode<synchronous>, transform_indices = @transform_1, window_bounds = array<i64: 768, 512>}, {pipeline_mode = #tpu.pipeline_mode<synchronous>, transform_indices = @transform_2, window_bounds = array<i64: 512, 256>}, {pipeline_mode = #tpu.pipeline_mode<synchronous>, transform_indices = @transform_3, window_bounds = array<i64: 256, 128>}, {pipeline_mode = #tpu.pipeline_mode<synchronous>, transform_indices = @transform_4, window_bounds = array<i64: 128, 256>}, {pipeline_mode = #tpu.pipeline_mode<synchronous>, transform_indices = @transform_5, window_bounds = array<i64: 256, 512>}, {pipeline_mode = #tpu.pipeline_mode<synchronous>, transform_indices = @transform_6, window_bounds = array<i64: 512, 768>}, {pipeline_mode = #tpu.pipeline_mode<synchronous>, transform_indices = @transform_7, window_bounds = array<i64: 128, 64>}, {pipeline_mode = #tpu.pipeline_mode<synchronous>, transform_indices = @transform_8, window_bounds = array<i64: 64, 64>}, {pipeline_mode = #tpu.pipeline_mode<synchronous>, transform_indices = @transform_9, window_bounds = array<i64: 64, 128>}, {pipeline_mode = #tpu.pipeline_mode<synchronous>, transform_indices = @transform_10, window_bounds = array<i64: 1, 5120>}, {transform_indices = @transform_11, window_bounds = array<i64: 16, 128>}, {transform_indices = @transform_12, window_bounds = array<i64: 16, 768>}]} {
    %c0 = arith.constant 0 : index
    %c0_0 = arith.constant 0 : index
    %0 = vector.load %arg1[%c0, %c0_0] : memref<16x768xf32, #tpu.memory_space<vmem>>, vector<16x768xf32>
    %1 = arith.truncf %0 : vector<16x768xf32> to vector<16x768xbf16>
    %c0_1 = arith.constant 0 : index
    %c0_2 = arith.constant 0 : index
    %2 = vector.load %arg2[%c0_1, %c0_2] : memref<768x512xbf16, #tpu.memory_space<vmem>>, vector<768x512xbf16>
    %cst = arith.constant dense<0.000000e+00> : vector<16x512xf32>
    %3 = tpu.matmul %1, %2, %cst {dimension_numbers = #tpu.dot_dimension_numbers<[1], [0], [0], [1], [0, 0, 1, 1], [], []>} : vector<16x768xbf16>, vector<768x512xbf16>, vector<16x512xf32> -> vector<16x512xf32>
    %c0_3 = arith.constant 0 : index
    %c0_4 = arith.constant 0 : index
    %4 = vector.load %arg11[%c0_3, %c0_4] : memref<1x5120xf32, #tpu.memory_space<vmem>>, vector<1x512xf32>
    %5 = vector.broadcast %4 : vector<1x512xf32> to vector<16x512xf32>
    %6 = arith.addf %3, %5 : vector<16x512xf32>
    %cst_5 = arith.constant dense<0.000000e+00> : vector<16xf32>
    %7 = vector.multi_reduction <add>, %6, %cst_5 [1] : vector<16x512xf32> to vector<16xf32>
    %8 = vector.shape_cast %7 : vector<16xf32> to vector<16x1xf32>
    %cst_6 = arith.constant 5.120000e+02 : f32
    %9 = vector.broadcast %cst_6 : f32 to vector<16x1xf32>
    %10 = arith.divf %8, %9 : vector<16x1xf32>
    %11 = vector.broadcast %10 : vector<16x1xf32> to vector<16x512xf32>
    %12 = arith.subf %6, %11 : vector<16x512xf32>
    %13 = arith.mulf %12, %12 : vector<16x512xf32>
    %cst_7 = arith.constant dense<0.000000e+00> : vector<16xf32>
    %14 = vector.multi_reduction <add>, %13, %cst_7 [1] : vector<16x512xf32> to vector<16xf32>
    %15 = vector.shape_cast %14 : vector<16xf32> to vector<16x1xf32>
    %cst_8 = arith.constant 5.120000e+02 : f32
    %16 = vector.broadcast %cst_8 : f32 to vector<16x1xf32>
    %17 = arith.divf %15, %16 : vector<16x1xf32>
    %18 = vector.broadcast %10 : vector<16x1xf32> to vector<16x512xf32>
    %19 = arith.subf %6, %18 : vector<16x512xf32>
    %cst_9 = arith.constant 9.99999974E-6 : f32
    %20 = vector.broadcast %cst_9 : f32 to vector<16x1xf32>
    %21 = arith.addf %17, %20 : vector<16x1xf32>
    %22 = math.rsqrt %21 : vector<16x1xf32>
    %23 = vector.broadcast %22 : vector<16x1xf32> to vector<16x512xf32>
    %24 = arith.mulf %19, %23 : vector<16x512xf32>
    %c0_10 = arith.constant 0 : index
    %c2816 = arith.constant 2816 : index
    %25 = vector.load %arg11[%c0_10, %c2816] : memref<1x5120xf32, #tpu.memory_space<vmem>>, vector<1x512xf32>
    %26 = vector.broadcast %25 : vector<1x512xf32> to vector<16x512xf32>
    %27 = arith.mulf %24, %26 : vector<16x512xf32>
    %c0_11 = arith.constant 0 : index
    %c3328 = arith.constant 3328 : index
    %28 = vector.load %arg11[%c0_11, %c3328] : memref<1x5120xf32, #tpu.memory_space<vmem>>, vector<1x512xf32>
    %29 = vector.broadcast %28 : vector<1x512xf32> to vector<16x512xf32>
    %30 = arith.addf %27, %29 : vector<16x512xf32>
    %cst_12 = arith.constant 0.000000e+00 : f32
    %31 = vector.broadcast %cst_12 : f32 to vector<16x512xf32>
    %32 = arith.maximumf %30, %31 : vector<16x512xf32>
    %33 = arith.truncf %32 : vector<16x512xf32> to vector<16x512xbf16>
    %c0_13 = arith.constant 0 : index
    %c0_14 = arith.constant 0 : index
    %34 = vector.load %arg3[%c0_13, %c0_14] : memref<512x256xbf16, #tpu.memory_space<vmem>>, vector<512x256xbf16>
    %cst_15 = arith.constant dense<0.000000e+00> : vector<16x256xf32>
    %35 = tpu.matmul %33, %34, %cst_15 {dimension_numbers = #tpu.dot_dimension_numbers<[1], [0], [0], [1], [0, 0, 1, 1], [], []>} : vector<16x512xbf16>, vector<512x256xbf16>, vector<16x256xf32> -> vector<16x256xf32>
    %c0_16 = arith.constant 0 : index
    %c512 = arith.constant 512 : index
    %36 = vector.load %arg11[%c0_16, %c512] : memref<1x5120xf32, #tpu.memory_space<vmem>>, vector<1x256xf32>
    %37 = vector.broadcast %36 : vector<1x256xf32> to vector<16x256xf32>
    %38 = arith.addf %35, %37 : vector<16x256xf32>
    %cst_17 = arith.constant dense<0.000000e+00> : vector<16xf32>
    %39 = vector.multi_reduction <add>, %38, %cst_17 [1] : vector<16x256xf32> to vector<16xf32>
    %40 = vector.shape_cast %39 : vector<16xf32> to vector<16x1xf32>
    %cst_18 = arith.constant 2.560000e+02 : f32
    %41 = vector.broadcast %cst_18 : f32 to vector<16x1xf32>
    %42 = arith.divf %40, %41 : vector<16x1xf32>
    %43 = vector.broadcast %42 : vector<16x1xf32> to vector<16x256xf32>
    %44 = arith.subf %38, %43 : vector<16x256xf32>
    %45 = arith.mulf %44, %44 : vector<16x256xf32>
    %cst_19 = arith.constant dense<0.000000e+00> : vector<16xf32>
    %46 = vector.multi_reduction <add>, %45, %cst_19 [1] : vector<16x256xf32> to vector<16xf32>
    %47 = vector.shape_cast %46 : vector<16xf32> to vector<16x1xf32>
    %cst_20 = arith.constant 2.560000e+02 : f32
    %48 = vector.broadcast %cst_20 : f32 to vector<16x1xf32>
    %49 = arith.divf %47, %48 : vector<16x1xf32>
    %50 = vector.broadcast %42 : vector<16x1xf32> to vector<16x256xf32>
    %51 = arith.subf %38, %50 : vector<16x256xf32>
    %cst_21 = arith.constant 9.99999974E-6 : f32
    %52 = vector.broadcast %cst_21 : f32 to vector<16x1xf32>
    %53 = arith.addf %49, %52 : vector<16x1xf32>
    %54 = math.rsqrt %53 : vector<16x1xf32>
    %55 = vector.broadcast %54 : vector<16x1xf32> to vector<16x256xf32>
    %56 = arith.mulf %51, %55 : vector<16x256xf32>
    %c0_22 = arith.constant 0 : index
    %c3840 = arith.constant 3840 : index
    %57 = vector.load %arg11[%c0_22, %c3840] : memref<1x5120xf32, #tpu.memory_space<vmem>>, vector<1x256xf32>
    %58 = vector.broadcast %57 : vector<1x256xf32> to vector<16x256xf32>
    %59 = arith.mulf %56, %58 : vector<16x256xf32>
    %c0_23 = arith.constant 0 : index
    %c4096 = arith.constant 4096 : index
    %60 = vector.load %arg11[%c0_23, %c4096] : memref<1x5120xf32, #tpu.memory_space<vmem>>, vector<1x256xf32>
    %61 = vector.broadcast %60 : vector<1x256xf32> to vector<16x256xf32>
    %62 = arith.addf %59, %61 : vector<16x256xf32>
    %cst_24 = arith.constant 0.000000e+00 : f32
    %63 = vector.broadcast %cst_24 : f32 to vector<16x256xf32>
    %64 = arith.maximumf %62, %63 : vector<16x256xf32>
    %65 = arith.truncf %64 : vector<16x256xf32> to vector<16x256xbf16>
    %c0_25 = arith.constant 0 : index
    %c0_26 = arith.constant 0 : index
    %66 = vector.load %arg4[%c0_25, %c0_26] : memref<256x128xbf16, #tpu.memory_space<vmem>>, vector<256x128xbf16>
    %cst_27 = arith.constant dense<0.000000e+00> : vector<16x128xf32>
    %67 = tpu.matmul %65, %66, %cst_27 {dimension_numbers = #tpu.dot_dimension_numbers<[1], [0], [0], [1], [0, 0, 1, 1], [], []>} : vector<16x256xbf16>, vector<256x128xbf16>, vector<16x128xf32> -> vector<16x128xf32>
    %c0_28 = arith.constant 0 : index
    %c768 = arith.constant 768 : index
    %68 = vector.load %arg11[%c0_28, %c768] : memref<1x5120xf32, #tpu.memory_space<vmem>>, vector<1x128xf32>
    %69 = vector.broadcast %68 : vector<1x128xf32> to vector<16x128xf32>
    %70 = arith.addf %67, %69 : vector<16x128xf32>
    %cst_29 = arith.constant dense<0.000000e+00> : vector<16xf32>
    %71 = vector.multi_reduction <add>, %70, %cst_29 [1] : vector<16x128xf32> to vector<16xf32>
    %72 = vector.shape_cast %71 : vector<16xf32> to vector<16x1xf32>
    %cst_30 = arith.constant 1.280000e+02 : f32
    %73 = vector.broadcast %cst_30 : f32 to vector<16x1xf32>
    %74 = arith.divf %72, %73 : vector<16x1xf32>
    %75 = vector.broadcast %74 : vector<16x1xf32> to vector<16x128xf32>
    %76 = arith.subf %70, %75 : vector<16x128xf32>
    %77 = arith.mulf %76, %76 : vector<16x128xf32>
    %cst_31 = arith.constant dense<0.000000e+00> : vector<16xf32>
    %78 = vector.multi_reduction <add>, %77, %cst_31 [1] : vector<16x128xf32> to vector<16xf32>
    %79 = vector.shape_cast %78 : vector<16xf32> to vector<16x1xf32>
    %cst_32 = arith.constant 1.280000e+02 : f32
    %80 = vector.broadcast %cst_32 : f32 to vector<16x1xf32>
    %81 = arith.divf %79, %80 : vector<16x1xf32>
    %82 = vector.broadcast %74 : vector<16x1xf32> to vector<16x128xf32>
    %83 = arith.subf %70, %82 : vector<16x128xf32>
    %cst_33 = arith.constant 9.99999974E-6 : f32
    %84 = vector.broadcast %cst_33 : f32 to vector<16x1xf32>
    %85 = arith.addf %81, %84 : vector<16x1xf32>
    %86 = math.rsqrt %85 : vector<16x1xf32>
    %87 = vector.broadcast %86 : vector<16x1xf32> to vector<16x128xf32>
    %88 = arith.mulf %83, %87 : vector<16x128xf32>
    %c0_34 = arith.constant 0 : index
    %c4352 = arith.constant 4352 : index
    %89 = vector.load %arg11[%c0_34, %c4352] : memref<1x5120xf32, #tpu.memory_space<vmem>>, vector<1x128xf32>
    %90 = vector.broadcast %89 : vector<1x128xf32> to vector<16x128xf32>
    %91 = arith.mulf %88, %90 : vector<16x128xf32>
    %c0_35 = arith.constant 0 : index
    %c4480 = arith.constant 4480 : index
    %92 = vector.load %arg11[%c0_35, %c4480] : memref<1x5120xf32, #tpu.memory_space<vmem>>, vector<1x128xf32>
    %93 = vector.broadcast %92 : vector<1x128xf32> to vector<16x128xf32>
    %94 = arith.addf %91, %93 : vector<16x128xf32>
    %cst_36 = arith.constant 0.000000e+00 : f32
    %95 = vector.broadcast %cst_36 : f32 to vector<16x128xf32>
    %96 = arith.maximumf %94, %95 : vector<16x128xf32>
    %97 = arith.truncf %96 : vector<16x128xf32> to vector<16x128xbf16>
    %c0_37 = arith.constant 0 : index
    %c0_38 = arith.constant 0 : index
    %98 = vector.load %arg5[%c0_37, %c0_38] : memref<128x256xbf16, #tpu.memory_space<vmem>>, vector<128x256xbf16>
    %cst_39 = arith.constant dense<0.000000e+00> : vector<16x256xf32>
    %99 = tpu.matmul %97, %98, %cst_39 {dimension_numbers = #tpu.dot_dimension_numbers<[1], [0], [0], [1], [0, 0, 1, 1], [], []>} : vector<16x128xbf16>, vector<128x256xbf16>, vector<16x256xf32> -> vector<16x256xf32>
    %c0_40 = arith.constant 0 : index
    %c896 = arith.constant 896 : index
    %100 = vector.load %arg11[%c0_40, %c896] : memref<1x5120xf32, #tpu.memory_space<vmem>>, vector<1x256xf32>
    %101 = vector.broadcast %100 : vector<1x256xf32> to vector<16x256xf32>
    %102 = arith.addf %99, %101 : vector<16x256xf32>
    %cst_41 = arith.constant 0.000000e+00 : f32
    %103 = vector.broadcast %cst_41 : f32 to vector<16x256xf32>
    %104 = arith.maximumf %102, %103 : vector<16x256xf32>
    %105 = arith.truncf %104 : vector<16x256xf32> to vector<16x256xbf16>
    %c0_42 = arith.constant 0 : index
    %c0_43 = arith.constant 0 : index
    %106 = vector.load %arg6[%c0_42, %c0_43] : memref<256x512xbf16, #tpu.memory_space<vmem>>, vector<256x512xbf16>
    %cst_44 = arith.constant dense<0.000000e+00> : vector<16x512xf32>
    %107 = tpu.matmul %105, %106, %cst_44 {dimension_numbers = #tpu.dot_dimension_numbers<[1], [0], [0], [1], [0, 0, 1, 1], [], []>} : vector<16x256xbf16>, vector<256x512xbf16>, vector<16x512xf32> -> vector<16x512xf32>
    %c0_45 = arith.constant 0 : index
    %c1152 = arith.constant 1152 : index
    %108 = vector.load %arg11[%c0_45, %c1152] : memref<1x5120xf32, #tpu.memory_space<vmem>>, vector<1x512xf32>
    %109 = vector.broadcast %108 : vector<1x512xf32> to vector<16x512xf32>
    %110 = arith.addf %107, %109 : vector<16x512xf32>
    %cst_46 = arith.constant 0.000000e+00 : f32
    %111 = vector.broadcast %cst_46 : f32 to vector<16x512xf32>
    %112 = arith.maximumf %110, %111 : vector<16x512xf32>
    %113 = arith.truncf %112 : vector<16x512xf32> to vector<16x512xbf16>
    %c0_47 = arith.constant 0 : index
    %c0_48 = arith.constant 0 : index
    %114 = vector.load %arg7[%c0_47, %c0_48] : memref<512x768xbf16, #tpu.memory_space<vmem>>, vector<512x768xbf16>
    %cst_49 = arith.constant dense<0.000000e+00> : vector<16x768xf32>
    %115 = tpu.matmul %113, %114, %cst_49 {dimension_numbers = #tpu.dot_dimension_numbers<[1], [0], [0], [1], [0, 0, 1, 1], [], []>} : vector<16x512xbf16>, vector<512x768xbf16>, vector<16x768xf32> -> vector<16x768xf32>
    %c0_50 = arith.constant 0 : index
    %c1664 = arith.constant 1664 : index
    %116 = vector.load %arg11[%c0_50, %c1664] : memref<1x5120xf32, #tpu.memory_space<vmem>>, vector<1x768xf32>
    %117 = vector.broadcast %116 : vector<1x768xf32> to vector<16x768xf32>
    %118 = arith.addf %115, %117 : vector<16x768xf32>
    %c0_51 = arith.constant 0 : index
    %c0_52 = arith.constant 0 : index
    %119 = vector.load %arg13[%c0_51, %c0_52] : memref<16x768xf32, #tpu.memory_space<vmem>>, vector<16x768xf32>
    tpu.vector_store %arg13[%c0_51, %c0_52], %118 {strides = array<i32>} : memref<16x768xf32, #tpu.memory_space<vmem>>, vector<16x768xf32>,
    %c0_53 = arith.constant 0 : index
    %c0_54 = arith.constant 0 : index
    %120 = vector.load %arg8[%c0_53, %c0_54] : memref<128x64xbf16, #tpu.memory_space<vmem>>, vector<128x64xbf16>
    %cst_55 = arith.constant dense<0.000000e+00> : vector<16x64xf32>
    %121 = tpu.matmul %97, %120, %cst_55 {dimension_numbers = #tpu.dot_dimension_numbers<[1], [0], [0], [1], [0, 0, 1, 1], [], []>} : vector<16x128xbf16>, vector<128x64xbf16>, vector<16x64xf32> -> vector<16x64xf32>
    %c0_56 = arith.constant 0 : index
    %c2432 = arith.constant 2432 : index
    %122 = vector.load %arg11[%c0_56, %c2432] : memref<1x5120xf32, #tpu.memory_space<vmem>>, vector<1x64xf32>
    %123 = vector.broadcast %122 : vector<1x64xf32> to vector<16x64xf32>
    %124 = arith.addf %121, %123 : vector<16x64xf32>
    %cst_57 = arith.constant dense<0.000000e+00> : vector<16xf32>
    %125 = vector.multi_reduction <add>, %124, %cst_57 [1] : vector<16x64xf32> to vector<16xf32>
    %126 = vector.shape_cast %125 : vector<16xf32> to vector<16x1xf32>
    %cst_58 = arith.constant 6.400000e+01 : f32
    %127 = vector.broadcast %cst_58 : f32 to vector<16x1xf32>
    %128 = arith.divf %126, %127 : vector<16x1xf32>
    %129 = vector.broadcast %128 : vector<16x1xf32> to vector<16x64xf32>
    %130 = arith.subf %124, %129 : vector<16x64xf32>
    %131 = arith.mulf %130, %130 : vector<16x64xf32>
    %cst_59 = arith.constant dense<0.000000e+00> : vector<16xf32>
    %132 = vector.multi_reduction <add>, %131, %cst_59 [1] : vector<16x64xf32> to vector<16xf32>
    %133 = vector.shape_cast %132 : vector<16xf32> to vector<16x1xf32>
    %cst_60 = arith.constant 6.400000e+01 : f32
    %134 = vector.broadcast %cst_60 : f32 to vector<16x1xf32>
    %135 = arith.divf %133, %134 : vector<16x1xf32>
    %136 = vector.broadcast %128 : vector<16x1xf32> to vector<16x64xf32>
    %137 = arith.subf %124, %136 : vector<16x64xf32>
    %cst_61 = arith.constant 9.99999974E-6 : f32
    %138 = vector.broadcast %cst_61 : f32 to vector<16x1xf32>
    %139 = arith.addf %135, %138 : vector<16x1xf32>
    %140 = math.rsqrt %139 : vector<16x1xf32>
    %141 = vector.broadcast %140 : vector<16x1xf32> to vector<16x64xf32>
    %142 = arith.mulf %137, %141 : vector<16x64xf32>
    %c0_62 = arith.constant 0 : index
    %c4608 = arith.constant 4608 : index
    %143 = vector.load %arg11[%c0_62, %c4608] : memref<1x5120xf32, #tpu.memory_space<vmem>>, vector<1x64xf32>
    %144 = vector.broadcast %143 : vector<1x64xf32> to vector<16x64xf32>
    %145 = arith.mulf %142, %144 : vector<16x64xf32>
    %c0_63 = arith.constant 0 : index
    %c4736 = arith.constant 4736 : index
    %146 = vector.load %arg11[%c0_63, %c4736] : memref<1x5120xf32, #tpu.memory_space<vmem>>, vector<1x64xf32>
    %147 = vector.broadcast %146 : vector<1x64xf32> to vector<16x64xf32>
    %148 = arith.addf %145, %147 : vector<16x64xf32>
    %cst_64 = arith.constant 0.000000e+00 : f32
    %149 = vector.broadcast %cst_64 : f32 to vector<16x64xf32>
    %150 = arith.maximumf %148, %149 : vector<16x64xf32>
    %151 = arith.truncf %150 : vector<16x64xf32> to vector<16x64xbf16>
    %c0_65 = arith.constant 0 : index
    %c0_66 = arith.constant 0 : index
    %152 = vector.load %arg9[%c0_65, %c0_66] : memref<64x64xbf16, #tpu.memory_space<vmem>>, vector<64x64xbf16>
    %cst_67 = arith.constant dense<0.000000e+00> : vector<16x64xf32>
    %153 = tpu.matmul %151, %152, %cst_67 {dimension_numbers = #tpu.dot_dimension_numbers<[1], [0], [0], [1], [0, 0, 1, 1], [], []>} : vector<16x64xbf16>, vector<64x64xbf16>, vector<16x64xf32> -> vector<16x64xf32>
    %c0_68 = arith.constant 0 : index
    %c2560 = arith.constant 2560 : index
    %154 = vector.load %arg11[%c0_68, %c2560] : memref<1x5120xf32, #tpu.memory_space<vmem>>, vector<1x64xf32>
    %155 = vector.broadcast %154 : vector<1x64xf32> to vector<16x64xf32>
    %156 = arith.addf %153, %155 : vector<16x64xf32>
    %cst_69 = arith.constant dense<0.000000e+00> : vector<16xf32>
    %157 = vector.multi_reduction <add>, %156, %cst_69 [1] : vector<16x64xf32> to vector<16xf32>
    %158 = vector.shape_cast %157 : vector<16xf32> to vector<16x1xf32>
    %cst_70 = arith.constant 6.400000e+01 : f32
    %159 = vector.broadcast %cst_70 : f32 to vector<16x1xf32>
    %160 = arith.divf %158, %159 : vector<16x1xf32>
    %161 = vector.broadcast %160 : vector<16x1xf32> to vector<16x64xf32>
    %162 = arith.subf %156, %161 : vector<16x64xf32>
    %163 = arith.mulf %162, %162 : vector<16x64xf32>
    %cst_71 = arith.constant dense<0.000000e+00> : vector<16xf32>
    %164 = vector.multi_reduction <add>, %163, %cst_71 [1] : vector<16x64xf32> to vector<16xf32>
    %165 = vector.shape_cast %164 : vector<16xf32> to vector<16x1xf32>
    %cst_72 = arith.constant 6.400000e+01 : f32
    %166 = vector.broadcast %cst_72 : f32 to vector<16x1xf32>
    %167 = arith.divf %165, %166 : vector<16x1xf32>
    %168 = vector.broadcast %160 : vector<16x1xf32> to vector<16x64xf32>
    %169 = arith.subf %156, %168 : vector<16x64xf32>
    %cst_73 = arith.constant 9.99999974E-6 : f32
    %170 = vector.broadcast %cst_73 : f32 to vector<16x1xf32>
    %171 = arith.addf %167, %170 : vector<16x1xf32>
    %172 = math.rsqrt %171 : vector<16x1xf32>
    %173 = vector.broadcast %172 : vector<16x1xf32> to vector<16x64xf32>
    %174 = arith.mulf %169, %173 : vector<16x64xf32>
    %c0_74 = arith.constant 0 : index
    %c4864 = arith.constant 4864 : index
    %175 = vector.load %arg11[%c0_74, %c4864] : memref<1x5120xf32, #tpu.memory_space<vmem>>, vector<1x64xf32>
    %176 = vector.broadcast %175 : vector<1x64xf32> to vector<16x64xf32>
    %177 = arith.mulf %174, %176 : vector<16x64xf32>
    %c0_75 = arith.constant 0 : index
    %c4992 = arith.constant 4992 : index
    %178 = vector.load %arg11[%c0_75, %c4992] : memref<1x5120xf32, #tpu.memory_space<vmem>>, vector<1x64xf32>
    %179 = vector.broadcast %178 : vector<1x64xf32> to vector<16x64xf32>
    %180 = arith.addf %177, %179 : vector<16x64xf32>
    %cst_76 = arith.constant 0.000000e+00 : f32
    %181 = vector.broadcast %cst_76 : f32 to vector<16x64xf32>
    %182 = arith.maximumf %180, %181 : vector<16x64xf32>
    %183 = arith.truncf %182 : vector<16x64xf32> to vector<16x64xbf16>
    %c0_77 = arith.constant 0 : index
    %c0_78 = arith.constant 0 : index
    %184 = vector.load %arg10[%c0_77, %c0_78] : memref<64x128xbf16, #tpu.memory_space<vmem>>, vector<64x128xbf16>
    %cst_79 = arith.constant dense<0.000000e+00> : vector<16x128xf32>
    %185 = tpu.matmul %183, %184, %cst_79 {dimension_numbers = #tpu.dot_dimension_numbers<[1], [0], [0], [1], [0, 0, 1, 1], [], []>} : vector<16x64xbf16>, vector<64x128xbf16>, vector<16x128xf32> -> vector<16x128xf32>
    %c0_80 = arith.constant 0 : index
    %c2688 = arith.constant 2688 : index
    %186 = vector.load %arg11[%c0_80, %c2688] : memref<1x5120xf32, #tpu.memory_space<vmem>>, vector<1x128xf32>
    %187 = vector.broadcast %186 : vector<1x128xf32> to vector<16x128xf32>
    %188 = arith.addf %185, %187 : vector<16x128xf32>
    %c0_81 = arith.constant 0 : index
    %c0_82 = arith.constant 0 : index
    %189 = vector.load %arg12[%c0_81, %c0_82] : memref<16x128xf32, #tpu.memory_space<vmem>>, vector<16x128xf32>
    tpu.vector_store %arg12[%c0_81, %c0_82], %188 {strides = array<i32>} : memref<16x128xf32, #tpu.memory_space<vmem>>, vector<16x128xf32>,
    return
  }
  func.func @transform_0(%arg0: i32) -> (i32, i32) {
    %c0_i32 = arith.constant 0 : i32
    %c0_i32_0 = arith.constant 0 : i32
    return %arg0, %c0_i32 : i32, i32
  }
  func.func @transform_1(%arg0: i32) -> (i32, i32) {
    %c0_i32 = arith.constant 0 : i32
    %c0_i32_0 = arith.constant 0 : i32
    %c0_i32_1 = arith.constant 0 : i32
    return %c0_i32, %c0_i32_0 : i32, i32
  }
  func.func @transform_2(%arg0: i32) -> (i32, i32) {
    %c0_i32 = arith.constant 0 : i32
    %c0_i32_0 = arith.constant 0 : i32
    %c0_i32_1 = arith.constant 0 : i32
    return %c0_i32, %c0_i32_0 : i32, i32
  }
  func.func @transform_3(%arg0: i32) -> (i32, i32) {
    %c0_i32 = arith.constant 0 : i32
    %c0_i32_0 = arith.constant 0 : i32
    %c0_i32_1 = arith.constant 0 : i32
    return %c0_i32, %c0_i32_0 : i32, i32
  }
  func.func @transform_4(%arg0: i32) -> (i32, i32) {
    %c0_i32 = arith.constant 0 : i32
    %c0_i32_0 = arith.constant 0 : i32
    %c0_i32_1 = arith.constant 0 : i32
    return %c0_i32, %c0_i32_0 : i32, i32
  }
  func.func @transform_5(%arg0: i32) -> (i32, i32) {
    %c0_i32 = arith.constant 0 : i32
    %c0_i32_0 = arith.constant 0 : i32
    %c0_i32_1 = arith.constant 0 : i32
    return %c0_i32, %c0_i32_0 : i32, i32
  }
  func.func @transform_6(%arg0: i32) -> (i32, i32) {
    %c0_i32 = arith.constant 0 : i32
    %c0_i32_0 = arith.constant 0 : i32
    %c0_i32_1 = arith.constant 0 : i32
    return %c0_i32, %c0_i32_0 : i32, i32
  }
  func.func @transform_7(%arg0: i32) -> (i32, i32) {
    %c0_i32 = arith.constant 0 : i32
    %c0_i32_0 = arith.constant 0 : i32
    %c0_i32_1 = arith.constant 0 : i32
    return %c0_i32, %c0_i32_0 : i32, i32
  }
  func.func @transform_8(%arg0: i32) -> (i32, i32) {
    %c0_i32 = arith.constant 0 : i32
    %c0_i32_0 = arith.constant 0 : i32
    %c0_i32_1 = arith.constant 0 : i32
    return %c0_i32, %c0_i32_0 : i32, i32
  }
  func.func @transform_9(%arg0: i32) -> (i32, i32) {
    %c0_i32 = arith.constant 0 : i32
    %c0_i32_0 = arith.constant 0 : i32
    %c0_i32_1 = arith.constant 0 : i32
    return %c0_i32, %c0_i32_0 : i32, i32
  }
  func.func @transform_10(%arg0: i32) -> (i32, i32) {
    %c0_i32 = arith.constant 0 : i32
    %c0_i32_0 = arith.constant 0 : i32
    %c0_i32_1 = arith.constant 0 : i32
    return %c0_i32, %c0_i32_0 : i32, i32
  }
  func.func @transform_11(%arg0: i32) -> (i32, i32) {
    %c0_i32 = arith.constant 0 : i32
    %c0_i32_0 = arith.constant 0 : i32
    return %arg0, %c0_i32 : i32, i32
  }
  func.func @transform_12(%arg0: i32) -> (i32, i32) {
    %c0_i32 = arith.constant 0 : i32
    %c0_i32_0 = arith.constant 0 : i32
    return %arg0, %c0_i32 : i32, i32
  }
}

</mosaic_0001>

<llo_original>
// kernel: sae_classifier_forward.1
$region0: #{sae_classifier_forward.1}
  #allocation0 [shape = 'u32[]', space=smem, size = 0x4, offset = 0x4, fixed_abs, tag = 'smem constant byte address 0x4 - core index']
  #allocation1 [shape = 'u32[72,128]{1,0:T(1,128)}', space=vmem, size = 0x9000, scoped, tag = 'internal scratch']
  %s0 = inlined_call_operand.vmem [shape: f32[16,768], index: 0, kind: input, shape index: {}]
  %s1 = inlined_call_operand.hbm [shape: bf16[768,512], index: 1, kind: input, shape index: {}]
  %s2 = inlined_call_operand.hbm [shape: bf16[512,256], index: 2, kind: input, shape index: {}]
  %s3 = inlined_call_operand.vmem [shape: bf16[256,128], index: 3, kind: input, shape index: {}]
  %s4 = inlined_call_operand.vmem [shape: bf16[128,256], index: 4, kind: input, shape index: {}]
  %s5 = inlined_call_operand.hbm [shape: bf16[256,512], index: 5, kind: input, shape index: {}]
  %s6 = inlined_call_operand.hbm [shape: bf16[512,768], index: 6, kind: input, shape index: {}]
  %s7 = inlined_call_operand.vmem [shape: bf16[128,64], index: 7, kind: input, shape index: {}]
  %s8 = inlined_call_operand.hbm [shape: bf16[64,64], index: 8, kind: input, shape index: {}]
  %s9 = inlined_call_operand.hbm [shape: bf16[64,128], index: 9, kind: input, shape index: {}]
  %s10 = inlined_call_operand.vmem [shape: f32[1,5120], index: 10, kind: input, shape index: {}]
  %s11 = inlined_call_operand.vmem [shape: f32[16,128], index: 11, kind: output, shape index: {0}]
  %s12 = inlined_call_operand.vmem [shape: f32[16,768], index: 12, kind: output, shape index: {1}]
  %13 = xla_tuple %s11, %s12
  %s14 = sld [smem:[#allocation0]]
  $region86: #{sae_classifier_forward.1} parent=0
    _
  %s16 = ssub.s32 1, %s14
  %s17 = scalar_select 0, %s16, %s14
  $region1: #{sae_classifier_forward.1} parent=0
    #allocation2 [shape = 'u8[786432]{0}', space=vmem, size = 0xc0000, scoped, tag = 'input window, operand 1, single buffered']
    #allocation3 [shape = 's32[1]{0}', space=sflag, size = 0x4, scoped, tag = 'scoped memory for sae_classifier_forward.1']
    #allocation4 [shape = 'u8[262144]{0}', space=vmem, size = 0x40000, scoped, tag = 'input window, operand 2, single buffered']
    #allocation5 [shape = 's32[1]{0}', space=sflag, size = 0x4, scoped, tag = 'scoped memory for sae_classifier_forward.1']
    #allocation6 [shape = 'u8[262144]{0}', space=vmem, size = 0x40000, scoped, tag = 'input window, operand 5, single buffered']
    #allocation7 [shape = 'u8[786432]{0}', space=vmem, size = 0xc0000, scoped, tag = 'input window, operand 6, single buffered']
    #allocation8 [shape = 's32[1]{0}', space=sflag, size = 0x4, scoped, tag = 'scoped memory for sae_classifier_forward.1']
    #allocation9 [shape = 'u8[16384]{0}', space=vmem, size = 0x4000, scoped, tag = 'input window, operand 8, single buffered']
    #allocation10 [shape = 'u8[16384]{0}', space=vmem, size = 0x4000, scoped, tag = 'input window, operand 9, single buffered']
    #allocation11 [shape = 's32[1]{0}', space=sflag, size = 0x4, scoped, tag = 'scoped memory for sae_classifier_forward.1']
    %18 = vsyncpa [#allocation3], 0
    %19 = vsyncpa [#allocation5], 0
    %20 = vsyncpa [#allocation8], 0
    %21 = vsyncpa [#allocation11], 0
    // Predicated region
    $region2: #{sae_classifier_forward.1} parent=1 // pred_check
      _
    $region3: #{sae_classifier_forward.1} parent=1 // pred_check_branch
      %23 = sbr.rel (0) target = $region5
    $region4: #{sae_classifier_forward.1} parent=1 // pred_region
      _
    $region5: #{sae_classifier_forward.1} parent=1 // pred_fallthru
      _
    // Predicated region
    $region6: #{sae_classifier_forward.1} parent=1 // pred_check
      _
    $region7: #{sae_classifier_forward.1} parent=1 // pred_check_branch
      %25 = sbr.rel (0) target = $region9
    $region8: #{sae_classifier_forward.1} parent=1 // pred_region
      %27 = vsyncadd [#allocation3], 0
      %s28 = sshll.u32 %s1, 4
      %s29 = int_to_ptr.hbm [resolvable:$true] %s28
      %s30 = sshll.u32 [#allocation2], 4
      %s31 = int_to_ptr.vmem [resolvable:$true] %s30
      %36 = dma.hbm_to_vmem [thread:$0]  %s29, 24576, %s31, [#allocation3], 256, 256, 16
    $region9: #{sae_classifier_forward.1} parent=1 // pred_fallthru
      _
    // Predicated region
    $region10: #{sae_classifier_forward.1} parent=1 // pred_check
      _
    $region11: #{sae_classifier_forward.1} parent=1 // pred_check_branch
      %38 = sbr.rel (0) target = $region13
    $region12: #{sae_classifier_forward.1} parent=1 // pred_region
      %40 = vsyncadd [#allocation5], 0
      %s41 = sshll.u32 %s2, 4
      %s42 = int_to_ptr.hbm [resolvable:$true] %s41
      %s43 = sshll.u32 [#allocation4], 4
      %s44 = int_to_ptr.vmem [resolvable:$true] %s43
      %49 = dma.hbm_to_vmem [thread:$0]  %s42, 8192, %s44, [#allocation5], 128, 128, 8
    $region13: #{sae_classifier_forward.1} parent=1 // pred_fallthru
      _
    // Predicated region
    $region14: #{sae_classifier_forward.1} parent=1 // pred_check
      _
    $region15: #{sae_classifier_forward.1} parent=1 // pred_check_branch
      %51 = sbr.rel (0) target = $region17
    $region16: #{sae_classifier_forward.1} parent=1 // pred_region
      _
    $region17: #{sae_classifier_forward.1} parent=1 // pred_fallthru
      _
    // Predicated region
    $region18: #{sae_classifier_forward.1} parent=1 // pred_check
      _
    $region19: #{sae_classifier_forward.1} parent=1 // pred_check_branch
      %53 = sbr.rel (0) target = $region21
    $region20: #{sae_classifier_forward.1} parent=1 // pred_region
      _
    $region21: #{sae_classifier_forward.1} parent=1 // pred_fallthru
      _
    // Predicated region
    $region22: #{sae_classifier_forward.1} parent=1 // pred_check
      _
    $region23: #{sae_classifier_forward.1} parent=1 // pred_check_branch
      %55 = sbr.rel (0) target = $region25
    $region24: #{sae_classifier_forward.1} parent=1 // pred_region
      %57 = vsyncadd [#allocation5], 0
      %s58 = sshll.u32 %s5, 4
      %s59 = int_to_ptr.hbm [resolvable:$true] %s58
      %s60 = sshll.u32 [#allocation6], 4
      %s61 = int_to_ptr.vmem [resolvable:$true] %s60
      %66 = dma.hbm_to_vmem [thread:$0]  %s59, 8192, %s61, [#allocation5], 256, 256, 16
    $region25: #{sae_classifier_forward.1} parent=1 // pred_fallthru
      _
    // Predicated region
    $region26: #{sae_classifier_forward.1} parent=1 // pred_check
      _
    $region27: #{sae_classifier_forward.1} parent=1 // pred_check_branch
      %68 = sbr.rel (0) target = $region29
    $region28: #{sae_classifier_forward.1} parent=1 // pred_region
      %70 = vsyncadd [#allocation8], 0
      %s71 = sshll.u32 %s6, 4
      %s72 = int_to_ptr.hbm [resolvable:$true] %s71
      %s73 = sshll.u32 [#allocation7], 4
      %s74 = int_to_ptr.vmem [resolvable:$true] %s73
      %79 = dma.hbm_to_vmem [thread:$0]  %s72, 24576, %s74, [#allocation8], 384, 384, 24
    $region29: #{sae_classifier_forward.1} parent=1 // pred_fallthru
      _
    // Predicated region
    $region30: #{sae_classifier_forward.1} parent=1 // pred_check
      _
    $region31: #{sae_classifier_forward.1} parent=1 // pred_check_branch
      %81 = sbr.rel (0) target = $region33
    $region32: #{sae_classifier_forward.1} parent=1 // pred_region
      _
    $region33: #{sae_classifier_forward.1} parent=1 // pred_fallthru
      _
    // Predicated region
    $region34: #{sae_classifier_forward.1} parent=1 // pred_check
      _
    $region35: #{sae_classifier_forward.1} parent=1 // pred_check_branch
      %83 = sbr.rel (0) target = $region37
    $region36: #{sae_classifier_forward.1} parent=1 // pred_region
      %85 = vsyncadd [#allocation8], 0
      %s86 = sshll.u32 %s8, 4
      %s87 = int_to_ptr.hbm [resolvable:$true] %s86
      %s88 = sshll.u32 [#allocation9], 4
      %s89 = int_to_ptr.vmem [resolvable:$true] %s88
      %94 = dma.hbm_to_vmem [thread:$0]  %s87, 512, %s89, [#allocation8], 64, 64, 4
    $region37: #{sae_classifier_forward.1} parent=1 // pred_fallthru
      _
    // Predicated region
    $region38: #{sae_classifier_forward.1} parent=1 // pred_check
      _
    $region39: #{sae_classifier_forward.1} parent=1 // pred_check_branch
      %96 = sbr.rel (0) target = $region41
    $region40: #{sae_classifier_forward.1} parent=1 // pred_region
      %98 = vsyncadd [#allocation11], 0
      %s99 = sshll.u32 %s9, 4
      %s100 = int_to_ptr.hbm [resolvable:$true] %s99
      %s101 = sshll.u32 [#allocation10], 4
      %s102 = int_to_ptr.vmem [resolvable:$true] %s101
      %107 = dma.hbm_to_vmem [thread:$0]  %s100, 512, %s102, [#allocation11], 64, 64, 4
    $region41: #{sae_classifier_forward.1} parent=1 // pred_fallthru
      _
    // Predicated region
    $region42: #{sae_classifier_forward.1} parent=1 // pred_check
      _
    $region43: #{sae_classifier_forward.1} parent=1 // pred_check_branch
      %109 = sbr.rel (0) target = $region45
    $region44: #{sae_classifier_forward.1} parent=1 // pred_region
      _
    $region45: #{sae_classifier_forward.1} parent=1 // pred_fallthru
      _
    // Predicated region
    $region46: #{sae_classifier_forward.1} parent=1 // pred_check
      _
    $region47: #{sae_classifier_forward.1} parent=1 // pred_check_branch
      %111 = sbr.rel (0) target = $region49
    $region48: #{sae_classifier_forward.1} parent=1 // pred_region
      %113 = dma.done [#allocation3], 24576
    $region49: #{sae_classifier_forward.1} parent=1 // pred_fallthru
      _
    // Predicated region
    $region50: #{sae_classifier_forward.1} parent=1 // pred_check
      _
    $region51: #{sae_classifier_forward.1} parent=1 // pred_check_branch
      %115 = sbr.rel (0) target = $region53
    $region52: #{sae_classifier_forward.1} parent=1 // pred_region
      %117 = dma.done [#allocation5], 8192
    $region53: #{sae_classifier_forward.1} parent=1 // pred_fallthru
      _
    // Predicated region
    $region54: #{sae_classifier_forward.1} parent=1 // pred_check
      _
    $region55: #{sae_classifier_forward.1} parent=1 // pred_check_branch
      %119 = sbr.rel (0) target = $region57
    $region56: #{sae_classifier_forward.1} parent=1 // pred_region
      %121 = dma.done [#allocation5], 8192
    $region57: #{sae_classifier_forward.1} parent=1 // pred_fallthru
      _
    // Predicated region
    $region58: #{sae_classifier_forward.1} parent=1 // pred_check
      _
    $region59: #{sae_classifier_forward.1} parent=1 // pred_check_branch
      %123 = sbr.rel (0) target = $region61
    $region60: #{sae_classifier_forward.1} parent=1 // pred_region
      %125 = dma.done [#allocation8], 24576
    $region61: #{sae_classifier_forward.1} parent=1 // pred_fallthru
      _
    // Predicated region
    $region62: #{sae_classifier_forward.1} parent=1 // pred_check
      _
    $region63: #{sae_classifier_forward.1} parent=1 // pred_check_branch
      %127 = sbr.rel (0) target = $region65
    $region64: #{sae_classifier_forward.1} parent=1 // pred_region
      %129 = dma.done [#allocation8], 512
    $region65: #{sae_classifier_forward.1} parent=1 // pred_fallthru
      _
    // Predicated region
    $region66: #{sae_classifier_forward.1} parent=1 // pred_check
      _
    $region67: #{sae_classifier_forward.1} parent=1 // pred_check_branch
      %131 = sbr.rel (0) target = $region69
    $region68: #{sae_classifier_forward.1} parent=1 // pred_region
      %133 = dma.done [#allocation11], 512
    $region69: #{sae_classifier_forward.1} parent=1 // pred_fallthru
      _
    %v135 = vld [vmem:[%s0] sm:$0xff]
    %v136 = vld [vmem:[%s0 + $0x8] sm:$0xff]
    %v137 = vld [vmem:[%s0 + $0x10] sm:$0xff]
    %v138 = vld [vmem:[%s0 + $0x18] sm:$0xff]
    %v139 = vld [vmem:[%s0 + $0x20] sm:$0xff]
    %v140 = vld [vmem:[%s0 + $0x28] sm:$0xff]
    %v141 = vld [vmem:[%s0 + $0x30] sm:$0xff]
    %v142 = vld [vmem:[%s0 + $0x38] sm:$0xff]
    %v143 = vld [vmem:[%s0 + $0x40] sm:$0xff]
    %v144 = vld [vmem:[%s0 + $0x48] sm:$0xff]
    %v145 = vld [vmem:[%s0 + $0x50] sm:$0xff]
    %v146 = vld [vmem:[%s0 + $0x58] sm:$0xff]
    %v147 = vpack.c.bf16 %v141, %v135
    %v148 = vpack.c.bf16 %v142, %v136
    %v149 = vpack.c.bf16 %v143, %v137
    %v150 = vpack.c.bf16 %v144, %v138
    %v151 = vpack.c.bf16 %v145, %v139
    %v152 = vpack.c.bf16 %v146, %v140
    %v153 = vld [vmem:[#allocation2] sm:$0xff]
    %v154 = vld [vmem:[#allocation2 + $0x8] sm:$0xff]
    %v155 = vld [vmem:[#allocation2 + $0x10] sm:$0xff]
    %v156 = vld [vmem:[#allocation2 + $0x18] sm:$0xff]
    %v157 = vld [vmem:[#allocation2 + $0x20] sm:$0xff]
    %v158 = vld [vmem:[#allocation2 + $0x28] sm:$0xff]
    %v159 = vld [vmem:[#allocation2 + $0x30] sm:$0xff]
    %v160 = vld [vmem:[#allocation2 + $0x38] sm:$0xff]
    %v161 = vld [vmem:[#allocation2 + $0x40] sm:$0xff]
    %v162 = vld [vmem:[#allocation2 + $0x48] sm:$0xff]
    %v163 = vld [vmem:[#allocation2 + $0x50] sm:$0xff]
    %v164 = vld [vmem:[#allocation2 + $0x58] sm:$0xff]
    %v165 = vld [vmem:[#allocation2 + $0x60] sm:$0xff]
    %v166 = vld [vmem:[#allocation2 + $0x68] sm:$0xff]
    %v167 = vld [vmem:[#allocation2 + $0x70] sm:$0xff]
    %v168 = vld [vmem:[#allocation2 + $0x78] sm:$0xff]
    %v169 = vld [vmem:[#allocation2 + $0x80] sm:$0xff]
    %v170 = vld [vmem:[#allocation2 + $0x88] sm:$0xff]
    %v171 = vld [vmem:[#allocation2 + $0x90] sm:$0xff]
    %v172 = vld [vmem:[#allocation2 + $0x98] sm:$0xff]
    %v173 = vld [vmem:[#allocation2 + $0xa0] sm:$0xff]
    %v174 = vld [vmem:[#allocation2 + $0xa8] sm:$0xff]
    %v175 = vld [vmem:[#allocation2 + $0xb0] sm:$0xff]
    %v176 = vld [vmem:[#allocation2 + $0xb8] sm:$0xff]
    %v177 = vld [vmem:[#allocation2 + $0xc0] sm:$0xff]
    %v178 = vld [vmem:[#allocation2 + $0xc8] sm:$0xff]
    %v179 = vld [vmem:[#allocation2 + $0xd0] sm:$0xff]
    %v180 = vld [vmem:[#allocation2 + $0xd8] sm:$0xff]
    %v181 = vld [vmem:[#allocation2 + $0xe0] sm:$0xff]
    %v182 = vld [vmem:[#allocation2 + $0xe8] sm:$0xff]
    %v183 = vld [vmem:[#allocation2 + $0xf0] sm:$0xff]
    %v184 = vld [vmem:[#allocation2 + $0xf8] sm:$0xff]
    %v185 = vld [vmem:[#allocation2 + $0x100] sm:$0xff]
    %v186 = vld [vmem:[#allocation2 + $0x108] sm:$0xff]
    %v187 = vld [vmem:[#allocation2 + $0x110] sm:$0xff]
    %v188 = vld [vmem:[#allocation2 + $0x118] sm:$0xff]
    %v189 = vld [vmem:[#allocation2 + $0x120] sm:$0xff]
    %v190 = vld [vmem:[#allocation2 + $0x128] sm:$0xff]
    %v191 = vld [vmem:[#allocation2 + $0x130] sm:$0xff]
    %v192 = vld [vmem:[#allocation2 + $0x138] sm:$0xff]
    %v193 = vld [vmem:[#allocation2 + $0x140] sm:$0xff]
    %v194 = vld [vmem:[#allocation2 + $0x148] sm:$0xff]
    %v195 = vld [vmem:[#allocation2 + $0x150] sm:$0xff]
    %v196 = vld [vmem:[#allocation2 + $0x158] sm:$0xff]
    %v197 = vld [vmem:[#allocation2 + $0x160] sm:$0xff]
    %v198 = vld [vmem:[#allocation2 + $0x168] sm:$0xff]
    %v199 = vld [vmem:[#allocation2 + $0x170] sm:$0xff]
    %v200 = vld [vmem:[#allocation2 + $0x178] sm:$0xff]
    %v201 = vld [vmem:[#allocation2 + $0x180] sm:$0xff]
    %v202 = vld [vmem:[#allocation2 + $0x188] sm:$0xff]
    %v203 = vld [vmem:[#allocation2 + $0x190] sm:$0xff]
    %v204 = vld [vmem:[#allocation2 + $0x198] sm:$0xff]
    %v205 = vld [vmem:[#allocation2 + $0x1a0] sm:$0xff]
    %v206 = vld [vmem:[#allocation2 + $0x1a8] sm:$0xff]
    %v207 = vld [vmem:[#allocation2 + $0x1b0] sm:$0xff]
    %v208 = vld [vmem:[#allocation2 + $0x1b8] sm:$0xff]
    %v209 = vld [vmem:[#allocation2 + $0x1c0] sm:$0xff]
    %v210 = vld [vmem:[#allocation2 + $0x1c8] sm:$0xff]
    %v211 = vld [vmem:[#allocation2 + $0x1d0] sm:$0xff]
    %v212 = vld [vmem:[#allocation2 + $0x1d8] sm:$0xff]
    %v213 = vld [vmem:[#allocation2 + $0x1e0] sm:$0xff]
    %v214 = vld [vmem:[#allocation2 + $0x1e8] sm:$0xff]
    %v215 = vld [vmem:[#allocation2 + $0x1f0] sm:$0xff]
    %v216 = vld [vmem:[#allocation2 + $0x1f8] sm:$0xff]
    %v217 = vld [vmem:[#allocation2 + $0x200] sm:$0xff]
    %v218 = vld [vmem:[#allocation2 + $0x208] sm:$0xff]
    %v219 = vld [vmem:[#allocation2 + $0x210] sm:$0xff]
    %v220 = vld [vmem:[#allocation2 + $0x218] sm:$0xff]
    %v221 = vld [vmem:[#allocation2 + $0x220] sm:$0xff]
    %v222 = vld [vmem:[#allocation2 + $0x228] sm:$0xff]
    %v223 = vld [vmem:[#allocation2 + $0x230] sm:$0xff]
    %v224 = vld [vmem:[#allocation2 + $0x238] sm:$0xff]
    %v225 = vld [vmem:[#allocation2 + $0x240] sm:$0xff]
    %v226 = vld [vmem:[#allocation2 + $0x248] sm:$0xff]
    %v227 = vld [vmem:[#allocation2 + $0x250] sm:$0xff]
    %v228 = vld [vmem:[#allocation2 + $0x258] sm:$0xff]
    %v229 = vld [vmem:[#allocation2 + $0x260] sm:$0xff]
    %v230 = vld [vmem:[#allocation2 + $0x268] sm:$0xff]
    %v231 = vld [vmem:[#allocation2 + $0x270] sm:$0xff]
    %v232 = vld [vmem:[#allocation2 + $0x278] sm:$0xff]
    %v233 = vld [vmem:[#allocation2 + $0x280] sm:$0xff]
    %v234 = vld [vmem:[#allocation2 + $0x288] sm:$0xff]
    %v235 = vld [vmem:[#allocation2 + $0x290] sm:$0xff]
    %v236 = vld [vmem:[#allocation2 + $0x298] sm:$0xff]
    %v237 = vld [vmem:[#allocation2 + $0x2a0] sm:$0xff]
    %v238 = vld [vmem:[#allocation2 + $0x2a8] sm:$0xff]
    %v239 = vld [vmem:[#allocation2 + $0x2b0] sm:$0xff]
    %v240 = vld [vmem:[#allocation2 + $0x2b8] sm:$0xff]
    %v241 = vld [vmem:[#allocation2 + $0x2c0] sm:$0xff]
    %v242 = vld [vmem:[#allocation2 + $0x2c8] sm:$0xff]
    %v243 = vld [vmem:[#allocation2 + $0x2d0] sm:$0xff]
    %v244 = vld [vmem:[#allocation2 + $0x2d8] sm:$0xff]
    %v245 = vld [vmem:[#allocation2 + $0x2e0] sm:$0xff]
    %v246 = vld [vmem:[#allocation2 + $0x2e8] sm:$0xff]
    %v247 = vld [vmem:[#allocation2 + $0x2f0] sm:$0xff]
    %v248 = vld [vmem:[#allocation2 + $0x2f8] sm:$0xff]
    %v249 = vld [vmem:[#allocation2 + $0x300] sm:$0xff]
    %v250 = vld [vmem:[#allocation2 + $0x308] sm:$0xff]
    %v251 = vld [vmem:[#allocation2 + $0x310] sm:$0xff]
    %v252 = vld [vmem:[#allocation2 + $0x318] sm:$0xff]
    %v253 = vld [vmem:[#allocation2 + $0x320] sm:$0xff]
    %v254 = vld [vmem:[#allocation2 + $0x328] sm:$0xff]
    %v255 = vld [vmem:[#allocation2 + $0x330] sm:$0xff]
    %v256 = vld [vmem:[#allocation2 + $0x338] sm:$0xff]
    %v257 = vld [vmem:[#allocation2 + $0x340] sm:$0xff]
    %v258 = vld [vmem:[#allocation2 + $0x348] sm:$0xff]
    %v259 = vld [vmem:[#allocation2 + $0x350] sm:$0xff]
    %v260 = vld [vmem:[#allocation2 + $0x358] sm:$0xff]
    %v261 = vld [vmem:[#allocation2 + $0x360] sm:$0xff]
    %v262 = vld [vmem:[#allocation2 + $0x368] sm:$0xff]
    %v263 = vld [vmem:[#allocation2 + $0x370] sm:$0xff]
    %v264 = vld [vmem:[#allocation2 + $0x378] sm:$0xff]
    %v265 = vld [vmem:[#allocation2 + $0x380] sm:$0xff]
    %v266 = vld [vmem:[#allocation2 + $0x388] sm:$0xff]
    %v267 = vld [vmem:[#allocation2 + $0x390] sm:$0xff]
    %v268 = vld [vmem:[#allocation2 + $0x398] sm:$0xff]
    %v269 = vld [vmem:[#allocation2 + $0x3a0] sm:$0xff]
    %v270 = vld [vmem:[#allocation2 + $0x3a8] sm:$0xff]
    %v271 = vld [vmem:[#allocation2 + $0x3b0] sm:$0xff]
    %v272 = vld [vmem:[#allocation2 + $0x3b8] sm:$0xff]
    %v273 = vld [vmem:[#allocation2 + $0x3c0] sm:$0xff]
    %v274 = vld [vmem:[#allocation2 + $0x3c8] sm:$0xff]
    %v275 = vld [vmem:[#allocation2 + $0x3d0] sm:$0xff]
    %v276 = vld [vmem:[#allocation2 + $0x3d8] sm:$0xff]
    %v277 = vld [vmem:[#allocation2 + $0x3e0] sm:$0xff]
    %v278 = vld [vmem:[#allocation2 + $0x3e8] sm:$0xff]
    %v279 = vld [vmem:[#allocation2 + $0x3f0] sm:$0xff]
    %v280 = vld [vmem:[#allocation2 + $0x3f8] sm:$0xff]
    %v281 = vld [vmem:[#allocation2 + $0x400] sm:$0xff]
    %v282 = vld [vmem:[#allocation2 + $0x408] sm:$0xff]
    %v283 = vld [vmem:[#allocation2 + $0x410] sm:$0xff]
    %v284 = vld [vmem:[#allocation2 + $0x418] sm:$0xff]
    %v285 = vld [vmem:[#allocation2 + $0x420] sm:$0xff]
    %v286 = vld [vmem:[#allocation2 + $0x428] sm:$0xff]
    %v287 = vld [vmem:[#allocation2 + $0x430] sm:$0xff]
    %v288 = vld [vmem:[#allocation2 + $0x438] sm:$0xff]
    %v289 = vld [vmem:[#allocation2 + $0x440] sm:$0xff]
    %v290 = vld [vmem:[#allocation2 + $0x448] sm:$0xff]
    %v291 = vld [vmem:[#allocation2 + $0x450] sm:$0xff]
    %v292 = vld [vmem:[#allocation2 + $0x458] sm:$0xff]
    %v293 = vld [vmem:[#allocation2 + $0x460] sm:$0xff]
    %v294 = vld [vmem:[#allocation2 + $0x468] sm:$0xff]
    %v295 = vld [vmem:[#allocation2 + $0x470] sm:$0xff]
    %v296 = vld [vmem:[#allocation2 + $0x478] sm:$0xff]
    %v297 = vld [vmem:[#allocation2 + $0x480] sm:$0xff]
    %v298 = vld [vmem:[#allocation2 + $0x488] sm:$0xff]
    %v299 = vld [vmem:[#allocation2 + $0x490] sm:$0xff]
    %v300 = vld [vmem:[#allocation2 + $0x498] sm:$0xff]
    %v301 = vld [vmem:[#allocation2 + $0x4a0] sm:$0xff]
    %v302 = vld [vmem:[#allocation2 + $0x4a8] sm:$0xff]
    %v303 = vld [vmem:[#allocation2 + $0x4b0] sm:$0xff]
    %v304 = vld [vmem:[#allocation2 + $0x4b8] sm:$0xff]
    %v305 = vld [vmem:[#allocation2 + $0x4c0] sm:$0xff]
    %v306 = vld [vmem:[#allocation2 + $0x4c8] sm:$0xff]
    %v307 = vld [vmem:[#allocation2 + $0x4d0] sm:$0xff]
    %v308 = vld [vmem:[#allocation2 + $0x4d8] sm:$0xff]
    %v309 = vld [vmem:[#allocation2 + $0x4e0] sm:$0xff]
    %v310 = vld [vmem:[#allocation2 + $0x4e8] sm:$0xff]
    %v311 = vld [vmem:[#allocation2 + $0x4f0] sm:$0xff]
    %v312 = vld [vmem:[#allocation2 + $0x4f8] sm:$0xff]
    %v313 = vld [vmem:[#allocation2 + $0x500] sm:$0xff]
    %v314 = vld [vmem:[#allocation2 + $0x508] sm:$0xff]
    %v315 = vld [vmem:[#allocation2 + $0x510] sm:$0xff]
    %v316 = vld [vmem:[#allocation2 + $0x518] sm:$0xff]
    %v317 = vld [vmem:[#allocation2 + $0x520] sm:$0xff]
    %v318 = vld [vmem:[#allocation2 + $0x528] sm:$0xff]
    %v319 = vld [vmem:[#allocation2 + $0x530] sm:$0xff]
    %v320 = vld [vmem:[#allocation2 + $0x538] sm:$0xff]
    %v321 = vld [vmem:[#allocation2 + $0x540] sm:$0xff]
    %v322 = vld [vmem:[#allocation2 + $0x548] sm:$0xff]
    %v323 = vld [vmem:[#allocation2 + $0x550] sm:$0xff]
    %v324 = vld [vmem:[#allocation2 + $0x558] sm:$0xff]
    %v325 = vld [vmem:[#allocation2 + $0x560] sm:$0xff]
    %v326 = vld [vmem:[#allocation2 + $0x568] sm:$0xff]
    %v327 = vld [vmem:[#allocation2 + $0x570] sm:$0xff]
    %v328 = vld [vmem:[#allocation2 + $0x578] sm:$0xff]
    %v329 = vld [vmem:[#allocation2 + $0x580] sm:$0xff]
    %v330 = vld [vmem:[#allocation2 + $0x588] sm:$0xff]
    %v331 = vld [vmem:[#allocation2 + $0x590] sm:$0xff]
    %v332 = vld [vmem:[#allocation2 + $0x598] sm:$0xff]
    %v333 = vld [vmem:[#allocation2 + $0x5a0] sm:$0xff]
    %v334 = vld [vmem:[#allocation2 + $0x5a8] sm:$0xff]
    %v335 = vld [vmem:[#allocation2 + $0x5b0] sm:$0xff]
    %v336 = vld [vmem:[#allocation2 + $0x5b8] sm:$0xff]
    %v337 = vld [vmem:[#allocation2 + $0x5c0] sm:$0xff]
    %v338 = vld [vmem:[#allocation2 + $0x5c8] sm:$0xff]
    %v339 = vld [vmem:[#allocation2 + $0x5d0] sm:$0xff]
    %v340 = vld [vmem:[#allocation2 + $0x5d8] sm:$0xff]
    %v341 = vld [vmem:[#allocation2 + $0x5e0] sm:$0xff]
    %v342 = vld [vmem:[#allocation2 + $0x5e8] sm:$0xff]
    %v343 = vld [vmem:[#allocation2 + $0x5f0] sm:$0xff]
    %v344 = vld [vmem:[#allocation2 + $0x5f8] sm:$0xff]
    %v345 = vld [vmem:[%s10] sm:$0xf]
    %v347 = vperm.slane %v345, 0
    %v348 = vperm.slane %v345, 1
    %v349 = vperm.slane %v345, 2
    %v350 = vperm.slane %v345, 3
    %v547 = vunpack.c.l.b16 %v153
    %v548 = vunpack.c.h.b16 %v153
    %v549 = vunpack.c.l.b16 %v154
    %v550 = vunpack.c.h.b16 %v154
    %v551 = vunpack.c.l.b16 %v155
    %v552 = vunpack.c.h.b16 %v155
    %v553 = vunpack.c.l.b16 %v156
    %v554 = vunpack.c.h.b16 %v156
    %v555 = vunpack.c.l.b16 %v157
    %v556 = vunpack.c.h.b16 %v157
    %v557 = vunpack.c.l.b16 %v158
    %v558 = vunpack.c.h.b16 %v158
    %v559 = vunpack.c.l.b16 %v159
    %v560 = vunpack.c.h.b16 %v159
    %v561 = vunpack.c.l.b16 %v160
    %v562 = vunpack.c.h.b16 %v160
    %v563 = vunpack.c.l.b16 %v161
    %v564 = vunpack.c.h.b16 %v161
    %v565 = vunpack.c.l.b16 %v162
    %v566 = vunpack.c.h.b16 %v162
    %v567 = vunpack.c.l.b16 %v163
    %v568 = vunpack.c.h.b16 %v163
    %v569 = vunpack.c.l.b16 %v164
    %v570 = vunpack.c.h.b16 %v164
    %v571 = vunpack.c.l.b16 %v165
    %v572 = vunpack.c.h.b16 %v165
    %v573 = vunpack.c.l.b16 %v166
    %v574 = vunpack.c.h.b16 %v166
    %v575 = vunpack.c.l.b16 %v167
    %v576 = vunpack.c.h.b16 %v167
    %v577 = vunpack.c.l.b16 %v168
    %v578 = vunpack.c.h.b16 %v168
    %v579 = vunpack.c.l.b16 %v169
    %v580 = vunpack.c.h.b16 %v169
    %v581 = vunpack.c.l.b16 %v170
    %v582 = vunpack.c.h.b16 %v170
    %v583 = vunpack.c.l.b16 %v171
    %v584 = vunpack.c.h.b16 %v171
    %v585 = vunpack.c.l.b16 %v172
    %v586 = vunpack.c.h.b16 %v172
    %v587 = vunpack.c.l.b16 %v173
    %v588 = vunpack.c.h.b16 %v173
    %v589 = vunpack.c.l.b16 %v174
    %v590 = vunpack.c.h.b16 %v174
    %v591 = vunpack.c.l.b16 %v175
    %v592 = vunpack.c.h.b16 %v175
    %v593 = vunpack.c.l.b16 %v176
    %v594 = vunpack.c.h.b16 %v176
    %v595 = vunpack.c.l.b16 %v177
    %v596 = vunpack.c.h.b16 %v177
    %v597 = vunpack.c.l.b16 %v178
    %v598 = vunpack.c.h.b16 %v178
    %v599 = vunpack.c.l.b16 %v179
    %v600 = vunpack.c.h.b16 %v179
    %v601 = vunpack.c.l.b16 %v180
    %v602 = vunpack.c.h.b16 %v180
    %v603 = vunpack.c.l.b16 %v181
    %v604 = vunpack.c.h.b16 %v181
    %v605 = vunpack.c.l.b16 %v182
    %v606 = vunpack.c.h.b16 %v182
    %v607 = vunpack.c.l.b16 %v183
    %v608 = vunpack.c.h.b16 %v183
    %v609 = vunpack.c.l.b16 %v184
    %v610 = vunpack.c.h.b16 %v184
    %v611 = vunpack.c.l.b16 %v185
    %v612 = vunpack.c.h.b16 %v185
    %v613 = vunpack.c.l.b16 %v186
    %v614 = vunpack.c.h.b16 %v186
    %v615 = vunpack.c.l.b16 %v187
    %v616 = vunpack.c.h.b16 %v187
    %v617 = vunpack.c.l.b16 %v188
    %v618 = vunpack.c.h.b16 %v188
    %v619 = vunpack.c.l.b16 %v189
    %v620 = vunpack.c.h.b16 %v189
    %v621 = vunpack.c.l.b16 %v190
    %v622 = vunpack.c.h.b16 %v190
    %v623 = vunpack.c.l.b16 %v191
    %v624 = vunpack.c.h.b16 %v191
    %v625 = vunpack.c.l.b16 %v192
    %v626 = vunpack.c.h.b16 %v192
    %v627 = vunpack.c.l.b16 %v193
    %v628 = vunpack.c.h.b16 %v193
    %v629 = vunpack.c.l.b16 %v194
    %v630 = vunpack.c.h.b16 %v194
    %v631 = vunpack.c.l.b16 %v195
    %v632 = vunpack.c.h.b16 %v195
    %v633 = vunpack.c.l.b16 %v196
    %v634 = vunpack.c.h.b16 %v196
    %v635 = vunpack.c.l.b16 %v197
    %v636 = vunpack.c.h.b16 %v197
    %v637 = vunpack.c.l.b16 %v198
    %v638 = vunpack.c.h.b16 %v198
    %v639 = vunpack.c.l.b16 %v199
    %v640 = vunpack.c.h.b16 %v199
    %v641 = vunpack.c.l.b16 %v200
    %v642 = vunpack.c.h.b16 %v200
    %v643 = vunpack.c.l.b16 %v201
    %v644 = vunpack.c.h.b16 %v201
    %v645 = vunpack.c.l.b16 %v202
    %v646 = vunpack.c.h.b16 %v202
    %v647 = vunpack.c.l.b16 %v203
    %v648 = vunpack.c.h.b16 %v203
    %v649 = vunpack.c.l.b16 %v204
    %v650 = vunpack.c.h.b16 %v204
    %v651 = vunpack.c.l.b16 %v205
    %v652 = vunpack.c.h.b16 %v205
    %v653 = vunpack.c.l.b16 %v206
    %v654 = vunpack.c.h.b16 %v206
    %v655 = vunpack.c.l.b16 %v207
    %v656 = vunpack.c.h.b16 %v207
    %v657 = vunpack.c.l.b16 %v208
    %v658 = vunpack.c.h.b16 %v208
    %v659 = vunpack.c.l.b16 %v209
    %v660 = vunpack.c.h.b16 %v209
    %v661 = vunpack.c.l.b16 %v210
    %v662 = vunpack.c.h.b16 %v210
    %v663 = vunpack.c.l.b16 %v211
    %v664 = vunpack.c.h.b16 %v211
    %v665 = vunpack.c.l.b16 %v212
    %v666 = vunpack.c.h.b16 %v212
    %v667 = vunpack.c.l.b16 %v213
    %v668 = vunpack.c.h.b16 %v213
    %v669 = vunpack.c.l.b16 %v214
    %v670 = vunpack.c.h.b16 %v214
    %v671 = vunpack.c.l.b16 %v215
    %v672 = vunpack.c.h.b16 %v215
    %v673 = vunpack.c.l.b16 %v216
    %v674 = vunpack.c.h.b16 %v216
    %v675 = vunpack.c.l.b16 %v217
    %v676 = vunpack.c.h.b16 %v217
    %v677 = vunpack.c.l.b16 %v218
    %v678 = vunpack.c.h.b16 %v218
    %v679 = vunpack.c.l.b16 %v219
    %v680 = vunpack.c.h.b16 %v219
    %v681 = vunpack.c.l.b16 %v220
    %v682 = vunpack.c.h.b16 %v220
    %v683 = vunpack.c.l.b16 %v221
    %v684 = vunpack.c.h.b16 %v221
    %v685 = vunpack.c.l.b16 %v222
    %v686 = vunpack.c.h.b16 %v222
    %v687 = vunpack.c.l.b16 %v223
    %v688 = vunpack.c.h.b16 %v223
    %v689 = vunpack.c.l.b16 %v224
    %v690 = vunpack.c.h.b16 %v224
    %v691 = vunpack.c.l.b16 %v225
    %v692 = vunpack.c.h.b16 %v225
    %v693 = vunpack.c.l.b16 %v226
    %v694 = vunpack.c.h.b16 %v226
    %v695 = vunpack.c.l.b16 %v227
    %v696 = vunpack.c.h.b16 %v227
    %v697 = vunpack.c.l.b16 %v228
    %v698 = vunpack.c.h.b16 %v228
    %v699 = vunpack.c.l.b16 %v229
    %v700 = vunpack.c.h.b16 %v229
    %v701 = vunpack.c.l.b16 %v230
    %v702 = vunpack.c.h.b16 %v230
    %v703 = vunpack.c.l.b16 %v231
    %v704 = vunpack.c.h.b16 %v231
    %v705 = vunpack.c.l.b16 %v232
    %v706 = vunpack.c.h.b16 %v232
    %v707 = vunpack.c.l.b16 %v233
    %v708 = vunpack.c.h.b16 %v233
    %v709 = vunpack.c.l.b16 %v234
    %v710 = vunpack.c.h.b16 %v234
    %v711 = vunpack.c.l.b16 %v235
    %v712 = vunpack.c.h.b16 %v235
    %v713 = vunpack.c.l.b16 %v236
    %v714 = vunpack.c.h.b16 %v236
    %v715 = vunpack.c.l.b16 %v237
    %v716 = vunpack.c.h.b16 %v237
    %v717 = vunpack.c.l.b16 %v238
    %v718 = vunpack.c.h.b16 %v238
    %v719 = vunpack.c.l.b16 %v239
    %v720 = vunpack.c.h.b16 %v239
    %v721 = vunpack.c.l.b16 %v240
    %v722 = vunpack.c.h.b16 %v240
    %v723 = vunpack.c.l.b16 %v241
    %v724 = vunpack.c.h.b16 %v241
    %v725 = vunpack.c.l.b16 %v242
    %v726 = vunpack.c.h.b16 %v242
    %v727 = vunpack.c.l.b16 %v243
    %v728 = vunpack.c.h.b16 %v243
    %v729 = vunpack.c.l.b16 %v244
    %v730 = vunpack.c.h.b16 %v244
    %v731 = vunpack.c.l.b16 %v245
    %v732 = vunpack.c.h.b16 %v245
    %v733 = vunpack.c.l.b16 %v246
    %v734 = vunpack.c.h.b16 %v246
    %v735 = vunpack.c.l.b16 %v247
    %v736 = vunpack.c.h.b16 %v247
    %v737 = vunpack.c.l.b16 %v248
    %v738 = vunpack.c.h.b16 %v248
    %v739 = vunpack.c.l.b16 %v249
    %v740 = vunpack.c.h.b16 %v249
    %v741 = vunpack.c.l.b16 %v250
    %v742 = vunpack.c.h.b16 %v250
    %v743 = vunpack.c.l.b16 %v251
    %v744 = vunpack.c.h.b16 %v251
    %v745 = vunpack.c.l.b16 %v252
    %v746 = vunpack.c.h.b16 %v252
    %v747 = vunpack.c.l.b16 %v253
    %v748 = vunpack.c.h.b16 %v253
    %v749 = vunpack.c.l.b16 %v254
    %v750 = vunpack.c.h.b16 %v254
    %v751 = vunpack.c.l.b16 %v255
    %v752 = vunpack.c.h.b16 %v255
    %v753 = vunpack.c.l.b16 %v256
    %v754 = vunpack.c.h.b16 %v256
    %v755 = vunpack.c.l.b16 %v257
    %v756 = vunpack.c.h.b16 %v257
    %v757 = vunpack.c.l.b16 %v258
    %v758 = vunpack.c.h.b16 %v258
    %v759 = vunpack.c.l.b16 %v259
    %v760 = vunpack.c.h.b16 %v259
    %v761 = vunpack.c.l.b16 %v260
    %v762 = vunpack.c.h.b16 %v260
    %v763 = vunpack.c.l.b16 %v261
    %v764 = vunpack.c.h.b16 %v261
    %v765 = vunpack.c.l.b16 %v262
    %v766 = vunpack.c.h.b16 %v262
    %v767 = vunpack.c.l.b16 %v263
    %v768 = vunpack.c.h.b16 %v263
    %v769 = vunpack.c.l.b16 %v264
    %v770 = vunpack.c.h.b16 %v264
    %v771 = vunpack.c.l.b16 %v265
    %v772 = vunpack.c.h.b16 %v265
    %v773 = vunpack.c.l.b16 %v266
    %v774 = vunpack.c.h.b16 %v266
    %v775 = vunpack.c.l.b16 %v267
    %v776 = vunpack.c.h.b16 %v267
    %v777 = vunpack.c.l.b16 %v268
    %v778 = vunpack.c.h.b16 %v268
    %v779 = vunpack.c.l.b16 %v269
    %v780 = vunpack.c.h.b16 %v269
    %v781 = vunpack.c.l.b16 %v270
    %v782 = vunpack.c.h.b16 %v270
    %v783 = vunpack.c.l.b16 %v271
    %v784 = vunpack.c.h.b16 %v271
    %v785 = vunpack.c.l.b16 %v272
    %v786 = vunpack.c.h.b16 %v272
    %v787 = vunpack.c.l.b16 %v273
    %v788 = vunpack.c.h.b16 %v273
    %v789 = vunpack.c.l.b16 %v274
    %v790 = vunpack.c.h.b16 %v274
    %v791 = vunpack.c.l.b16 %v275
    %v792 = vunpack.c.h.b16 %v275
    %v793 = vunpack.c.l.b16 %v276
    %v794 = vunpack.c.h.b16 %v276
    %v795 = vunpack.c.l.b16 %v277
    %v796 = vunpack.c.h.b16 %v277
    %v797 = vunpack.c.l.b16 %v278
    %v798 = vunpack.c.h.b16 %v278
    %v799 = vunpack.c.l.b16 %v279
    %v800 = vunpack.c.h.b16 %v279
    %v801 = vunpack.c.l.b16 %v280
    %v802 = vunpack.c.h.b16 %v280
    %v803 = vunpack.c.l.b16 %v281
    %v804 = vunpack.c.h.b16 %v281
    %v805 = vunpack.c.l.b16 %v282
    %v806 = vunpack.c.h.b16 %v282
    %v807 = vunpack.c.l.b16 %v283
    %v808 = vunpack.c.h.b16 %v283
    %v809 = vunpack.c.l.b16 %v284
    %v810 = vunpack.c.h.b16 %v284
    %v811 = vunpack.c.l.b16 %v285
    %v812 = vunpack.c.h.b16 %v285
    %v813 = vunpack.c.l.b16 %v286
    %v814 = vunpack.c.h.b16 %v286
    %v815 = vunpack.c.l.b16 %v287
    %v816 = vunpack.c.h.b16 %v287
    %v817 = vunpack.c.l.b16 %v288
    %v818 = vunpack.c.h.b16 %v288
    %v819 = vunpack.c.l.b16 %v289
    %v820 = vunpack.c.h.b16 %v289
    %v821 = vunpack.c.l.b16 %v290
    %v822 = vunpack.c.h.b16 %v290
    %v823 = vunpack.c.l.b16 %v291
    %v824 = vunpack.c.h.b16 %v291
    %v825 = vunpack.c.l.b16 %v292
    %v826 = vunpack.c.h.b16 %v292
    %v827 = vunpack.c.l.b16 %v293
    %v828 = vunpack.c.h.b16 %v293
    %v829 = vunpack.c.l.b16 %v294
    %v830 = vunpack.c.h.b16 %v294
    %v831 = vunpack.c.l.b16 %v295
    %v832 = vunpack.c.h.b16 %v295
    %v833 = vunpack.c.l.b16 %v296
    %v834 = vunpack.c.h.b16 %v296
    %v835 = vunpack.c.l.b16 %v297
    %v836 = vunpack.c.h.b16 %v297
    %v837 = vunpack.c.l.b16 %v298
    %v838 = vunpack.c.h.b16 %v298
    %v839 = vunpack.c.l.b16 %v299
    %v840 = vunpack.c.h.b16 %v299
    %v841 = vunpack.c.l.b16 %v300
    %v842 = vunpack.c.h.b16 %v300
    %v843 = vunpack.c.l.b16 %v301
    %v844 = vunpack.c.h.b16 %v301
    %v845 = vunpack.c.l.b16 %v302
    %v846 = vunpack.c.h.b16 %v302
    %v847 = vunpack.c.l.b16 %v303
    %v848 = vunpack.c.h.b16 %v303
    %v849 = vunpack.c.l.b16 %v304
    %v850 = vunpack.c.h.b16 %v304
    %v851 = vunpack.c.l.b16 %v305
    %v852 = vunpack.c.h.b16 %v305
    %v853 = vunpack.c.l.b16 %v306
    %v854 = vunpack.c.h.b16 %v306
    %v855 = vunpack.c.l.b16 %v307
    %v856 = vunpack.c.h.b16 %v307
    %v857 = vunpack.c.l.b16 %v308
    %v858 = vunpack.c.h.b16 %v308
    %v859 = vunpack.c.l.b16 %v309
    %v860 = vunpack.c.h.b16 %v309
    %v861 = vunpack.c.l.b16 %v310
    %v862 = vunpack.c.h.b16 %v310
    %v863 = vunpack.c.l.b16 %v311
    %v864 = vunpack.c.h.b16 %v311
    %v865 = vunpack.c.l.b16 %v312
    %v866 = vunpack.c.h.b16 %v312
    %v867 = vunpack.c.l.b16 %v313
    %v868 = vunpack.c.h.b16 %v313
    %v869 = vunpack.c.l.b16 %v314
    %v870 = vunpack.c.h.b16 %v314
    %v871 = vunpack.c.l.b16 %v315
    %v872 = vunpack.c.h.b16 %v315
    %v873 = vunpack.c.l.b16 %v316
    %v874 = vunpack.c.h.b16 %v316
    %v875 = vunpack.c.l.b16 %v317
    %v876 = vunpack.c.h.b16 %v317
    %v877 = vunpack.c.l.b16 %v318
    %v878 = vunpack.c.h.b16 %v318
    %v879 = vunpack.c.l.b16 %v319
    %v880 = vunpack.c.h.b16 %v319
    %v881 = vunpack.c.l.b16 %v320
    %v882 = vunpack.c.h.b16 %v320
    %v883 = vunpack.c.l.b16 %v321
    %v884 = vunpack.c.h.b16 %v321
    %v885 = vunpack.c.l.b16 %v322
    %v886 = vunpack.c.h.b16 %v322
    %v887 = vunpack.c.l.b16 %v323
    %v888 = vunpack.c.h.b16 %v323
    %v889 = vunpack.c.l.b16 %v324
    %v890 = vunpack.c.h.b16 %v324
    %v891 = vunpack.c.l.b16 %v325
    %v892 = vunpack.c.h.b16 %v325
    %v893 = vunpack.c.l.b16 %v326
    %v894 = vunpack.c.h.b16 %v326
    %v895 = vunpack.c.l.b16 %v327
    %v896 = vunpack.c.h.b16 %v327
    %v897 = vunpack.c.l.b16 %v328
    %v898 = vunpack.c.h.b16 %v328
    %v899 = vunpack.c.l.b16 %v329
    %v900 = vunpack.c.h.b16 %v329
    %v901 = vunpack.c.l.b16 %v330
    %v902 = vunpack.c.h.b16 %v330
    %v903 = vunpack.c.l.b16 %v331
    %v904 = vunpack.c.h.b16 %v331
    %v905 = vunpack.c.l.b16 %v332
    %v906 = vunpack.c.h.b16 %v332
    %v907 = vunpack.c.l.b16 %v333
    %v908 = vunpack.c.h.b16 %v333
    %v909 = vunpack.c.l.b16 %v334
    %v910 = vunpack.c.h.b16 %v334
    %v911 = vunpack.c.l.b16 %v335
    %v912 = vunpack.c.h.b16 %v335
    %v913 = vunpack.c.l.b16 %v336
    %v914 = vunpack.c.h.b16 %v336
    %v915 = vunpack.c.l.b16 %v337
    %v916 = vunpack.c.h.b16 %v337
    %v917 = vunpack.c.l.b16 %v338
    %v918 = vunpack.c.h.b16 %v338
    %v919 = vunpack.c.l.b16 %v339
    %v920 = vunpack.c.h.b16 %v339
    %v921 = vunpack.c.l.b16 %v340
    %v922 = vunpack.c.h.b16 %v340
    %v923 = vunpack.c.l.b16 %v341
    %v924 = vunpack.c.h.b16 %v341
    %v925 = vunpack.c.l.b16 %v342
    %v926 = vunpack.c.h.b16 %v342
    %v927 = vunpack.c.l.b16 %v343
    %v928 = vunpack.c.h.b16 %v343
    %v929 = vunpack.c.l.b16 %v344
    %v930 = vunpack.c.h.b16 %v344
    %v931 = vpack.c.b16 %v551, %v547
    %v932 = vpack.c.b16 %v552, %v548
    %v933 = vpack.c.b16 %v553, %v549
    %v934 = vpack.c.b16 %v554, %v550
    %v935 = vpack.c.b16 %v559, %v555
    %v936 = vpack.c.b16 %v560, %v556
    %v937 = vpack.c.b16 %v561, %v557
    %v938 = vpack.c.b16 %v562, %v558
    %v939 = vpack.c.b16 %v567, %v563
    %v940 = vpack.c.b16 %v568, %v564
    %v941 = vpack.c.b16 %v569, %v565
    %v942 = vpack.c.b16 %v570, %v566
    %v943 = vpack.c.b16 %v575, %v571
    %v944 = vpack.c.b16 %v576, %v572
    %v945 = vpack.c.b16 %v577, %v573
    %v946 = vpack.c.b16 %v578, %v574
    %v947 = vpack.c.b16 %v583, %v579
    %v948 = vpack.c.b16 %v584, %v580
    %v949 = vpack.c.b16 %v585, %v581
    %v950 = vpack.c.b16 %v586, %v582
    %v951 = vpack.c.b16 %v591, %v587
    %v952 = vpack.c.b16 %v592, %v588
    %v953 = vpack.c.b16 %v593, %v589
    %v954 = vpack.c.b16 %v594, %v590
    %v955 = vpack.c.b16 %v599, %v595
    %v956 = vpack.c.b16 %v600, %v596
    %v957 = vpack.c.b16 %v601, %v597
    %v958 = vpack.c.b16 %v602, %v598
    %v959 = vpack.c.b16 %v607, %v603
    %v960 = vpack.c.b16 %v608, %v604
    %v961 = vpack.c.b16 %v609, %v605
    %v962 = vpack.c.b16 %v610, %v606
    %v963 = vpack.c.b16 %v615, %v611
    %v964 = vpack.c.b16 %v616, %v612
    %v965 = vpack.c.b16 %v617, %v613
    %v966 = vpack.c.b16 %v618, %v614
    %v967 = vpack.c.b16 %v623, %v619
    %v968 = vpack.c.b16 %v624, %v620
    %v969 = vpack.c.b16 %v625, %v621
    %v970 = vpack.c.b16 %v626, %v622
    %v971 = vpack.c.b16 %v631, %v627
    %v972 = vpack.c.b16 %v632, %v628
    %v973 = vpack.c.b16 %v633, %v629
    %v974 = vpack.c.b16 %v634, %v630
    %v975 = vpack.c.b16 %v639, %v635
    %v976 = vpack.c.b16 %v640, %v636
    %v977 = vpack.c.b16 %v641, %v637
    %v978 = vpack.c.b16 %v642, %v638
    %v979 = vpack.c.b16 %v647, %v643
    %v980 = vpack.c.b16 %v648, %v644
    %v981 = vpack.c.b16 %v649, %v645
    %v982 = vpack.c.b16 %v650, %v646
    %v983 = vpack.c.b16 %v655, %v651
    %v984 = vpack.c.b16 %v656, %v652
    %v985 = vpack.c.b16 %v657, %v653
    %v986 = vpack.c.b16 %v658, %v654
    %v987 = vpack.c.b16 %v663, %v659
    %v988 = vpack.c.b16 %v664, %v660
    %v989 = vpack.c.b16 %v665, %v661
    %v990 = vpack.c.b16 %v666, %v662
    %v991 = vpack.c.b16 %v671, %v667
    %v992 = vpack.c.b16 %v672, %v668
    %v993 = vpack.c.b16 %v673, %v669
    %v994 = vpack.c.b16 %v674, %v670
    %v995 = vpack.c.b16 %v679, %v675
    %v996 = vpack.c.b16 %v680, %v676
    %v997 = vpack.c.b16 %v681, %v677
    %v998 = vpack.c.b16 %v682, %v678
    %v999 = vpack.c.b16 %v687, %v683
    %v1000 = vpack.c.b16 %v688, %v684
    %v1001 = vpack.c.b16 %v689, %v685
    %v1002 = vpack.c.b16 %v690, %v686
    %v1003 = vpack.c.b16 %v695, %v691
    %v1004 = vpack.c.b16 %v696, %v692
    %v1005 = vpack.c.b16 %v697, %v693
    %v1006 = vpack.c.b16 %v698, %v694
    %v1007 = vpack.c.b16 %v703, %v699
    %v1008 = vpack.c.b16 %v704, %v700
    %v1009 = vpack.c.b16 %v705, %v701
    %v1010 = vpack.c.b16 %v706, %v702
    %v1011 = vpack.c.b16 %v711, %v707
    %v1012 = vpack.c.b16 %v712, %v708
    %v1013 = vpack.c.b16 %v713, %v709
    %v1014 = vpack.c.b16 %v714, %v710
    %v1015 = vpack.c.b16 %v719, %v715
    %v1016 = vpack.c.b16 %v720, %v716
    %v1017 = vpack.c.b16 %v721, %v717
    %v1018 = vpack.c.b16 %v722, %v718
    %v1019 = vpack.c.b16 %v727, %v723
    %v1020 = vpack.c.b16 %v728, %v724
    %v1021 = vpack.c.b16 %v729, %v725
    %v1022 = vpack.c.b16 %v730, %v726
    %v1023 = vpack.c.b16 %v735, %v731
    %v1024 = vpack.c.b16 %v736, %v732
    %v1025 = vpack.c.b16 %v737, %v733
    %v1026 = vpack.c.b16 %v738, %v734
    %v1027 = vpack.c.b16 %v743, %v739
    %v1028 = vpack.c.b16 %v744, %v740
    %v1029 = vpack.c.b16 %v745, %v741
    %v1030 = vpack.c.b16 %v746, %v742
    %v1031 = vpack.c.b16 %v751, %v747
    %v1032 = vpack.c.b16 %v752, %v748
    %v1033 = vpack.c.b16 %v753, %v749
    %v1034 = vpack.c.b16 %v754, %v750
    %v1035 = vpack.c.b16 %v759, %v755
    %v1036 = vpack.c.b16 %v760, %v756
    %v1037 = vpack.c.b16 %v761, %v757
    %v1038 = vpack.c.b16 %v762, %v758
    %v1039 = vpack.c.b16 %v767, %v763
    %v1040 = vpack.c.b16 %v768, %v764
    %v1041 = vpack.c.b16 %v769, %v765
    %v1042 = vpack.c.b16 %v770, %v766
    %v1043 = vpack.c.b16 %v775, %v771
    %v1044 = vpack.c.b16 %v776, %v772
    %v1045 = vpack.c.b16 %v777, %v773
    %v1046 = vpack.c.b16 %v778, %v774
    %v1047 = vpack.c.b16 %v783, %v779
    %v1048 = vpack.c.b16 %v784, %v780
    %v1049 = vpack.c.b16 %v785, %v781
    %v1050 = vpack.c.b16 %v786, %v782
    %v1051 = vpack.c.b16 %v791, %v787
    %v1052 = vpack.c.b16 %v792, %v788
    %v1053 = vpack.c.b16 %v793, %v789
    %v1054 = vpack.c.b16 %v794, %v790
    %v1055 = vpack.c.b16 %v799, %v795
    %v1056 = vpack.c.b16 %v800, %v796
    %v1057 = vpack.c.b16 %v801, %v797
    %v1058 = vpack.c.b16 %v802, %v798
    %v1059 = vpack.c.b16 %v807, %v803
    %v1060 = vpack.c.b16 %v808, %v804
    %v1061 = vpack.c.b16 %v809, %v805
    %v1062 = vpack.c.b16 %v810, %v806
    %v1063 = vpack.c.b16 %v815, %v811
    %v1064 = vpack.c.b16 %v816, %v812
    %v1065 = vpack.c.b16 %v817, %v813
    %v1066 = vpack.c.b16 %v818, %v814
    %v1067 = vpack.c.b16 %v823, %v819
    %v1068 = vpack.c.b16 %v824, %v820
    %v1069 = vpack.c.b16 %v825, %v821
    %v1070 = vpack.c.b16 %v826, %v822
    %v1071 = vpack.c.b16 %v831, %v827
    %v1072 = vpack.c.b16 %v832, %v828
    %v1073 = vpack.c.b16 %v833, %v829
    %v1074 = vpack.c.b16 %v834, %v830
    %v1075 = vpack.c.b16 %v839, %v835
    %v1076 = vpack.c.b16 %v840, %v836
    %v1077 = vpack.c.b16 %v841, %v837
    %v1078 = vpack.c.b16 %v842, %v838
    %v1079 = vpack.c.b16 %v847, %v843
    %v1080 = vpack.c.b16 %v848, %v844
    %v1081 = vpack.c.b16 %v849, %v845
    %v1082 = vpack.c.b16 %v850, %v846
    %v1083 = vpack.c.b16 %v855, %v851
    %v1084 = vpack.c.b16 %v856, %v852
    %v1085 = vpack.c.b16 %v857, %v853
    %v1086 = vpack.c.b16 %v858, %v854
    %v1087 = vpack.c.b16 %v863, %v859
    %v1088 = vpack.c.b16 %v864, %v860
    %v1089 = vpack.c.b16 %v865, %v861
    %v1090 = vpack.c.b16 %v866, %v862
    %v1091 = vpack.c.b16 %v871, %v867
    %v1092 = vpack.c.b16 %v872, %v868
    %v1093 = vpack.c.b16 %v873, %v869
    %v1094 = vpack.c.b16 %v874, %v870
    %v1095 = vpack.c.b16 %v879, %v875
    %v1096 = vpack.c.b16 %v880, %v876
    %v1097 = vpack.c.b16 %v881, %v877
    %v1098 = vpack.c.b16 %v882, %v878
    %v1099 = vpack.c.b16 %v887, %v883
    %v1100 = vpack.c.b16 %v888, %v884
    %v1101 = vpack.c.b16 %v889, %v885
    %v1102 = vpack.c.b16 %v890, %v886
    %v1103 = vpack.c.b16 %v895, %v891
    %v1104 = vpack.c.b16 %v896, %v892
    %v1105 = vpack.c.b16 %v897, %v893
    %v1106 = vpack.c.b16 %v898, %v894
    %v1107 = vpack.c.b16 %v903, %v899
    %v1108 = vpack.c.b16 %v904, %v900
    %v1109 = vpack.c.b16 %v905, %v901
    %v1110 = vpack.c.b16 %v906, %v902
    %v1111 = vpack.c.b16 %v911, %v907
    %v1112 = vpack.c.b16 %v912, %v908
    %v1113 = vpack.c.b16 %v913, %v909
    %v1114 = vpack.c.b16 %v914, %v910
    %v1115 = vpack.c.b16 %v919, %v915
    %v1116 = vpack.c.b16 %v920, %v916
    %v1117 = vpack.c.b16 %v921, %v917
    %v1118 = vpack.c.b16 %v922, %v918
    %v1119 = vpack.c.b16 %v927, %v923
    %v1120 = vpack.c.b16 %v928, %v924
    %v1121 = vpack.c.b16 %v929, %v925
    %v1122 = vpack.c.b16 %v930, %v926
    %1315 = vmatpush.bf16.msra.mxu0 %v959
    %1316 = vmatpush.bf16.msra.mxu0 %v955
    %1317 = vmatpush.bf16.msra.mxu0 %v951
    %1318 = vmatpush.bf16.msra.mxu0 %v947
    %1319 = vmatpush.bf16.msra.mxu0 %v943
    %1320 = vmatpush.bf16.msra.mxu0 %v939
    %1321 = vmatpush.bf16.msra.mxu0 %v935
    %1322 = vmatpush.bf16.msra.mxu0 %v931
    %1323 = vmatmul.bf16.gmra.mxu0 %v147
    %v1324 = vpop.f32.mrf.mxu0
    %v1325 = vadd.f32 %v347, %v1324
    %v1326 = vpop.f32.mrf.mxu0
    %v1327 = vadd.f32 %v347, %v1326
    %1328 = vdwg.mxu0
    %1329 = vmatpush.bf16.msra.mxu0 %v991
    %1330 = vmatpush.bf16.msra.mxu0 %v987
    %1331 = vmatpush.bf16.msra.mxu0 %v983
    %1332 = vmatpush.bf16.msra.mxu0 %v979
    %1333 = vmatpush.bf16.msra.mxu0 %v975
    %1334 = vmatpush.bf16.msra.mxu0 %v971
    %1335 = vmatpush.bf16.msra.mxu0 %v967
    %1336 = vmatpush.bf16.msra.mxu0 %v963
    %1337 = vmatmul.bf16.gmra.mxu0 %v148
    %v1338 = vpop.f32.mrf.mxu0
    %v1339 = vadd.f32 %v1325, %v1338
    %v1340 = vpop.f32.mrf.mxu0
    %v1341 = vadd.f32 %v1327, %v1340
    %1342 = vdwg.mxu0
    %1343 = vmatpush.bf16.msra.mxu0 %v1023
    %1344 = vmatpush.bf16.msra.mxu0 %v1019
    %1345 = vmatpush.bf16.msra.mxu0 %v1015
    %1346 = vmatpush.bf16.msra.mxu0 %v1011
    %1347 = vmatpush.bf16.msra.mxu0 %v1007
    %1348 = vmatpush.bf16.msra.mxu0 %v1003
    %1349 = vmatpush.bf16.msra.mxu0 %v999
    %1350 = vmatpush.bf16.msra.mxu0 %v995
    %1351 = vmatmul.bf16.gmra.mxu0 %v149
    %v1352 = vpop.f32.mrf.mxu0
    %v1353 = vadd.f32 %v1339, %v1352
    %v1354 = vpop.f32.mrf.mxu0
    %v1355 = vadd.f32 %v1341, %v1354
    %1356 = vdwg.mxu0
    %1357 = vmatpush.bf16.msra.mxu0 %v1055
    %1358 = vmatpush.bf16.msra.mxu0 %v1051
    %1359 = vmatpush.bf16.msra.mxu0 %v1047
    %1360 = vmatpush.bf16.msra.mxu0 %v1043
    %1361 = vmatpush.bf16.msra.mxu0 %v1039
    %1362 = vmatpush.bf16.msra.mxu0 %v1035
    %1363 = vmatpush.bf16.msra.mxu0 %v1031
    %1364 = vmatpush.bf16.msra.mxu0 %v1027
    %1365 = vmatmul.bf16.gmra.mxu0 %v150
    %v1366 = vpop.f32.mrf.mxu0
    %v1367 = vadd.f32 %v1353, %v1366
    %v1368 = vpop.f32.mrf.mxu0
    %v1369 = vadd.f32 %v1355, %v1368
    %1370 = vdwg.mxu0
    %1371 = vmatpush.bf16.msra.mxu0 %v1087
    %1372 = vmatpush.bf16.msra.mxu0 %v1083
    %1373 = vmatpush.bf16.msra.mxu0 %v1079
    %1374 = vmatpush.bf16.msra.mxu0 %v1075
    %1375 = vmatpush.bf16.msra.mxu0 %v1071
    %1376 = vmatpush.bf16.msra.mxu0 %v1067
    %1377 = vmatpush.bf16.msra.mxu0 %v1063
    %1378 = vmatpush.bf16.msra.mxu0 %v1059
    %1379 = vmatmul.bf16.gmra.mxu0 %v151
    %v1380 = vpop.f32.mrf.mxu0
    %v1381 = vadd.f32 %v1367, %v1380
    %v1382 = vpop.f32.mrf.mxu0
    %v1383 = vadd.f32 %v1369, %v1382
    %1384 = vdwg.mxu0
    %1385 = vmatpush.bf16.msra.mxu0 %v1119
    %1386 = vmatpush.bf16.msra.mxu0 %v1115
    %1387 = vmatpush.bf16.msra.mxu0 %v1111
    %1388 = vmatpush.bf16.msra.mxu0 %v1107
    %1389 = vmatpush.bf16.msra.mxu0 %v1103
    %1390 = vmatpush.bf16.msra.mxu0 %v1099
    %1391 = vmatpush.bf16.msra.mxu0 %v1095
    %1392 = vmatpush.bf16.msra.mxu0 %v1091
    %1393 = vmatmul.bf16.gmra.mxu0 %v152
    %v1394 = vpop.f32.mrf.mxu0
    %v1395 = vadd.f32 %v1381, %v1394
    %v1396 = vpop.f32.mrf.mxu0
    %v1397 = vadd.f32 %v1383, %v1396
    %1398 = vdwg.mxu0
    %1399 = vmatpush.bf16.msra.mxu0 %v960
    %1400 = vmatpush.bf16.msra.mxu0 %v956
    %1401 = vmatpush.bf16.msra.mxu0 %v952
    %1402 = vmatpush.bf16.msra.mxu0 %v948
    %1403 = vmatpush.bf16.msra.mxu0 %v944
    %1404 = vmatpush.bf16.msra.mxu0 %v940
    %1405 = vmatpush.bf16.msra.mxu0 %v936
    %1406 = vmatpush.bf16.msra.mxu0 %v932
    %1407 = vmatmul.bf16.gmra.mxu0 %v147
    %v1408 = vpop.f32.mrf.mxu0
    %v1409 = vadd.f32 %v348, %v1408
    %v1410 = vpop.f32.mrf.mxu0
    %v1411 = vadd.f32 %v348, %v1410
    %1412 = vdwg.mxu0
    %1413 = vmatpush.bf16.msra.mxu0 %v992
    %1414 = vmatpush.bf16.msra.mxu0 %v988
    %1415 = vmatpush.bf16.msra.mxu0 %v984
    %1416 = vmatpush.bf16.msra.mxu0 %v980
    %1417 = vmatpush.bf16.msra.mxu0 %v976
    %1418 = vmatpush.bf16.msra.mxu0 %v972
    %1419 = vmatpush.bf16.msra.mxu0 %v968
    %1420 = vmatpush.bf16.msra.mxu0 %v964
    %1421 = vmatmul.bf16.gmra.mxu0 %v148
    %v1422 = vpop.f32.mrf.mxu0
    %v1423 = vadd.f32 %v1409, %v1422
    %v1424 = vpop.f32.mrf.mxu0
    %v1425 = vadd.f32 %v1411, %v1424
    %1426 = vdwg.mxu0
    %1427 = vmatpush.bf16.msra.mxu0 %v1024
    %1428 = vmatpush.bf16.msra.mxu0 %v1020
    %1429 = vmatpush.bf16.msra.mxu0 %v1016
    %1430 = vmatpush.bf16.msra.mxu0 %v1012
    %1431 = vmatpush.bf16.msra.mxu0 %v1008
    %1432 = vmatpush.bf16.msra.mxu0 %v1004
    %1433 = vmatpush.bf16.msra.mxu0 %v1000
    %1434 = vmatpush.bf16.msra.mxu0 %v996
    %1435 = vmatmul.bf16.gmra.mxu0 %v149
    %v1436 = vpop.f32.mrf.mxu0
    %v1437 = vadd.f32 %v1423, %v1436
    %v1438 = vpop.f32.mrf.mxu0
    %v1439 = vadd.f32 %v1425, %v1438
    %1440 = vdwg.mxu0
    %1441 = vmatpush.bf16.msra.mxu0 %v1056
    %1442 = vmatpush.bf16.msra.mxu0 %v1052
    %1443 = vmatpush.bf16.msra.mxu0 %v1048
    %1444 = vmatpush.bf16.msra.mxu0 %v1044
    %1445 = vmatpush.bf16.msra.mxu0 %v1040
    %1446 = vmatpush.bf16.msra.mxu0 %v1036
    %1447 = vmatpush.bf16.msra.mxu0 %v1032
    %1448 = vmatpush.bf16.msra.mxu0 %v1028
    %1449 = vmatmul.bf16.gmra.mxu0 %v150
    %v1450 = vpop.f32.mrf.mxu0
    %v1451 = vadd.f32 %v1437, %v1450
    %v1452 = vpop.f32.mrf.mxu0
    %v1453 = vadd.f32 %v1439, %v1452
    %1454 = vdwg.mxu0
    %1455 = vmatpush.bf16.msra.mxu0 %v1088
    %1456 = vmatpush.bf16.msra.mxu0 %v1084
    %1457 = vmatpush.bf16.msra.mxu0 %v1080
    %1458 = vmatpush.bf16.msra.mxu0 %v1076
    %1459 = vmatpush.bf16.msra.mxu0 %v1072
    %1460 = vmatpush.bf16.msra.mxu0 %v1068
    %1461 = vmatpush.bf16.msra.mxu0 %v1064
    %1462 = vmatpush.bf16.msra.mxu0 %v1060
    %1463 = vmatmul.bf16.gmra.mxu0 %v151
    %v1464 = vpop.f32.mrf.mxu0
    %v1465 = vadd.f32 %v1451, %v1464
    %v1466 = vpop.f32.mrf.mxu0
    %v1467 = vadd.f32 %v1453, %v1466
    %1468 = vdwg.mxu0
    %1469 = vmatpush.bf16.msra.mxu0 %v1120
    %1470 = vmatpush.bf16.msra.mxu0 %v1116
    %1471 = vmatpush.bf16.msra.mxu0 %v1112
    %1472 = vmatpush.bf16.msra.mxu0 %v1108
    %1473 = vmatpush.bf16.msra.mxu0 %v1104
    %1474 = vmatpush.bf16.msra.mxu0 %v1100
    %1475 = vmatpush.bf16.msra.mxu0 %v1096
    %1476 = vmatpush.bf16.msra.mxu0 %v1092
    %1477 = vmatmul.bf16.gmra.mxu0 %v152
    %v1478 = vpop.f32.mrf.mxu0
    %v1479 = vadd.f32 %v1465, %v1478
    %v1480 = vpop.f32.mrf.mxu0
    %v1481 = vadd.f32 %v1467, %v1480
    %1482 = vdwg.mxu0
    %1483 = vmatpush.bf16.msra.mxu0 %v961
    %1484 = vmatpush.bf16.msra.mxu0 %v957
    %1485 = vmatpush.bf16.msra.mxu0 %v953
    %1486 = vmatpush.bf16.msra.mxu0 %v949
    %1487 = vmatpush.bf16.msra.mxu0 %v945
    %1488 = vmatpush.bf16.msra.mxu0 %v941
    %1489 = vmatpush.bf16.msra.mxu0 %v937
    %1490 = vmatpush.bf16.msra.mxu0 %v933
    %1491 = vmatmul.bf16.gmra.mxu0 %v147
    %v1492 = vpop.f32.mrf.mxu0
    %v1493 = vadd.f32 %v349, %v1492
    %v1494 = vpop.f32.mrf.mxu0
    %v1495 = vadd.f32 %v349, %v1494
    %1496 = vdwg.mxu0
    %1497 = vmatpush.bf16.msra.mxu0 %v993
    %1498 = vmatpush.bf16.msra.mxu0 %v989
    %1499 = vmatpush.bf16.msra.mxu0 %v985
    %1500 = vmatpush.bf16.msra.mxu0 %v981
    %1501 = vmatpush.bf16.msra.mxu0 %v977
    %1502 = vmatpush.bf16.msra.mxu0 %v973
    %1503 = vmatpush.bf16.msra.mxu0 %v969
    %1504 = vmatpush.bf16.msra.mxu0 %v965
    %1505 = vmatmul.bf16.gmra.mxu0 %v148
    %v1506 = vpop.f32.mrf.mxu0
    %v1507 = vadd.f32 %v1493, %v1506
    %v1508 = vpop.f32.mrf.mxu0
    %v1509 = vadd.f32 %v1495, %v1508
    %1510 = vdwg.mxu0
    %1511 = vmatpush.bf16.msra.mxu0 %v1025
    %1512 = vmatpush.bf16.msra.mxu0 %v1021
    %1513 = vmatpush.bf16.msra.mxu0 %v1017
    %1514 = vmatpush.bf16.msra.mxu0 %v1013
    %1515 = vmatpush.bf16.msra.mxu0 %v1009
    %1516 = vmatpush.bf16.msra.mxu0 %v1005
    %1517 = vmatpush.bf16.msra.mxu0 %v1001
    %1518 = vmatpush.bf16.msra.mxu0 %v997
    %1519 = vmatmul.bf16.gmra.mxu0 %v149
    %v1520 = vpop.f32.mrf.mxu0
    %v1521 = vadd.f32 %v1507, %v1520
    %v1522 = vpop.f32.mrf.mxu0
    %v1523 = vadd.f32 %v1509, %v1522
    %1524 = vdwg.mxu0
    %1525 = vmatpush.bf16.msra.mxu0 %v1057
    %1526 = vmatpush.bf16.msra.mxu0 %v1053
    %1527 = vmatpush.bf16.msra.mxu0 %v1049
    %1528 = vmatpush.bf16.msra.mxu0 %v1045
    %1529 = vmatpush.bf16.msra.mxu0 %v1041
    %1530 = vmatpush.bf16.msra.mxu0 %v1037
    %1531 = vmatpush.bf16.msra.mxu0 %v1033
    %1532 = vmatpush.bf16.msra.mxu0 %v1029
    %1533 = vmatmul.bf16.gmra.mxu0 %v150
    %v1534 = vpop.f32.mrf.mxu0
    %v1535 = vadd.f32 %v1521, %v1534
    %v1536 = vpop.f32.mrf.mxu0
    %v1537 = vadd.f32 %v1523, %v1536
    %1538 = vdwg.mxu0
    %1539 = vmatpush.bf16.msra.mxu0 %v1089
    %1540 = vmatpush.bf16.msra.mxu0 %v1085
    %1541 = vmatpush.bf16.msra.mxu0 %v1081
    %1542 = vmatpush.bf16.msra.mxu0 %v1077
    %1543 = vmatpush.bf16.msra.mxu0 %v1073
    %1544 = vmatpush.bf16.msra.mxu0 %v1069
    %1545 = vmatpush.bf16.msra.mxu0 %v1065
    %1546 = vmatpush.bf16.msra.mxu0 %v1061
    %1547 = vmatmul.bf16.gmra.mxu0 %v151
    %v1548 = vpop.f32.mrf.mxu0
    %v1549 = vadd.f32 %v1535, %v1548
    %v1550 = vpop.f32.mrf.mxu0
    %v1551 = vadd.f32 %v1537, %v1550
    %1552 = vdwg.mxu0
    %1553 = vmatpush.bf16.msra.mxu0 %v1121
    %1554 = vmatpush.bf16.msra.mxu0 %v1117
    %1555 = vmatpush.bf16.msra.mxu0 %v1113
    %1556 = vmatpush.bf16.msra.mxu0 %v1109
    %1557 = vmatpush.bf16.msra.mxu0 %v1105
    %1558 = vmatpush.bf16.msra.mxu0 %v1101
    %1559 = vmatpush.bf16.msra.mxu0 %v1097
    %1560 = vmatpush.bf16.msra.mxu0 %v1093
    %1561 = vmatmul.bf16.gmra.mxu0 %v152
    %v1562 = vpop.f32.mrf.mxu0
    %v1563 = vadd.f32 %v1549, %v1562
    %v1564 = vpop.f32.mrf.mxu0
    %v1565 = vadd.f32 %v1551, %v1564
    %1566 = vdwg.mxu0
    %1567 = vmatpush.bf16.msra.mxu0 %v962
    %1568 = vmatpush.bf16.msra.mxu0 %v958
    %1569 = vmatpush.bf16.msra.mxu0 %v954
    %1570 = vmatpush.bf16.msra.mxu0 %v950
    %1571 = vmatpush.bf16.msra.mxu0 %v946
    %1572 = vmatpush.bf16.msra.mxu0 %v942
    %1573 = vmatpush.bf16.msra.mxu0 %v938
    %1574 = vmatpush.bf16.msra.mxu0 %v934
    %1575 = vmatmul.bf16.gmra.mxu0 %v147
    %v1576 = vpop.f32.mrf.mxu0
    %v1577 = vadd.f32 %v350, %v1576
    %v1578 = vpop.f32.mrf.mxu0
    %v1579 = vadd.f32 %v350, %v1578
    %1580 = vdwg.mxu0
    %1581 = vmatpush.bf16.msra.mxu0 %v994
    %1582 = vmatpush.bf16.msra.mxu0 %v990
    %1583 = vmatpush.bf16.msra.mxu0 %v986
    %1584 = vmatpush.bf16.msra.mxu0 %v982
    %1585 = vmatpush.bf16.msra.mxu0 %v978
    %1586 = vmatpush.bf16.msra.mxu0 %v974
    %1587 = vmatpush.bf16.msra.mxu0 %v970
    %1588 = vmatpush.bf16.msra.mxu0 %v966
    %1589 = vmatmul.bf16.gmra.mxu0 %v148
    %v1590 = vpop.f32.mrf.mxu0
    %v1591 = vadd.f32 %v1577, %v1590
    %v1592 = vpop.f32.mrf.mxu0
    %v1593 = vadd.f32 %v1579, %v1592
    %1594 = vdwg.mxu0
    %1595 = vmatpush.bf16.msra.mxu0 %v1026
    %1596 = vmatpush.bf16.msra.mxu0 %v1022
    %1597 = vmatpush.bf16.msra.mxu0 %v1018
    %1598 = vmatpush.bf16.msra.mxu0 %v1014
    %1599 = vmatpush.bf16.msra.mxu0 %v1010
    %1600 = vmatpush.bf16.msra.mxu0 %v1006
    %1601 = vmatpush.bf16.msra.mxu0 %v1002
    %1602 = vmatpush.bf16.msra.mxu0 %v998
    %1603 = vmatmul.bf16.gmra.mxu0 %v149
    %v1604 = vpop.f32.mrf.mxu0
    %v1605 = vadd.f32 %v1591, %v1604
    %v1606 = vpop.f32.mrf.mxu0
    %v1607 = vadd.f32 %v1593, %v1606
    %1608 = vdwg.mxu0
    %1609 = vmatpush.bf16.msra.mxu0 %v1058
    %1610 = vmatpush.bf16.msra.mxu0 %v1054
    %1611 = vmatpush.bf16.msra.mxu0 %v1050
    %1612 = vmatpush.bf16.msra.mxu0 %v1046
    %1613 = vmatpush.bf16.msra.mxu0 %v1042
    %1614 = vmatpush.bf16.msra.mxu0 %v1038
    %1615 = vmatpush.bf16.msra.mxu0 %v1034
    %1616 = vmatpush.bf16.msra.mxu0 %v1030
    %1617 = vmatmul.bf16.gmra.mxu0 %v150
    %v1618 = vpop.f32.mrf.mxu0
    %v1619 = vadd.f32 %v1605, %v1618
    %v1620 = vpop.f32.mrf.mxu0
    %v1621 = vadd.f32 %v1607, %v1620
    %1622 = vdwg.mxu0
    %1623 = vmatpush.bf16.msra.mxu0 %v1090
    %1624 = vmatpush.bf16.msra.mxu0 %v1086
    %1625 = vmatpush.bf16.msra.mxu0 %v1082
    %1626 = vmatpush.bf16.msra.mxu0 %v1078
    %1627 = vmatpush.bf16.msra.mxu0 %v1074
    %1628 = vmatpush.bf16.msra.mxu0 %v1070
    %1629 = vmatpush.bf16.msra.mxu0 %v1066
    %1630 = vmatpush.bf16.msra.mxu0 %v1062
    %1631 = vmatmul.bf16.gmra.mxu0 %v151
    %v1632 = vpop.f32.mrf.mxu0
    %v1633 = vadd.f32 %v1619, %v1632
    %v1634 = vpop.f32.mrf.mxu0
    %v1635 = vadd.f32 %v1621, %v1634
    %1636 = vdwg.mxu0
    %1637 = vmatpush.bf16.msra.mxu0 %v1122
    %1638 = vmatpush.bf16.msra.mxu0 %v1118
    %1639 = vmatpush.bf16.msra.mxu0 %v1114
    %1640 = vmatpush.bf16.msra.mxu0 %v1110
    %1641 = vmatpush.bf16.msra.mxu0 %v1106
    %1642 = vmatpush.bf16.msra.mxu0 %v1102
    %1643 = vmatpush.bf16.msra.mxu0 %v1098
    %1644 = vmatpush.bf16.msra.mxu0 %v1094
    %1645 = vmatmul.bf16.gmra.mxu0 %v152
    %v1646 = vpop.f32.mrf.mxu0
    %v1647 = vadd.f32 %v1633, %v1646
    %v1648 = vpop.f32.mrf.mxu0
    %v1649 = vadd.f32 %v1635, %v1648
    %1650 = vdwg.mxu0
    %v1651 = vadd.f32 %v1395, %v1479
    %v1652 = vadd.f32 %v1651, %v1563
    %v1653 = vadd.f32 %v1652, %v1647
    %1654 = vadd.xlane.f32.xlu0 %v1653
    %v1655 = vpop.xlane.xlu0 %1654
    %v1656 = vadd.f32 %v1397, %v1481
    %v1657 = vadd.f32 %v1656, %v1565
    %v1658 = vadd.f32 %v1657, %v1649
    %1659 = vadd.xlane.f32.xlu0 %v1658
    %v1660 = vpop.xlane.xlu0 %1659
    %v1661 = vrcp.pop 512.0
    %v1662 = vmul.f32 512.0, %v1661
    %v1663 = vsub.f32 1.0, %v1662
    %v1664 = vmul.f32 %v1661, %v1663
    %v1665 = vadd.f32 %v1661, %v1664
    %vm1666 = vweird.f32 %v1661
    %v1667 = vsel %vm1666, %v1661, %v1665
    %v1668 = vmul.f32 %v1655, %v1667
    %v1669 = vmul.f32 %v1660, %v1667
    %v1670 = vsub.f32 %v1395, %v1668
    %v1671 = vsub.f32 %v1479, %v1668
    %v1672 = vsub.f32 %v1563, %v1668
    %v1673 = vsub.f32 %v1647, %v1668
    %v1674 = vsub.f32 %v1397, %v1669
    %v1675 = vsub.f32 %v1481, %v1669
    %v1676 = vsub.f32 %v1565, %v1669
    %v1677 = vsub.f32 %v1649, %v1669
    %v1678 = vmul.f32 %v1670, %v1670
    %v1679 = vmul.f32 %v1671, %v1671
    %v1680 = vmul.f32 %v1672, %v1672
    %v1681 = vmul.f32 %v1673, %v1673
    %v1682 = vmul.f32 %v1674, %v1674
    %v1683 = vmul.f32 %v1675, %v1675
    %v1684 = vmul.f32 %v1676, %v1676
    %v1685 = vmul.f32 %v1677, %v1677
    %v1686 = vadd.f32 %v1678, %v1679
    %v1687 = vadd.f32 %v1686, %v1680
    %v1688 = vadd.f32 %v1687, %v1681
    %1689 = vadd.xlane.f32.xlu0 %v1688
    %v1690 = vpop.xlane.xlu0 %1689
    %v1691 = vadd.f32 %v1682, %v1683
    %v1692 = vadd.f32 %v1691, %v1684
    %v1693 = vadd.f32 %v1692, %v1685
    %1694 = vadd.xlane.f32.xlu0 %v1693
    %v1695 = vpop.xlane.xlu0 %1694
    %v1696 = vmul.f32 %v1690, %v1667
    %v1697 = vmul.f32 %v1695, %v1667
    %v1698 = vadd.f32 %v1696, 1e-05
    %v1699 = vadd.f32 %v1697, 1e-05
    %v1700 = vrsqrt.pop %v1698
    %v1701 = vmul.f32 %v1700, %v1698
    %v1702 = vmul.f32 %v1701, %v1700
    %v1703 = vmul.f32 0.5, %v1702
    %v1704 = vsub.f32 1.5, %v1703
    %v1705 = vmul.f32 %v1700, %v1704
    %vm1706 = vweird.f32 %v1698
    %vm1707 = vweird.f32 %v1700
    %vm1708 = vmor %vm1706, %vm1707
    %v1709 = vsel %vm1708, %v1700, %v1705
    %v1710 = vrsqrt.pop %v1699
    %v1711 = vmul.f32 %v1710, %v1699
    %v1712 = vmul.f32 %v1711, %v1710
    %v1713 = vmul.f32 0.5, %v1712
    %v1714 = vsub.f32 1.5, %v1713
    %v1715 = vmul.f32 %v1710, %v1714
    %vm1716 = vweird.f32 %v1699
    %vm1717 = vweird.f32 %v1710
    %vm1718 = vmor %vm1716, %vm1717
    %v1719 = vsel %vm1718, %v1710, %v1715
    %v1720 = vmul.f32 %v1670, %v1709
    %v1721 = vmul.f32 %v1671, %v1709
    %v1722 = vmul.f32 %v1672, %v1709
    %v1723 = vmul.f32 %v1673, %v1709
    %v1724 = vmul.f32 %v1674, %v1719
    %v1725 = vmul.f32 %v1675, %v1719
    %v1726 = vmul.f32 %v1676, %v1719
    %v1727 = vmul.f32 %v1677, %v1719
    %v1728 = vld [vmem:[%s10 + $0x16] sm:$0xf]
    %v1730 = vperm.slane %v1728, 0
    %v1731 = vperm.slane %v1728, 1
    %v1732 = vperm.slane %v1728, 2
    %v1733 = vperm.slane %v1728, 3
    %v1738 = vmul.f32 %v1720, %v1730
    %v1739 = vmul.f32 %v1721, %v1731
    %v1740 = vmul.f32 %v1722, %v1732
    %v1741 = vmul.f32 %v1723, %v1733
    %v1742 = vmul.f32 %v1724, %v1730
    %v1743 = vmul.f32 %v1725, %v1731
    %v1744 = vmul.f32 %v1726, %v1732
    %v1745 = vmul.f32 %v1727, %v1733
    %v1746 = vld [vmem:[%s10 + $0x1a] sm:$0xf]
    %v1748 = vperm.slane %v1746, 0
    %v1749 = vperm.slane %v1746, 1
    %v1750 = vperm.slane %v1746, 2
    %v1751 = vperm.slane %v1746, 3
    %v1756 = vadd.f32 %v1738, %v1748
    %v1757 = vadd.f32 %v1739, %v1749
    %v1758 = vadd.f32 %v1740, %v1750
    %v1759 = vadd.f32 %v1741, %v1751
    %v1760 = vadd.f32 %v1742, %v1748
    %v1761 = vadd.f32 %v1743, %v1749
    %v1762 = vadd.f32 %v1744, %v1750
    %v1763 = vadd.f32 %v1745, %v1751
    %v1764 = vmax.f32 %v1756, 0.0
    %v1765 = vmax.f32 %v1757, 0.0
    %v1766 = vmax.f32 %v1758, 0.0
    %v1767 = vmax.f32 %v1759, 0.0
    %v1768 = vmax.f32 %v1760, 0.0
    %v1769 = vmax.f32 %v1761, 0.0
    %v1770 = vmax.f32 %v1762, 0.0
    %v1771 = vmax.f32 %v1763, 0.0
    %v1772 = vpack.c.bf16 %v1768, %v1764
    %v1773 = vpack.c.bf16 %v1769, %v1765
    %v1774 = vpack.c.bf16 %v1770, %v1766
    %v1775 = vpack.c.bf16 %v1771, %v1767
    %v1776 = vld [vmem:[#allocation4] sm:$0xff]
    %v1777 = vld [vmem:[#allocation4 + $0x8] sm:$0xff]
    %v1778 = vld [vmem:[#allocation4 + $0x10] sm:$0xff]
    %v1779 = vld [vmem:[#allocation4 + $0x18] sm:$0xff]
    %v1780 = vld [vmem:[#allocation4 + $0x20] sm:$0xff]
    %v1781 = vld [vmem:[#allocation4 + $0x28] sm:$0xff]
    %v1782 = vld [vmem:[#allocation4 + $0x30] sm:$0xff]
    %v1783 = vld [vmem:[#allocation4 + $0x38] sm:$0xff]
    %v1784 = vld [vmem:[#allocation4 + $0x40] sm:$0xff]
    %v1785 = vld [vmem:[#allocation4 + $0x48] sm:$0xff]
    %v1786 = vld [vmem:[#allocation4 + $0x50] sm:$0xff]
    %v1787 = vld [vmem:[#allocation4 + $0x58] sm:$0xff]
    %v1788 = vld [vmem:[#allocation4 + $0x60] sm:$0xff]
    %v1789 = vld [vmem:[#allocation4 + $0x68] sm:$0xff]
    %v1790 = vld [vmem:[#allocation4 + $0x70] sm:$0xff]
    %v1791 = vld [vmem:[#allocation4 + $0x78] sm:$0xff]
    %v1792 = vld [vmem:[#allocation4 + $0x80] sm:$0xff]
    %v1793 = vld [vmem:[#allocation4 + $0x88] sm:$0xff]
    %v1794 = vld [vmem:[#allocation4 + $0x90] sm:$0xff]
    %v1795 = vld [vmem:[#allocation4 + $0x98] sm:$0xff]
    %v1796 = vld [vmem:[#allocation4 + $0xa0] sm:$0xff]
    %v1797 = vld [vmem:[#allocation4 + $0xa8] sm:$0xff]
    %v1798 = vld [vmem:[#allocation4 + $0xb0] sm:$0xff]
    %v1799 = vld [vmem:[#allocation4 + $0xb8] sm:$0xff]
    %v1800 = vld [vmem:[#allocation4 + $0xc0] sm:$0xff]
    %v1801 = vld [vmem:[#allocation4 + $0xc8] sm:$0xff]
    %v1802 = vld [vmem:[#allocation4 + $0xd0] sm:$0xff]
    %v1803 = vld [vmem:[#allocation4 + $0xd8] sm:$0xff]
    %v1804 = vld [vmem:[#allocation4 + $0xe0] sm:$0xff]
    %v1805 = vld [vmem:[#allocation4 + $0xe8] sm:$0xff]
    %v1806 = vld [vmem:[#allocation4 + $0xf0] sm:$0xff]
    %v1807 = vld [vmem:[#allocation4 + $0xf8] sm:$0xff]
    %v1808 = vld [vmem:[#allocation4 + $0x100] sm:$0xff]
    %v1809 = vld [vmem:[#allocation4 + $0x108] sm:$0xff]
    %v1810 = vld [vmem:[#allocation4 + $0x110] sm:$0xff]
    %v1811 = vld [vmem:[#allocation4 + $0x118] sm:$0xff]
    %v1812 = vld [vmem:[#allocation4 + $0x120] sm:$0xff]
    %v1813 = vld [vmem:[#allocation4 + $0x128] sm:$0xff]
    %v1814 = vld [vmem:[#allocation4 + $0x130] sm:$0xff]
    %v1815 = vld [vmem:[#allocation4 + $0x138] sm:$0xff]
    %v1816 = vld [vmem:[#allocation4 + $0x140] sm:$0xff]
    %v1817 = vld [vmem:[#allocation4 + $0x148] sm:$0xff]
    %v1818 = vld [vmem:[#allocation4 + $0x150] sm:$0xff]
    %v1819 = vld [vmem:[#allocation4 + $0x158] sm:$0xff]
    %v1820 = vld [vmem:[#allocation4 + $0x160] sm:$0xff]
    %v1821 = vld [vmem:[#allocation4 + $0x168] sm:$0xff]
    %v1822 = vld [vmem:[#allocation4 + $0x170] sm:$0xff]
    %v1823 = vld [vmem:[#allocation4 + $0x178] sm:$0xff]
    %v1824 = vld [vmem:[#allocation4 + $0x180] sm:$0xff]
    %v1825 = vld [vmem:[#allocation4 + $0x188] sm:$0xff]
    %v1826 = vld [vmem:[#allocation4 + $0x190] sm:$0xff]
    %v1827 = vld [vmem:[#allocation4 + $0x198] sm:$0xff]
    %v1828 = vld [vmem:[#allocation4 + $0x1a0] sm:$0xff]
    %v1829 = vld [vmem:[#allocation4 + $0x1a8] sm:$0xff]
    %v1830 = vld [vmem:[#allocation4 + $0x1b0] sm:$0xff]
    %v1831 = vld [vmem:[#allocation4 + $0x1b8] sm:$0xff]
    %v1832 = vld [vmem:[#allocation4 + $0x1c0] sm:$0xff]
    %v1833 = vld [vmem:[#allocation4 + $0x1c8] sm:$0xff]
    %v1834 = vld [vmem:[#allocation4 + $0x1d0] sm:$0xff]
    %v1835 = vld [vmem:[#allocation4 + $0x1d8] sm:$0xff]
    %v1836 = vld [vmem:[#allocation4 + $0x1e0] sm:$0xff]
    %v1837 = vld [vmem:[#allocation4 + $0x1e8] sm:$0xff]
    %v1838 = vld [vmem:[#allocation4 + $0x1f0] sm:$0xff]
    %v1839 = vld [vmem:[#allocation4 + $0x1f8] sm:$0xff]
    %v1840 = vld [vmem:[%s10 + $0x4] sm:$0x3]
    %v1842 = vperm.slane %v1840, 0
    %v1843 = vperm.slane %v1840, 1
    %v1910 = vunpack.c.l.b16 %v1776
    %v1911 = vunpack.c.h.b16 %v1776
    %v1912 = vunpack.c.l.b16 %v1777
    %v1913 = vunpack.c.h.b16 %v1777
    %v1914 = vunpack.c.l.b16 %v1778
    %v1915 = vunpack.c.h.b16 %v1778
    %v1916 = vunpack.c.l.b16 %v1779
    %v1917 = vunpack.c.h.b16 %v1779
    %v1918 = vunpack.c.l.b16 %v1780
    %v1919 = vunpack.c.h.b16 %v1780
    %v1920 = vunpack.c.l.b16 %v1781
    %v1921 = vunpack.c.h.b16 %v1781
    %v1922 = vunpack.c.l.b16 %v1782
    %v1923 = vunpack.c.h.b16 %v1782
    %v1924 = vunpack.c.l.b16 %v1783
    %v1925 = vunpack.c.h.b16 %v1783
    %v1926 = vunpack.c.l.b16 %v1784
    %v1927 = vunpack.c.h.b16 %v1784
    %v1928 = vunpack.c.l.b16 %v1785
    %v1929 = vunpack.c.h.b16 %v1785
    %v1930 = vunpack.c.l.b16 %v1786
    %v1931 = vunpack.c.h.b16 %v1786
    %v1932 = vunpack.c.l.b16 %v1787
    %v1933 = vunpack.c.h.b16 %v1787
    %v1934 = vunpack.c.l.b16 %v1788
    %v1935 = vunpack.c.h.b16 %v1788
    %v1936 = vunpack.c.l.b16 %v1789
    %v1937 = vunpack.c.h.b16 %v1789
    %v1938 = vunpack.c.l.b16 %v1790
    %v1939 = vunpack.c.h.b16 %v1790
    %v1940 = vunpack.c.l.b16 %v1791
    %v1941 = vunpack.c.h.b16 %v1791
    %v1942 = vunpack.c.l.b16 %v1792
    %v1943 = vunpack.c.h.b16 %v1792
    %v1944 = vunpack.c.l.b16 %v1793
    %v1945 = vunpack.c.h.b16 %v1793
    %v1946 = vunpack.c.l.b16 %v1794
    %v1947 = vunpack.c.h.b16 %v1794
    %v1948 = vunpack.c.l.b16 %v1795
    %v1949 = vunpack.c.h.b16 %v1795
    %v1950 = vunpack.c.l.b16 %v1796
    %v1951 = vunpack.c.h.b16 %v1796
    %v1952 = vunpack.c.l.b16 %v1797
    %v1953 = vunpack.c.h.b16 %v1797
    %v1954 = vunpack.c.l.b16 %v1798
    %v1955 = vunpack.c.h.b16 %v1798
    %v1956 = vunpack.c.l.b16 %v1799
    %v1957 = vunpack.c.h.b16 %v1799
    %v1958 = vunpack.c.l.b16 %v1800
    %v1959 = vunpack.c.h.b16 %v1800
    %v1960 = vunpack.c.l.b16 %v1801
    %v1961 = vunpack.c.h.b16 %v1801
    %v1962 = vunpack.c.l.b16 %v1802
    %v1963 = vunpack.c.h.b16 %v1802
    %v1964 = vunpack.c.l.b16 %v1803
    %v1965 = vunpack.c.h.b16 %v1803
    %v1966 = vunpack.c.l.b16 %v1804
    %v1967 = vunpack.c.h.b16 %v1804
    %v1968 = vunpack.c.l.b16 %v1805
    %v1969 = vunpack.c.h.b16 %v1805
    %v1970 = vunpack.c.l.b16 %v1806
    %v1971 = vunpack.c.h.b16 %v1806
    %v1972 = vunpack.c.l.b16 %v1807
    %v1973 = vunpack.c.h.b16 %v1807
    %v1974 = vunpack.c.l.b16 %v1808
    %v1975 = vunpack.c.h.b16 %v1808
    %v1976 = vunpack.c.l.b16 %v1809
    %v1977 = vunpack.c.h.b16 %v1809
    %v1978 = vunpack.c.l.b16 %v1810
    %v1979 = vunpack.c.h.b16 %v1810
    %v1980 = vunpack.c.l.b16 %v1811
    %v1981 = vunpack.c.h.b16 %v1811
    %v1982 = vunpack.c.l.b16 %v1812
    %v1983 = vunpack.c.h.b16 %v1812
    %v1984 = vunpack.c.l.b16 %v1813
    %v1985 = vunpack.c.h.b16 %v1813
    %v1986 = vunpack.c.l.b16 %v1814
    %v1987 = vunpack.c.h.b16 %v1814
    %v1988 = vunpack.c.l.b16 %v1815
    %v1989 = vunpack.c.h.b16 %v1815
    %v1990 = vunpack.c.l.b16 %v1816
    %v1991 = vunpack.c.h.b16 %v1816
    %v1992 = vunpack.c.l.b16 %v1817
    %v1993 = vunpack.c.h.b16 %v1817
    %v1994 = vunpack.c.l.b16 %v1818
    %v1995 = vunpack.c.h.b16 %v1818
    %v1996 = vunpack.c.l.b16 %v1819
    %v1997 = vunpack.c.h.b16 %v1819
    %v1998 = vunpack.c.l.b16 %v1820
    %v1999 = vunpack.c.h.b16 %v1820
    %v2000 = vunpack.c.l.b16 %v1821
    %v2001 = vunpack.c.h.b16 %v1821
    %v2002 = vunpack.c.l.b16 %v1822
    %v2003 = vunpack.c.h.b16 %v1822
    %v2004 = vunpack.c.l.b16 %v1823
    %v2005 = vunpack.c.h.b16 %v1823
    %v2006 = vunpack.c.l.b16 %v1824
    %v2007 = vunpack.c.h.b16 %v1824
    %v2008 = vunpack.c.l.b16 %v1825
    %v2009 = vunpack.c.h.b16 %v1825
    %v2010 = vunpack.c.l.b16 %v1826
    %v2011 = vunpack.c.h.b16 %v1826
    %v2012 = vunpack.c.l.b16 %v1827
    %v2013 = vunpack.c.h.b16 %v1827
    %v2014 = vunpack.c.l.b16 %v1828
    %v2015 = vunpack.c.h.b16 %v1828
    %v2016 = vunpack.c.l.b16 %v1829
    %v2017 = vunpack.c.h.b16 %v1829
    %v2018 = vunpack.c.l.b16 %v1830
    %v2019 = vunpack.c.h.b16 %v1830
    %v2020 = vunpack.c.l.b16 %v1831
    %v2021 = vunpack.c.h.b16 %v1831
    %v2022 = vunpack.c.l.b16 %v1832
    %v2023 = vunpack.c.h.b16 %v1832
    %v2024 = vunpack.c.l.b16 %v1833
    %v2025 = vunpack.c.h.b16 %v1833
    %v2026 = vunpack.c.l.b16 %v1834
    %v2027 = vunpack.c.h.b16 %v1834
    %v2028 = vunpack.c.l.b16 %v1835
    %v2029 = vunpack.c.h.b16 %v1835
    %v2030 = vunpack.c.l.b16 %v1836
    %v2031 = vunpack.c.h.b16 %v1836
    %v2032 = vunpack.c.l.b16 %v1837
    %v2033 = vunpack.c.h.b16 %v1837
    %v2034 = vunpack.c.l.b16 %v1838
    %v2035 = vunpack.c.h.b16 %v1838
    %v2036 = vunpack.c.l.b16 %v1839
    %v2037 = vunpack.c.h.b16 %v1839
    %v2038 = vpack.c.b16 %v1912, %v1910
    %v2039 = vpack.c.b16 %v1913, %v1911
    %v2040 = vpack.c.b16 %v1916, %v1914
    %v2041 = vpack.c.b16 %v1917, %v1915
    %v2042 = vpack.c.b16 %v1920, %v1918
    %v2043 = vpack.c.b16 %v1921, %v1919
    %v2044 = vpack.c.b16 %v1924, %v1922
    %v2045 = vpack.c.b16 %v1925, %v1923
    %v2046 = vpack.c.b16 %v1928, %v1926
    %v2047 = vpack.c.b16 %v1929, %v1927
    %v2048 = vpack.c.b16 %v1932, %v1930
    %v2049 = vpack.c.b16 %v1933, %v1931
    %v2050 = vpack.c.b16 %v1936, %v1934
    %v2051 = vpack.c.b16 %v1937, %v1935
    %v2052 = vpack.c.b16 %v1940, %v1938
    %v2053 = vpack.c.b16 %v1941, %v1939
    %v2054 = vpack.c.b16 %v1944, %v1942
    %v2055 = vpack.c.b16 %v1945, %v1943
    %v2056 = vpack.c.b16 %v1948, %v1946
    %v2057 = vpack.c.b16 %v1949, %v1947
    %v2058 = vpack.c.b16 %v1952, %v1950
    %v2059 = vpack.c.b16 %v1953, %v1951
    %v2060 = vpack.c.b16 %v1956, %v1954
    %v2061 = vpack.c.b16 %v1957, %v1955
    %v2062 = vpack.c.b16 %v1960, %v1958
    %v2063 = vpack.c.b16 %v1961, %v1959
    %v2064 = vpack.c.b16 %v1964, %v1962
    %v2065 = vpack.c.b16 %v1965, %v1963
    %v2066 = vpack.c.b16 %v1968, %v1966
    %v2067 = vpack.c.b16 %v1969, %v1967
    %v2068 = vpack.c.b16 %v1972, %v1970
    %v2069 = vpack.c.b16 %v1973, %v1971
    %v2070 = vpack.c.b16 %v1976, %v1974
    %v2071 = vpack.c.b16 %v1977, %v1975
    %v2072 = vpack.c.b16 %v1980, %v1978
    %v2073 = vpack.c.b16 %v1981, %v1979
    %v2074 = vpack.c.b16 %v1984, %v1982
    %v2075 = vpack.c.b16 %v1985, %v1983
    %v2076 = vpack.c.b16 %v1988, %v1986
    %v2077 = vpack.c.b16 %v1989, %v1987
    %v2078 = vpack.c.b16 %v1992, %v1990
    %v2079 = vpack.c.b16 %v1993, %v1991
    %v2080 = vpack.c.b16 %v1996, %v1994
    %v2081 = vpack.c.b16 %v1997, %v1995
    %v2082 = vpack.c.b16 %v2000, %v1998
    %v2083 = vpack.c.b16 %v2001, %v1999
    %v2084 = vpack.c.b16 %v2004, %v2002
    %v2085 = vpack.c.b16 %v2005, %v2003
    %v2086 = vpack.c.b16 %v2008, %v2006
    %v2087 = vpack.c.b16 %v2009, %v2007
    %v2088 = vpack.c.b16 %v2012, %v2010
    %v2089 = vpack.c.b16 %v2013, %v2011
    %v2090 = vpack.c.b16 %v2016, %v2014
    %v2091 = vpack.c.b16 %v2017, %v2015
    %v2092 = vpack.c.b16 %v2020, %v2018
    %v2093 = vpack.c.b16 %v2021, %v2019
    %v2094 = vpack.c.b16 %v2024, %v2022
    %v2095 = vpack.c.b16 %v2025, %v2023
    %v2096 = vpack.c.b16 %v2028, %v2026
    %v2097 = vpack.c.b16 %v2029, %v2027
    %v2098 = vpack.c.b16 %v2032, %v2030
    %v2099 = vpack.c.b16 %v2033, %v2031
    %v2100 = vpack.c.b16 %v2036, %v2034
    %v2101 = vpack.c.b16 %v2037, %v2035
    %2166 = vmatpush.bf16.msra.mxu0 %v2052
    %2167 = vmatpush.bf16.msra.mxu0 %v2050
    %2168 = vmatpush.bf16.msra.mxu0 %v2048
    %2169 = vmatpush.bf16.msra.mxu0 %v2046
    %2170 = vmatpush.bf16.msra.mxu0 %v2044
    %2171 = vmatpush.bf16.msra.mxu0 %v2042
    %2172 = vmatpush.bf16.msra.mxu0 %v2040
    %2173 = vmatpush.bf16.msra.mxu0 %v2038
    %2174 = vmatmul.bf16.gmra.mxu0 %v1772
    %v2175 = vpop.f32.mrf.mxu0
    %v2176 = vadd.f32 %v1842, %v2175
    %v2177 = vpop.f32.mrf.mxu0
    %v2178 = vadd.f32 %v1842, %v2177
    %2179 = vdwg.mxu0
    %2180 = vmatpush.bf16.msra.mxu0 %v2068
    %2181 = vmatpush.bf16.msra.mxu0 %v2066
    %2182 = vmatpush.bf16.msra.mxu0 %v2064
    %2183 = vmatpush.bf16.msra.mxu0 %v2062
    %2184 = vmatpush.bf16.msra.mxu0 %v2060
    %2185 = vmatpush.bf16.msra.mxu0 %v2058
    %2186 = vmatpush.bf16.msra.mxu0 %v2056
    %2187 = vmatpush.bf16.msra.mxu0 %v2054
    %2188 = vmatmul.bf16.gmra.mxu0 %v1773
    %v2189 = vpop.f32.mrf.mxu0
    %v2190 = vadd.f32 %v2176, %v2189
    %v2191 = vpop.f32.mrf.mxu0
    %v2192 = vadd.f32 %v2178, %v2191
    %2193 = vdwg.mxu0
    %2194 = vmatpush.bf16.msra.mxu0 %v2084
    %2195 = vmatpush.bf16.msra.mxu0 %v2082
    %2196 = vmatpush.bf16.msra.mxu0 %v2080
    %2197 = vmatpush.bf16.msra.mxu0 %v2078
    %2198 = vmatpush.bf16.msra.mxu0 %v2076
    %2199 = vmatpush.bf16.msra.mxu0 %v2074
    %2200 = vmatpush.bf16.msra.mxu0 %v2072
    %2201 = vmatpush.bf16.msra.mxu0 %v2070
    %2202 = vmatmul.bf16.gmra.mxu0 %v1774
    %v2203 = vpop.f32.mrf.mxu0
    %v2204 = vadd.f32 %v2190, %v2203
    %v2205 = vpop.f32.mrf.mxu0
    %v2206 = vadd.f32 %v2192, %v2205
    %2207 = vdwg.mxu0
    %2208 = vmatpush.bf16.msra.mxu0 %v2100
    %2209 = vmatpush.bf16.msra.mxu0 %v2098
    %2210 = vmatpush.bf16.msra.mxu0 %v2096
    %2211 = vmatpush.bf16.msra.mxu0 %v2094
    %2212 = vmatpush.bf16.msra.mxu0 %v2092
    %2213 = vmatpush.bf16.msra.mxu0 %v2090
    %2214 = vmatpush.bf16.msra.mxu0 %v2088
    %2215 = vmatpush.bf16.msra.mxu0 %v2086
    %2216 = vmatmul.bf16.gmra.mxu0 %v1775
    %v2217 = vpop.f32.mrf.mxu0
    %v2218 = vadd.f32 %v2204, %v2217
    %v2219 = vpop.f32.mrf.mxu0
    %v2220 = vadd.f32 %v2206, %v2219
    %2221 = vdwg.mxu0
    %2222 = vmatpush.bf16.msra.mxu0 %v2053
    %2223 = vmatpush.bf16.msra.mxu0 %v2051
    %2224 = vmatpush.bf16.msra.mxu0 %v2049
    %2225 = vmatpush.bf16.msra.mxu0 %v2047
    %2226 = vmatpush.bf16.msra.mxu0 %v2045
    %2227 = vmatpush.bf16.msra.mxu0 %v2043
    %2228 = vmatpush.bf16.msra.mxu0 %v2041
    %2229 = vmatpush.bf16.msra.mxu0 %v2039
    %2230 = vmatmul.bf16.gmra.mxu0 %v1772
    %v2231 = vpop.f32.mrf.mxu0
    %v2232 = vadd.f32 %v1843, %v2231
    %v2233 = vpop.f32.mrf.mxu0
    %v2234 = vadd.f32 %v1843, %v2233
    %2235 = vdwg.mxu0
    %2236 = vmatpush.bf16.msra.mxu0 %v2069
    %2237 = vmatpush.bf16.msra.mxu0 %v2067
    %2238 = vmatpush.bf16.msra.mxu0 %v2065
    %2239 = vmatpush.bf16.msra.mxu0 %v2063
    %2240 = vmatpush.bf16.msra.mxu0 %v2061
    %2241 = vmatpush.bf16.msra.mxu0 %v2059
    %2242 = vmatpush.bf16.msra.mxu0 %v2057
    %2243 = vmatpush.bf16.msra.mxu0 %v2055
    %2244 = vmatmul.bf16.gmra.mxu0 %v1773
    %v2245 = vpop.f32.mrf.mxu0
    %v2246 = vadd.f32 %v2232, %v2245
    %v2247 = vpop.f32.mrf.mxu0
    %v2248 = vadd.f32 %v2234, %v2247
    %2249 = vdwg.mxu0
    %2250 = vmatpush.bf16.msra.mxu0 %v2085
    %2251 = vmatpush.bf16.msra.mxu0 %v2083
    %2252 = vmatpush.bf16.msra.mxu0 %v2081
    %2253 = vmatpush.bf16.msra.mxu0 %v2079
    %2254 = vmatpush.bf16.msra.mxu0 %v2077
    %2255 = vmatpush.bf16.msra.mxu0 %v2075
    %2256 = vmatpush.bf16.msra.mxu0 %v2073
    %2257 = vmatpush.bf16.msra.mxu0 %v2071
    %2258 = vmatmul.bf16.gmra.mxu0 %v1774
    %v2259 = vpop.f32.mrf.mxu0
    %v2260 = vadd.f32 %v2246, %v2259
    %v2261 = vpop.f32.mrf.mxu0
    %v2262 = vadd.f32 %v2248, %v2261
    %2263 = vdwg.mxu0
    %2264 = vmatpush.bf16.msra.mxu0 %v2101
    %2265 = vmatpush.bf16.msra.mxu0 %v2099
    %2266 = vmatpush.bf16.msra.mxu0 %v2097
    %2267 = vmatpush.bf16.msra.mxu0 %v2095
    %2268 = vmatpush.bf16.msra.mxu0 %v2093
    %2269 = vmatpush.bf16.msra.mxu0 %v2091
    %2270 = vmatpush.bf16.msra.mxu0 %v2089
    %2271 = vmatpush.bf16.msra.mxu0 %v2087
    %2272 = vmatmul.bf16.gmra.mxu0 %v1775
    %v2273 = vpop.f32.mrf.mxu0
    %v2274 = vadd.f32 %v2260, %v2273
    %v2275 = vpop.f32.mrf.mxu0
    %v2276 = vadd.f32 %v2262, %v2275
    %2277 = vdwg.mxu0
    %v2278 = vadd.f32 %v2218, %v2274
    %2279 = vadd.xlane.f32.xlu0 %v2278
    %v2280 = vpop.xlane.xlu0 %2279
    %v2281 = vadd.f32 %v2220, %v2276
    %2282 = vadd.xlane.f32.xlu0 %v2281
    %v2283 = vpop.xlane.xlu0 %2282
    %v2284 = vrcp.pop 256.0
    %v2285 = vmul.f32 256.0, %v2284
    %v2286 = vsub.f32 1.0, %v2285
    %v2287 = vmul.f32 %v2284, %v2286
    %v2288 = vadd.f32 %v2284, %v2287
    %vm2289 = vweird.f32 %v2284
    %v2290 = vsel %vm2289, %v2284, %v2288
    %v2291 = vmul.f32 %v2280, %v2290
    %v2292 = vmul.f32 %v2283, %v2290
    %v2293 = vsub.f32 %v2218, %v2291
    %v2294 = vsub.f32 %v2274, %v2291
    %v2295 = vsub.f32 %v2220, %v2292
    %v2296 = vsub.f32 %v2276, %v2292
    %v2297 = vmul.f32 %v2293, %v2293
    %v2298 = vmul.f32 %v2294, %v2294
    %v2299 = vmul.f32 %v2295, %v2295
    %v2300 = vmul.f32 %v2296, %v2296
    %v2301 = vadd.f32 %v2297, %v2298
    %2302 = vadd.xlane.f32.xlu0 %v2301
    %v2303 = vpop.xlane.xlu0 %2302
    %v2304 = vadd.f32 %v2299, %v2300
    %2305 = vadd.xlane.f32.xlu0 %v2304
    %v2306 = vpop.xlane.xlu0 %2305
    %v2307 = vmul.f32 %v2303, %v2290
    %v2308 = vmul.f32 %v2306, %v2290
    %v2309 = vadd.f32 %v2307, 1e-05
    %v2310 = vadd.f32 %v2308, 1e-05
    %v2311 = vrsqrt.pop %v2309
    %v2312 = vmul.f32 %v2311, %v2309
    %v2313 = vmul.f32 %v2312, %v2311
    %v2314 = vmul.f32 0.5, %v2313
    %v2315 = vsub.f32 1.5, %v2314
    %v2316 = vmul.f32 %v2311, %v2315
    %vm2317 = vweird.f32 %v2309
    %vm2318 = vweird.f32 %v2311
    %vm2319 = vmor %vm2317, %vm2318
    %v2320 = vsel %vm2319, %v2311, %v2316
    %v2321 = vrsqrt.pop %v2310
    %v2322 = vmul.f32 %v2321, %v2310
    %v2323 = vmul.f32 %v2322, %v2321
    %v2324 = vmul.f32 0.5, %v2323
    %v2325 = vsub.f32 1.5, %v2324
    %v2326 = vmul.f32 %v2321, %v2325
    %vm2327 = vweird.f32 %v2310
    %vm2328 = vweird.f32 %v2321
    %vm2329 = vmor %vm2327, %vm2328
    %v2330 = vsel %vm2329, %v2321, %v2326
    %v2331 = vmul.f32 %v2293, %v2320
    %v2332 = vmul.f32 %v2294, %v2320
    %v2333 = vmul.f32 %v2295, %v2330
    %v2334 = vmul.f32 %v2296, %v2330
    %v2335 = vld [vmem:[%s10 + $0x1e] sm:$0x3]
    %v2337 = vperm.slane %v2335, 0
    %v2338 = vperm.slane %v2335, 1
    %v2341 = vmul.f32 %v2331, %v2337
    %v2342 = vmul.f32 %v2332, %v2338
    %v2343 = vmul.f32 %v2333, %v2337
    %v2344 = vmul.f32 %v2334, %v2338
    %v2345 = vld [vmem:[%s10 + $0x20] sm:$0x3]
    %v2347 = vperm.slane %v2345, 0
    %v2348 = vperm.slane %v2345, 1
    %v2351 = vadd.f32 %v2341, %v2347
    %v2352 = vadd.f32 %v2342, %v2348
    %v2353 = vadd.f32 %v2343, %v2347
    %v2354 = vadd.f32 %v2344, %v2348
    %v2355 = vmax.f32 %v2351, 0.0
    %v2356 = vmax.f32 %v2352, 0.0
    %v2357 = vmax.f32 %v2353, 0.0
    %v2358 = vmax.f32 %v2354, 0.0
    %v2359 = vpack.c.bf16 %v2357, %v2355
    %v2360 = vpack.c.bf16 %v2358, %v2356
    %v2361 = vld [vmem:[%s3] sm:$0xf]
    %v2362 = vld [vmem:[%s3 + $0x4] sm:$0xf]
    %v2363 = vld [vmem:[%s3 + $0x8] sm:$0xf]
    %v2364 = vld [vmem:[%s3 + $0xc] sm:$0xf]
    %v2365 = vld [vmem:[%s3 + $0x10] sm:$0xf]
    %v2366 = vld [vmem:[%s3 + $0x14] sm:$0xf]
    %v2367 = vld [vmem:[%s3 + $0x18] sm:$0xf]
    %v2368 = vld [vmem:[%s3 + $0x1c] sm:$0xf]
    %v2369 = vld [vmem:[%s3 + $0x20] sm:$0xf]
    %v2370 = vld [vmem:[%s3 + $0x24] sm:$0xf]
    %v2371 = vld [vmem:[%s3 + $0x28] sm:$0xf]
    %v2372 = vld [vmem:[%s3 + $0x2c] sm:$0xf]
    %v2373 = vld [vmem:[%s3 + $0x30] sm:$0xf]
    %v2374 = vld [vmem:[%s3 + $0x34] sm:$0xf]
    %v2375 = vld [vmem:[%s3 + $0x38] sm:$0xf]
    %v2376 = vld [vmem:[%s3 + $0x3c] sm:$0xf]
    %v2377 = vld [vmem:[%s3 + $0x40] sm:$0xf]
    %v2378 = vld [vmem:[%s3 + $0x44] sm:$0xf]
    %v2379 = vld [vmem:[%s3 + $0x48] sm:$0xf]
    %v2380 = vld [vmem:[%s3 + $0x4c] sm:$0xf]
    %v2381 = vld [vmem:[%s3 + $0x50] sm:$0xf]
    %v2382 = vld [vmem:[%s3 + $0x54] sm:$0xf]
    %v2383 = vld [vmem:[%s3 + $0x58] sm:$0xf]
    %v2384 = vld [vmem:[%s3 + $0x5c] sm:$0xf]
    %v2385 = vld [vmem:[%s3 + $0x60] sm:$0xf]
    %v2386 = vld [vmem:[%s3 + $0x64] sm:$0xf]
    %v2387 = vld [vmem:[%s3 + $0x68] sm:$0xf]
    %v2388 = vld [vmem:[%s3 + $0x6c] sm:$0xf]
    %v2389 = vld [vmem:[%s3 + $0x70] sm:$0xf]
    %v2390 = vld [vmem:[%s3 + $0x74] sm:$0xf]
    %v2391 = vld [vmem:[%s3 + $0x78] sm:$0xf]
    %v2392 = vld [vmem:[%s3 + $0x7c] sm:$0xf]
    %v2393 = vld [vmem:[%s10 + $0x6] sm:$0x1]
    %v2395 = vperm.slane %v2393, 0
    %v2429 = vunpack.c.l.b16 %v2361
    %v2430 = vunpack.c.l.b16 %v2362
    %v2431 = vunpack.c.l.b16 %v2363
    %v2432 = vunpack.c.l.b16 %v2364
    %v2433 = vunpack.c.l.b16 %v2365
    %v2434 = vunpack.c.l.b16 %v2366
    %v2435 = vunpack.c.l.b16 %v2367
    %v2436 = vunpack.c.l.b16 %v2368
    %v2437 = vunpack.c.l.b16 %v2369
    %v2438 = vunpack.c.l.b16 %v2370
    %v2439 = vunpack.c.l.b16 %v2371
    %v2440 = vunpack.c.l.b16 %v2372
    %v2441 = vunpack.c.l.b16 %v2373
    %v2442 = vunpack.c.l.b16 %v2374
    %v2443 = vunpack.c.l.b16 %v2375
    %v2444 = vunpack.c.l.b16 %v2376
    %v2445 = vunpack.c.l.b16 %v2377
    %v2446 = vunpack.c.l.b16 %v2378
    %v2447 = vunpack.c.l.b16 %v2379
    %v2448 = vunpack.c.l.b16 %v2380
    %v2449 = vunpack.c.l.b16 %v2381
    %v2450 = vunpack.c.l.b16 %v2382
    %v2451 = vunpack.c.l.b16 %v2383
    %v2452 = vunpack.c.l.b16 %v2384
    %v2453 = vunpack.c.l.b16 %v2385
    %v2454 = vunpack.c.l.b16 %v2386
    %v2455 = vunpack.c.l.b16 %v2387
    %v2456 = vunpack.c.l.b16 %v2388
    %v2457 = vunpack.c.l.b16 %v2389
    %v2458 = vunpack.c.l.b16 %v2390
    %v2459 = vunpack.c.l.b16 %v2391
    %v2460 = vunpack.c.l.b16 %v2392
    %v2461 = vpack.c.b16 %v2430, %v2429
    %v2462 = vpack.c.b16 %v2432, %v2431
    %v2463 = vpack.c.b16 %v2434, %v2433
    %v2464 = vpack.c.b16 %v2436, %v2435
    %v2465 = vpack.c.b16 %v2438, %v2437
    %v2466 = vpack.c.b16 %v2440, %v2439
    %v2467 = vpack.c.b16 %v2442, %v2441
    %v2468 = vpack.c.b16 %v2444, %v2443
    %v2469 = vpack.c.b16 %v2446, %v2445
    %v2470 = vpack.c.b16 %v2448, %v2447
    %v2471 = vpack.c.b16 %v2450, %v2449
    %v2472 = vpack.c.b16 %v2452, %v2451
    %v2473 = vpack.c.b16 %v2454, %v2453
    %v2474 = vpack.c.b16 %v2456, %v2455
    %v2475 = vpack.c.b16 %v2458, %v2457
    %v2476 = vpack.c.b16 %v2460, %v2459
    %2493 = vmatpush.bf16.msra.mxu0 %v2468
    %2494 = vmatpush.bf16.msra.mxu0 %v2467
    %2495 = vmatpush.bf16.msra.mxu0 %v2466
    %2496 = vmatpush.bf16.msra.mxu0 %v2465
    %2497 = vmatpush.bf16.msra.mxu0 %v2464
    %2498 = vmatpush.bf16.msra.mxu0 %v2463
    %2499 = vmatpush.bf16.msra.mxu0 %v2462
    %2500 = vmatpush.bf16.msra.mxu0 %v2461
    %2501 = vmatmul.bf16.gmra.mxu0 %v2359
    %v2502 = vpop.f32.mrf.mxu0
    %v2503 = vadd.f32 %v2395, %v2502
    %v2504 = vpop.f32.mrf.mxu0
    %v2505 = vadd.f32 %v2395, %v2504
    %2506 = vdwg.mxu0
    %2507 = vmatpush.bf16.msra.mxu0 %v2476
    %2508 = vmatpush.bf16.msra.mxu0 %v2475
    %2509 = vmatpush.bf16.msra.mxu0 %v2474
    %2510 = vmatpush.bf16.msra.mxu0 %v2473
    %2511 = vmatpush.bf16.msra.mxu0 %v2472
    %2512 = vmatpush.bf16.msra.mxu0 %v2471
    %2513 = vmatpush.bf16.msra.mxu0 %v2470
    %2514 = vmatpush.bf16.msra.mxu0 %v2469
    %2515 = vmatmul.bf16.gmra.mxu0 %v2360
    %v2516 = vpop.f32.mrf.mxu0
    %v2517 = vadd.f32 %v2503, %v2516
    %v2518 = vpop.f32.mrf.mxu0
    %v2519 = vadd.f32 %v2505, %v2518
    %2520 = vdwg.mxu0
    %2521 = vadd.xlane.f32.xlu0 %v2517
    %v2522 = vpop.xlane.xlu0 %2521
    %2523 = vadd.xlane.f32.xlu0 %v2519
    %v2524 = vpop.xlane.xlu0 %2523
    %v2525 = vrcp.pop 128.0
    %v2526 = vmul.f32 128.0, %v2525
    %v2527 = vsub.f32 1.0, %v2526
    %v2528 = vmul.f32 %v2525, %v2527
    %v2529 = vadd.f32 %v2525, %v2528
    %vm2530 = vweird.f32 %v2525
    %v2531 = vsel %vm2530, %v2525, %v2529
    %v2532 = vmul.f32 %v2522, %v2531
    %v2533 = vmul.f32 %v2524, %v2531
    %v2534 = vsub.f32 %v2517, %v2532
    %v2535 = vsub.f32 %v2519, %v2533
    %v2536 = vmul.f32 %v2534, %v2534
    %v2537 = vmul.f32 %v2535, %v2535
    %2538 = vadd.xlane.f32.xlu0 %v2536
    %v2539 = vpop.xlane.xlu0 %2538
    %2540 = vadd.xlane.f32.xlu0 %v2537
    %v2541 = vpop.xlane.xlu0 %2540
    %v2542 = vmul.f32 %v2539, %v2531
    %v2543 = vmul.f32 %v2541, %v2531
    %v2544 = vadd.f32 %v2542, 1e-05
    %v2545 = vadd.f32 %v2543, 1e-05
    %v2546 = vrsqrt.pop %v2544
    %v2547 = vmul.f32 %v2546, %v2544
    %v2548 = vmul.f32 %v2547, %v2546
    %v2549 = vmul.f32 0.5, %v2548
    %v2550 = vsub.f32 1.5, %v2549
    %v2551 = vmul.f32 %v2546, %v2550
    %vm2552 = vweird.f32 %v2544
    %vm2553 = vweird.f32 %v2546
    %vm2554 = vmor %vm2552, %vm2553
    %v2555 = vsel %vm2554, %v2546, %v2551
    %v2556 = vrsqrt.pop %v2545
    %v2557 = vmul.f32 %v2556, %v2545
    %v2558 = vmul.f32 %v2557, %v2556
    %v2559 = vmul.f32 0.5, %v2558
    %v2560 = vsub.f32 1.5, %v2559
    %v2561 = vmul.f32 %v2556, %v2560
    %vm2562 = vweird.f32 %v2545
    %vm2563 = vweird.f32 %v2556
    %vm2564 = vmor %vm2562, %vm2563
    %v2565 = vsel %vm2564, %v2556, %v2561
    %v2566 = vmul.f32 %v2534, %v2555
    %v2567 = vmul.f32 %v2535, %v2565
    %v2568 = vld [vmem:[%s10 + $0x22] sm:$0x1]
    %v2570 = vperm.slane %v2568, 0
    %v2572 = vmul.f32 %v2566, %v2570
    %v2573 = vmul.f32 %v2567, %v2570
    %v2574 = vld [vmem:[%s10 + $0x23] sm:$0x1]
    %v2576 = vperm.slane %v2574, 0
    %v2578 = vadd.f32 %v2572, %v2576
    %v2579 = vadd.f32 %v2573, %v2576
    %v2580 = vmax.f32 %v2578, 0.0
    %v2581 = vmax.f32 %v2579, 0.0
    %v2582 = vpack.c.bf16 %v2581, %v2580
    %v2583 = vld [vmem:[%s4] sm:$0xff]
    %v2584 = vld [vmem:[%s4 + $0x8] sm:$0xff]
    %v2585 = vld [vmem:[%s4 + $0x10] sm:$0xff]
    %v2586 = vld [vmem:[%s4 + $0x18] sm:$0xff]
    %v2587 = vld [vmem:[%s4 + $0x20] sm:$0xff]
    %v2588 = vld [vmem:[%s4 + $0x28] sm:$0xff]
    %v2589 = vld [vmem:[%s4 + $0x30] sm:$0xff]
    %v2590 = vld [vmem:[%s4 + $0x38] sm:$0xff]
    %v2591 = vld [vmem:[%s4 + $0x40] sm:$0xff]
    %v2592 = vld [vmem:[%s4 + $0x48] sm:$0xff]
    %v2593 = vld [vmem:[%s4 + $0x50] sm:$0xff]
    %v2594 = vld [vmem:[%s4 + $0x58] sm:$0xff]
    %v2595 = vld [vmem:[%s4 + $0x60] sm:$0xff]
    %v2596 = vld [vmem:[%s4 + $0x68] sm:$0xff]
    %v2597 = vld [vmem:[%s4 + $0x70] sm:$0xff]
    %v2598 = vld [vmem:[%s4 + $0x78] sm:$0xff]
    %v2599 = vld [vmem:[%s10 + $0x7] sm:$0x3]
    %v2601 = vperm.slane %v2599, 0
    %v2602 = vperm.slane %v2599, 1
    %v2621 = vunpack.c.l.b16 %v2583
    %v2622 = vunpack.c.h.b16 %v2583
    %v2623 = vunpack.c.l.b16 %v2584
    %v2624 = vunpack.c.h.b16 %v2584
    %v2625 = vunpack.c.l.b16 %v2585
    %v2626 = vunpack.c.h.b16 %v2585
    %v2627 = vunpack.c.l.b16 %v2586
    %v2628 = vunpack.c.h.b16 %v2586
    %v2629 = vunpack.c.l.b16 %v2587
    %v2630 = vunpack.c.h.b16 %v2587
    %v2631 = vunpack.c.l.b16 %v2588
    %v2632 = vunpack.c.h.b16 %v2588
    %v2633 = vunpack.c.l.b16 %v2589
    %v2634 = vunpack.c.h.b16 %v2589
    %v2635 = vunpack.c.l.b16 %v2590
    %v2636 = vunpack.c.h.b16 %v2590
    %v2637 = vunpack.c.l.b16 %v2591
    %v2638 = vunpack.c.h.b16 %v2591
    %v2639 = vunpack.c.l.b16 %v2592
    %v2640 = vunpack.c.h.b16 %v2592
    %v2641 = vunpack.c.l.b16 %v2593
    %v2642 = vunpack.c.h.b16 %v2593
    %v2643 = vunpack.c.l.b16 %v2594
    %v2644 = vunpack.c.h.b16 %v2594
    %v2645 = vunpack.c.l.b16 %v2595
    %v2646 = vunpack.c.h.b16 %v2595
    %v2647 = vunpack.c.l.b16 %v2596
    %v2648 = vunpack.c.h.b16 %v2596
    %v2649 = vunpack.c.l.b16 %v2597
    %v2650 = vunpack.c.h.b16 %v2597
    %v2651 = vunpack.c.l.b16 %v2598
    %v2652 = vunpack.c.h.b16 %v2598
    %v2653 = vpack.c.b16 %v2623, %v2621
    %v2654 = vpack.c.b16 %v2624, %v2622
    %v2655 = vpack.c.b16 %v2627, %v2625
    %v2656 = vpack.c.b16 %v2628, %v2626
    %v2657 = vpack.c.b16 %v2631, %v2629
    %v2658 = vpack.c.b16 %v2632, %v2630
    %v2659 = vpack.c.b16 %v2635, %v2633
    %v2660 = vpack.c.b16 %v2636, %v2634
    %v2661 = vpack.c.b16 %v2639, %v2637
    %v2662 = vpack.c.b16 %v2640, %v2638
    %v2663 = vpack.c.b16 %v2643, %v2641
    %v2664 = vpack.c.b16 %v2644, %v2642
    %v2665 = vpack.c.b16 %v2647, %v2645
    %v2666 = vpack.c.b16 %v2648, %v2646
    %v2667 = vpack.c.b16 %v2651, %v2649
    %v2668 = vpack.c.b16 %v2652, %v2650
    %2685 = vmatpush.bf16.msra.mxu0 %v2667
    %2686 = vmatpush.bf16.msra.mxu0 %v2665
    %2687 = vmatpush.bf16.msra.mxu0 %v2663
    %2688 = vmatpush.bf16.msra.mxu0 %v2661
    %2689 = vmatpush.bf16.msra.mxu0 %v2659
    %2690 = vmatpush.bf16.msra.mxu0 %v2657
    %2691 = vmatpush.bf16.msra.mxu0 %v2655
    %2692 = vmatpush.bf16.msra.mxu0 %v2653
    %2693 = vmatmul.bf16.gmra.mxu0 %v2582
    %v2694 = vpop.f32.mrf.mxu0
    %v2695 = vadd.f32 %v2601, %v2694
    %v2696 = vpop.f32.mrf.mxu0
    %v2697 = vadd.f32 %v2601, %v2696
    %2698 = vdwg.mxu0
    %2699 = vmatpush.bf16.msra.mxu0 %v2668
    %2700 = vmatpush.bf16.msra.mxu0 %v2666
    %2701 = vmatpush.bf16.msra.mxu0 %v2664
    %2702 = vmatpush.bf16.msra.mxu0 %v2662
    %2703 = vmatpush.bf16.msra.mxu0 %v2660
    %2704 = vmatpush.bf16.msra.mxu0 %v2658
    %2705 = vmatpush.bf16.msra.mxu0 %v2656
    %2706 = vmatpush.bf16.msra.mxu0 %v2654
    %2707 = vmatmul.bf16.gmra.mxu0 %v2582
    %v2708 = vpop.f32.mrf.mxu0
    %v2709 = vadd.f32 %v2602, %v2708
    %v2710 = vpop.f32.mrf.mxu0
    %v2711 = vadd.f32 %v2602, %v2710
    %2712 = vdwg.mxu0
    %v2713 = vmax.f32 %v2695, 0.0
    %v2714 = vmax.f32 %v2709, 0.0
    %v2715 = vmax.f32 %v2697, 0.0
    %v2716 = vmax.f32 %v2711, 0.0
    %v2717 = vpack.c.bf16 %v2715, %v2713
    %v2718 = vpack.c.bf16 %v2716, %v2714
    %v2719 = vld [vmem:[#allocation6] sm:$0xff]
    %v2720 = vld [vmem:[#allocation6 + $0x8] sm:$0xff]
    %v2721 = vld [vmem:[#allocation6 + $0x10] sm:$0xff]
    %v2722 = vld [vmem:[#allocation6 + $0x18] sm:$0xff]
    %v2723 = vld [vmem:[#allocation6 + $0x20] sm:$0xff]
    %v2724 = vld [vmem:[#allocation6 + $0x28] sm:$0xff]
    %v2725 = vld [vmem:[#allocation6 + $0x30] sm:$0xff]
    %v2726 = vld [vmem:[#allocation6 + $0x38] sm:$0xff]
    %v2727 = vld [vmem:[#allocation6 + $0x40] sm:$0xff]
    %v2728 = vld [vmem:[#allocation6 + $0x48] sm:$0xff]
    %v2729 = vld [vmem:[#allocation6 + $0x50] sm:$0xff]
    %v2730 = vld [vmem:[#allocation6 + $0x58] sm:$0xff]
    %v2731 = vld [vmem:[#allocation6 + $0x60] sm:$0xff]
    %v2732 = vld [vmem:[#allocation6 + $0x68] sm:$0xff]
    %v2733 = vld [vmem:[#allocation6 + $0x70] sm:$0xff]
    %v2734 = vld [vmem:[#allocation6 + $0x78] sm:$0xff]
    %v2735 = vld [vmem:[#allocation6 + $0x80] sm:$0xff]
    %v2736 = vld [vmem:[#allocation6 + $0x88] sm:$0xff]
    %v2737 = vld [vmem:[#allocation6 + $0x90] sm:$0xff]
    %v2738 = vld [vmem:[#allocation6 + $0x98] sm:$0xff]
    %v2739 = vld [vmem:[#allocation6 + $0xa0] sm:$0xff]
    %v2740 = vld [vmem:[#allocation6 + $0xa8] sm:$0xff]
    %v2741 = vld [vmem:[#allocation6 + $0xb0] sm:$0xff]
    %v2742 = vld [vmem:[#allocation6 + $0xb8] sm:$0xff]
    %v2743 = vld [vmem:[#allocation6 + $0xc0] sm:$0xff]
    %v2744 = vld [vmem:[#allocation6 + $0xc8] sm:$0xff]
    %v2745 = vld [vmem:[#allocation6 + $0xd0] sm:$0xff]
    %v2746 = vld [vmem:[#allocation6 + $0xd8] sm:$0xff]
    %v2747 = vld [vmem:[#allocation6 + $0xe0] sm:$0xff]
    %v2748 = vld [vmem:[#allocation6 + $0xe8] sm:$0xff]
    %v2749 = vld [vmem:[#allocation6 + $0xf0] sm:$0xff]
    %v2750 = vld [vmem:[#allocation6 + $0xf8] sm:$0xff]
    %v2751 = vld [vmem:[#allocation6 + $0x100] sm:$0xff]
    %v2752 = vld [vmem:[#allocation6 + $0x108] sm:$0xff]
    %v2753 = vld [vmem:[#allocation6 + $0x110] sm:$0xff]
    %v2754 = vld [vmem:[#allocation6 + $0x118] sm:$0xff]
    %v2755 = vld [vmem:[#allocation6 + $0x120] sm:$0xff]
    %v2756 = vld [vmem:[#allocation6 + $0x128] sm:$0xff]
    %v2757 = vld [vmem:[#allocation6 + $0x130] sm:$0xff]
    %v2758 = vld [vmem:[#allocation6 + $0x138] sm:$0xff]
    %v2759 = vld [vmem:[#allocation6 + $0x140] sm:$0xff]
    %v2760 = vld [vmem:[#allocation6 + $0x148] sm:$0xff]
    %v2761 = vld [vmem:[#allocation6 + $0x150] sm:$0xff]
    %v2762 = vld [vmem:[#allocation6 + $0x158] sm:$0xff]
    %v2763 = vld [vmem:[#allocation6 + $0x160] sm:$0xff]
    %v2764 = vld [vmem:[#allocation6 + $0x168] sm:$0xff]
    %v2765 = vld [vmem:[#allocation6 + $0x170] sm:$0xff]
    %v2766 = vld [vmem:[#allocation6 + $0x178] sm:$0xff]
    %v2767 = vld [vmem:[#allocation6 + $0x180] sm:$0xff]
    %v2768 = vld [vmem:[#allocation6 + $0x188] sm:$0xff]
    %v2769 = vld [vmem:[#allocation6 + $0x190] sm:$0xff]
    %v2770 = vld [vmem:[#allocation6 + $0x198] sm:$0xff]
    %v2771 = vld [vmem:[#allocation6 + $0x1a0] sm:$0xff]
    %v2772 = vld [vmem:[#allocation6 + $0x1a8] sm:$0xff]
    %v2773 = vld [vmem:[#allocation6 + $0x1b0] sm:$0xff]
    %v2774 = vld [vmem:[#allocation6 + $0x1b8] sm:$0xff]
    %v2775 = vld [vmem:[#allocation6 + $0x1c0] sm:$0xff]
    %v2776 = vld [vmem:[#allocation6 + $0x1c8] sm:$0xff]
    %v2777 = vld [vmem:[#allocation6 + $0x1d0] sm:$0xff]
    %v2778 = vld [vmem:[#allocation6 + $0x1d8] sm:$0xff]
    %v2779 = vld [vmem:[#allocation6 + $0x1e0] sm:$0xff]
    %v2780 = vld [vmem:[#allocation6 + $0x1e8] sm:$0xff]
    %v2781 = vld [vmem:[#allocation6 + $0x1f0] sm:$0xff]
    %v2782 = vld [vmem:[#allocation6 + $0x1f8] sm:$0xff]
    %v2783 = vld [vmem:[%s10 + $0x9] sm:$0xf]
    %v2785 = vperm.slane %v2783, 0
    %v2786 = vperm.slane %v2783, 1
    %v2787 = vperm.slane %v2783, 2
    %v2788 = vperm.slane %v2783, 3
    %v2857 = vunpack.c.l.b16 %v2719
    %v2858 = vunpack.c.h.b16 %v2719
    %v2859 = vunpack.c.l.b16 %v2720
    %v2860 = vunpack.c.h.b16 %v2720
    %v2861 = vunpack.c.l.b16 %v2721
    %v2862 = vunpack.c.h.b16 %v2721
    %v2863 = vunpack.c.l.b16 %v2722
    %v2864 = vunpack.c.h.b16 %v2722
    %v2865 = vunpack.c.l.b16 %v2723
    %v2866 = vunpack.c.h.b16 %v2723
    %v2867 = vunpack.c.l.b16 %v2724
    %v2868 = vunpack.c.h.b16 %v2724
    %v2869 = vunpack.c.l.b16 %v2725
    %v2870 = vunpack.c.h.b16 %v2725
    %v2871 = vunpack.c.l.b16 %v2726
    %v2872 = vunpack.c.h.b16 %v2726
    %v2873 = vunpack.c.l.b16 %v2727
    %v2874 = vunpack.c.h.b16 %v2727
    %v2875 = vunpack.c.l.b16 %v2728
    %v2876 = vunpack.c.h.b16 %v2728
    %v2877 = vunpack.c.l.b16 %v2729
    %v2878 = vunpack.c.h.b16 %v2729
    %v2879 = vunpack.c.l.b16 %v2730
    %v2880 = vunpack.c.h.b16 %v2730
    %v2881 = vunpack.c.l.b16 %v2731
    %v2882 = vunpack.c.h.b16 %v2731
    %v2883 = vunpack.c.l.b16 %v2732
    %v2884 = vunpack.c.h.b16 %v2732
    %v2885 = vunpack.c.l.b16 %v2733
    %v2886 = vunpack.c.h.b16 %v2733
    %v2887 = vunpack.c.l.b16 %v2734
    %v2888 = vunpack.c.h.b16 %v2734
    %v2889 = vunpack.c.l.b16 %v2735
    %v2890 = vunpack.c.h.b16 %v2735
    %v2891 = vunpack.c.l.b16 %v2736
    %v2892 = vunpack.c.h.b16 %v2736
    %v2893 = vunpack.c.l.b16 %v2737
    %v2894 = vunpack.c.h.b16 %v2737
    %v2895 = vunpack.c.l.b16 %v2738
    %v2896 = vunpack.c.h.b16 %v2738
    %v2897 = vunpack.c.l.b16 %v2739
    %v2898 = vunpack.c.h.b16 %v2739
    %v2899 = vunpack.c.l.b16 %v2740
    %v2900 = vunpack.c.h.b16 %v2740
    %v2901 = vunpack.c.l.b16 %v2741
    %v2902 = vunpack.c.h.b16 %v2741
    %v2903 = vunpack.c.l.b16 %v2742
    %v2904 = vunpack.c.h.b16 %v2742
    %v2905 = vunpack.c.l.b16 %v2743
    %v2906 = vunpack.c.h.b16 %v2743
    %v2907 = vunpack.c.l.b16 %v2744
    %v2908 = vunpack.c.h.b16 %v2744
    %v2909 = vunpack.c.l.b16 %v2745
    %v2910 = vunpack.c.h.b16 %v2745
    %v2911 = vunpack.c.l.b16 %v2746
    %v2912 = vunpack.c.h.b16 %v2746
    %v2913 = vunpack.c.l.b16 %v2747
    %v2914 = vunpack.c.h.b16 %v2747
    %v2915 = vunpack.c.l.b16 %v2748
    %v2916 = vunpack.c.h.b16 %v2748
    %v2917 = vunpack.c.l.b16 %v2749
    %v2918 = vunpack.c.h.b16 %v2749
    %v2919 = vunpack.c.l.b16 %v2750
    %v2920 = vunpack.c.h.b16 %v2750
    %v2921 = vunpack.c.l.b16 %v2751
    %v2922 = vunpack.c.h.b16 %v2751
    %v2923 = vunpack.c.l.b16 %v2752
    %v2924 = vunpack.c.h.b16 %v2752
    %v2925 = vunpack.c.l.b16 %v2753
    %v2926 = vunpack.c.h.b16 %v2753
    %v2927 = vunpack.c.l.b16 %v2754
    %v2928 = vunpack.c.h.b16 %v2754
    %v2929 = vunpack.c.l.b16 %v2755
    %v2930 = vunpack.c.h.b16 %v2755
    %v2931 = vunpack.c.l.b16 %v2756
    %v2932 = vunpack.c.h.b16 %v2756
    %v2933 = vunpack.c.l.b16 %v2757
    %v2934 = vunpack.c.h.b16 %v2757
    %v2935 = vunpack.c.l.b16 %v2758
    %v2936 = vunpack.c.h.b16 %v2758
    %v2937 = vunpack.c.l.b16 %v2759
    %v2938 = vunpack.c.h.b16 %v2759
    %v2939 = vunpack.c.l.b16 %v2760
    %v2940 = vunpack.c.h.b16 %v2760
    %v2941 = vunpack.c.l.b16 %v2761
    %v2942 = vunpack.c.h.b16 %v2761
    %v2943 = vunpack.c.l.b16 %v2762
    %v2944 = vunpack.c.h.b16 %v2762
    %v2945 = vunpack.c.l.b16 %v2763
    %v2946 = vunpack.c.h.b16 %v2763
    %v2947 = vunpack.c.l.b16 %v2764
    %v2948 = vunpack.c.h.b16 %v2764
    %v2949 = vunpack.c.l.b16 %v2765
    %v2950 = vunpack.c.h.b16 %v2765
    %v2951 = vunpack.c.l.b16 %v2766
    %v2952 = vunpack.c.h.b16 %v2766
    %v2953 = vunpack.c.l.b16 %v2767
    %v2954 = vunpack.c.h.b16 %v2767
    %v2955 = vunpack.c.l.b16 %v2768
    %v2956 = vunpack.c.h.b16 %v2768
    %v2957 = vunpack.c.l.b16 %v2769
    %v2958 = vunpack.c.h.b16 %v2769
    %v2959 = vunpack.c.l.b16 %v2770
    %v2960 = vunpack.c.h.b16 %v2770
    %v2961 = vunpack.c.l.b16 %v2771
    %v2962 = vunpack.c.h.b16 %v2771
    %v2963 = vunpack.c.l.b16 %v2772
    %v2964 = vunpack.c.h.b16 %v2772
    %v2965 = vunpack.c.l.b16 %v2773
    %v2966 = vunpack.c.h.b16 %v2773
    %v2967 = vunpack.c.l.b16 %v2774
    %v2968 = vunpack.c.h.b16 %v2774
    %v2969 = vunpack.c.l.b16 %v2775
    %v2970 = vunpack.c.h.b16 %v2775
    %v2971 = vunpack.c.l.b16 %v2776
    %v2972 = vunpack.c.h.b16 %v2776
    %v2973 = vunpack.c.l.b16 %v2777
    %v2974 = vunpack.c.h.b16 %v2777
    %v2975 = vunpack.c.l.b16 %v2778
    %v2976 = vunpack.c.h.b16 %v2778
    %v2977 = vunpack.c.l.b16 %v2779
    %v2978 = vunpack.c.h.b16 %v2779
    %v2979 = vunpack.c.l.b16 %v2780
    %v2980 = vunpack.c.h.b16 %v2780
    %v2981 = vunpack.c.l.b16 %v2781
    %v2982 = vunpack.c.h.b16 %v2781
    %v2983 = vunpack.c.l.b16 %v2782
    %v2984 = vunpack.c.h.b16 %v2782
    %v2985 = vpack.c.b16 %v2861, %v2857
    %v2986 = vpack.c.b16 %v2862, %v2858
    %v2987 = vpack.c.b16 %v2863, %v2859
    %v2988 = vpack.c.b16 %v2864, %v2860
    %v2989 = vpack.c.b16 %v2869, %v2865
    %v2990 = vpack.c.b16 %v2870, %v2866
    %v2991 = vpack.c.b16 %v2871, %v2867
    %v2992 = vpack.c.b16 %v2872, %v2868
    %v2993 = vpack.c.b16 %v2877, %v2873
    %v2994 = vpack.c.b16 %v2878, %v2874
    %v2995 = vpack.c.b16 %v2879, %v2875
    %v2996 = vpack.c.b16 %v2880, %v2876
    %v2997 = vpack.c.b16 %v2885, %v2881
    %v2998 = vpack.c.b16 %v2886, %v2882
    %v2999 = vpack.c.b16 %v2887, %v2883
    %v3000 = vpack.c.b16 %v2888, %v2884
    %v3001 = vpack.c.b16 %v2893, %v2889
    %v3002 = vpack.c.b16 %v2894, %v2890
    %v3003 = vpack.c.b16 %v2895, %v2891
    %v3004 = vpack.c.b16 %v2896, %v2892
    %v3005 = vpack.c.b16 %v2901, %v2897
    %v3006 = vpack.c.b16 %v2902, %v2898
    %v3007 = vpack.c.b16 %v2903, %v2899
    %v3008 = vpack.c.b16 %v2904, %v2900
    %v3009 = vpack.c.b16 %v2909, %v2905
    %v3010 = vpack.c.b16 %v2910, %v2906
    %v3011 = vpack.c.b16 %v2911, %v2907
    %v3012 = vpack.c.b16 %v2912, %v2908
    %v3013 = vpack.c.b16 %v2917, %v2913
    %v3014 = vpack.c.b16 %v2918, %v2914
    %v3015 = vpack.c.b16 %v2919, %v2915
    %v3016 = vpack.c.b16 %v2920, %v2916
    %v3017 = vpack.c.b16 %v2925, %v2921
    %v3018 = vpack.c.b16 %v2926, %v2922
    %v3019 = vpack.c.b16 %v2927, %v2923
    %v3020 = vpack.c.b16 %v2928, %v2924
    %v3021 = vpack.c.b16 %v2933, %v2929
    %v3022 = vpack.c.b16 %v2934, %v2930
    %v3023 = vpack.c.b16 %v2935, %v2931
    %v3024 = vpack.c.b16 %v2936, %v2932
    %v3025 = vpack.c.b16 %v2941, %v2937
    %v3026 = vpack.c.b16 %v2942, %v2938
    %v3027 = vpack.c.b16 %v2943, %v2939
    %v3028 = vpack.c.b16 %v2944, %v2940
    %v3029 = vpack.c.b16 %v2949, %v2945
    %v3030 = vpack.c.b16 %v2950, %v2946
    %v3031 = vpack.c.b16 %v2951, %v2947
    %v3032 = vpack.c.b16 %v2952, %v2948
    %v3033 = vpack.c.b16 %v2957, %v2953
    %v3034 = vpack.c.b16 %v2958, %v2954
    %v3035 = vpack.c.b16 %v2959, %v2955
    %v3036 = vpack.c.b16 %v2960, %v2956
    %v3037 = vpack.c.b16 %v2965, %v2961
    %v3038 = vpack.c.b16 %v2966, %v2962
    %v3039 = vpack.c.b16 %v2967, %v2963
    %v3040 = vpack.c.b16 %v2968, %v2964
    %v3041 = vpack.c.b16 %v2973, %v2969
    %v3042 = vpack.c.b16 %v2974, %v2970
    %v3043 = vpack.c.b16 %v2975, %v2971
    %v3044 = vpack.c.b16 %v2976, %v2972
    %v3045 = vpack.c.b16 %v2981, %v2977
    %v3046 = vpack.c.b16 %v2982, %v2978
    %v3047 = vpack.c.b16 %v2983, %v2979
    %v3048 = vpack.c.b16 %v2984, %v2980
    %3113 = vmatpush.bf16.msra.mxu0 %v3013
    %3114 = vmatpush.bf16.msra.mxu0 %v3009
    %3115 = vmatpush.bf16.msra.mxu0 %v3005
    %3116 = vmatpush.bf16.msra.mxu0 %v3001
    %3117 = vmatpush.bf16.msra.mxu0 %v2997
    %3118 = vmatpush.bf16.msra.mxu0 %v2993
    %3119 = vmatpush.bf16.msra.mxu0 %v2989
    %3120 = vmatpush.bf16.msra.mxu0 %v2985
    %3121 = vmatmul.bf16.gmra.mxu0 %v2717
    %v3122 = vpop.f32.mrf.mxu0
    %v3123 = vadd.f32 %v2785, %v3122
    %v3124 = vpop.f32.mrf.mxu0
    %v3125 = vadd.f32 %v2785, %v3124
    %3126 = vdwg.mxu0
    %3127 = vmatpush.bf16.msra.mxu0 %v3045
    %3128 = vmatpush.bf16.msra.mxu0 %v3041
    %3129 = vmatpush.bf16.msra.mxu0 %v3037
    %3130 = vmatpush.bf16.msra.mxu0 %v3033
    %3131 = vmatpush.bf16.msra.mxu0 %v3029
    %3132 = vmatpush.bf16.msra.mxu0 %v3025
    %3133 = vmatpush.bf16.msra.mxu0 %v3021
    %3134 = vmatpush.bf16.msra.mxu0 %v3017
    %3135 = vmatmul.bf16.gmra.mxu0 %v2718
    %v3136 = vpop.f32.mrf.mxu0
    %v3137 = vadd.f32 %v3123, %v3136
    %v3138 = vpop.f32.mrf.mxu0
    %v3139 = vadd.f32 %v3125, %v3138
    %3140 = vdwg.mxu0
    %3141 = vmatpush.bf16.msra.mxu0 %v3014
    %3142 = vmatpush.bf16.msra.mxu0 %v3010
    %3143 = vmatpush.bf16.msra.mxu0 %v3006
    %3144 = vmatpush.bf16.msra.mxu0 %v3002
    %3145 = vmatpush.bf16.msra.mxu0 %v2998
    %3146 = vmatpush.bf16.msra.mxu0 %v2994
    %3147 = vmatpush.bf16.msra.mxu0 %v2990
    %3148 = vmatpush.bf16.msra.mxu0 %v2986
    %3149 = vmatmul.bf16.gmra.mxu0 %v2717
    %v3150 = vpop.f32.mrf.mxu0
    %v3151 = vadd.f32 %v2786, %v3150
    %v3152 = vpop.f32.mrf.mxu0
    %v3153 = vadd.f32 %v2786, %v3152
    %3154 = vdwg.mxu0
    %3155 = vmatpush.bf16.msra.mxu0 %v3046
    %3156 = vmatpush.bf16.msra.mxu0 %v3042
    %3157 = vmatpush.bf16.msra.mxu0 %v3038
    %3158 = vmatpush.bf16.msra.mxu0 %v3034
    %3159 = vmatpush.bf16.msra.mxu0 %v3030
    %3160 = vmatpush.bf16.msra.mxu0 %v3026
    %3161 = vmatpush.bf16.msra.mxu0 %v3022
    %3162 = vmatpush.bf16.msra.mxu0 %v3018
    %3163 = vmatmul.bf16.gmra.mxu0 %v2718
    %v3164 = vpop.f32.mrf.mxu0
    %v3165 = vadd.f32 %v3151, %v3164
    %v3166 = vpop.f32.mrf.mxu0
    %v3167 = vadd.f32 %v3153, %v3166
    %3168 = vdwg.mxu0
    %3169 = vmatpush.bf16.msra.mxu0 %v3015
    %3170 = vmatpush.bf16.msra.mxu0 %v3011
    %3171 = vmatpush.bf16.msra.mxu0 %v3007
    %3172 = vmatpush.bf16.msra.mxu0 %v3003
    %3173 = vmatpush.bf16.msra.mxu0 %v2999
    %3174 = vmatpush.bf16.msra.mxu0 %v2995
    %3175 = vmatpush.bf16.msra.mxu0 %v2991
    %3176 = vmatpush.bf16.msra.mxu0 %v2987
    %3177 = vmatmul.bf16.gmra.mxu0 %v2717
    %v3178 = vpop.f32.mrf.mxu0
    %v3179 = vadd.f32 %v2787, %v3178
    %v3180 = vpop.f32.mrf.mxu0
    %v3181 = vadd.f32 %v2787, %v3180
    %3182 = vdwg.mxu0
    %3183 = vmatpush.bf16.msra.mxu0 %v3047
    %3184 = vmatpush.bf16.msra.mxu0 %v3043
    %3185 = vmatpush.bf16.msra.mxu0 %v3039
    %3186 = vmatpush.bf16.msra.mxu0 %v3035
    %3187 = vmatpush.bf16.msra.mxu0 %v3031
    %3188 = vmatpush.bf16.msra.mxu0 %v3027
    %3189 = vmatpush.bf16.msra.mxu0 %v3023
    %3190 = vmatpush.bf16.msra.mxu0 %v3019
    %3191 = vmatmul.bf16.gmra.mxu0 %v2718
    %v3192 = vpop.f32.mrf.mxu0
    %v3193 = vadd.f32 %v3179, %v3192
    %v3194 = vpop.f32.mrf.mxu0
    %v3195 = vadd.f32 %v3181, %v3194
    %3196 = vdwg.mxu0
    %3197 = vmatpush.bf16.msra.mxu0 %v3016
    %3198 = vmatpush.bf16.msra.mxu0 %v3012
    %3199 = vmatpush.bf16.msra.mxu0 %v3008
    %3200 = vmatpush.bf16.msra.mxu0 %v3004
    %3201 = vmatpush.bf16.msra.mxu0 %v3000
    %3202 = vmatpush.bf16.msra.mxu0 %v2996
    %3203 = vmatpush.bf16.msra.mxu0 %v2992
    %3204 = vmatpush.bf16.msra.mxu0 %v2988
    %3205 = vmatmul.bf16.gmra.mxu0 %v2717
    %v3206 = vpop.f32.mrf.mxu0
    %v3207 = vadd.f32 %v2788, %v3206
    %v3208 = vpop.f32.mrf.mxu0
    %v3209 = vadd.f32 %v2788, %v3208
    %3210 = vdwg.mxu0
    %3211 = vmatpush.bf16.msra.mxu0 %v3048
    %3212 = vmatpush.bf16.msra.mxu0 %v3044
    %3213 = vmatpush.bf16.msra.mxu0 %v3040
    %3214 = vmatpush.bf16.msra.mxu0 %v3036
    %3215 = vmatpush.bf16.msra.mxu0 %v3032
    %3216 = vmatpush.bf16.msra.mxu0 %v3028
    %3217 = vmatpush.bf16.msra.mxu0 %v3024
    %3218 = vmatpush.bf16.msra.mxu0 %v3020
    %3219 = vmatmul.bf16.gmra.mxu0 %v2718
    %v3220 = vpop.f32.mrf.mxu0
    %v3221 = vadd.f32 %v3207, %v3220
    %v3222 = vpop.f32.mrf.mxu0
    %v3223 = vadd.f32 %v3209, %v3222
    %3224 = vdwg.mxu0
    %v3225 = vmax.f32 %v3137, 0.0
    %v3226 = vmax.f32 %v3165, 0.0
    %v3227 = vmax.f32 %v3193, 0.0
    %v3228 = vmax.f32 %v3221, 0.0
    %v3229 = vmax.f32 %v3139, 0.0
    %v3230 = vmax.f32 %v3167, 0.0
    %v3231 = vmax.f32 %v3195, 0.0
    %v3232 = vmax.f32 %v3223, 0.0
    %v3233 = vpack.c.bf16 %v3229, %v3225
    %v3234 = vpack.c.bf16 %v3230, %v3226
    %v3235 = vpack.c.bf16 %v3231, %v3227
    %v3236 = vpack.c.bf16 %v3232, %v3228
    %v3237 = vld [vmem:[#allocation7] sm:$0xff]
    %v3238 = vld [vmem:[#allocation7 + $0x8] sm:$0xff]
    %v3239 = vld [vmem:[#allocation7 + $0x10] sm:$0xff]
    %v3240 = vld [vmem:[#allocation7 + $0x18] sm:$0xff]
    %v3241 = vld [vmem:[#allocation7 + $0x20] sm:$0xff]
    %v3242 = vld [vmem:[#allocation7 + $0x28] sm:$0xff]
    %v3243 = vld [vmem:[#allocation7 + $0x30] sm:$0xff]
    %v3244 = vld [vmem:[#allocation7 + $0x38] sm:$0xff]
    %v3245 = vld [vmem:[#allocation7 + $0x40] sm:$0xff]
    %v3246 = vld [vmem:[#allocation7 + $0x48] sm:$0xff]
    %v3247 = vld [vmem:[#allocation7 + $0x50] sm:$0xff]
    %v3248 = vld [vmem:[#allocation7 + $0x58] sm:$0xff]
    %v3249 = vld [vmem:[#allocation7 + $0x60] sm:$0xff]
    %v3250 = vld [vmem:[#allocation7 + $0x68] sm:$0xff]
    %v3251 = vld [vmem:[#allocation7 + $0x70] sm:$0xff]
    %v3252 = vld [vmem:[#allocation7 + $0x78] sm:$0xff]
    %v3253 = vld [vmem:[#allocation7 + $0x80] sm:$0xff]
    %v3254 = vld [vmem:[#allocation7 + $0x88] sm:$0xff]
    %v3255 = vld [vmem:[#allocation7 + $0x90] sm:$0xff]
    %v3256 = vld [vmem:[#allocation7 + $0x98] sm:$0xff]
    %v3257 = vld [vmem:[#allocation7 + $0xa0] sm:$0xff]
    %v3258 = vld [vmem:[#allocation7 + $0xa8] sm:$0xff]
    %v3259 = vld [vmem:[#allocation7 + $0xb0] sm:$0xff]
    %v3260 = vld [vmem:[#allocation7 + $0xb8] sm:$0xff]
    %v3261 = vld [vmem:[#allocation7 + $0xc0] sm:$0xff]
    %v3262 = vld [vmem:[#allocation7 + $0xc8] sm:$0xff]
    %v3263 = vld [vmem:[#allocation7 + $0xd0] sm:$0xff]
    %v3264 = vld [vmem:[#allocation7 + $0xd8] sm:$0xff]
    %v3265 = vld [vmem:[#allocation7 + $0xe0] sm:$0xff]
    %v3266 = vld [vmem:[#allocation7 + $0xe8] sm:$0xff]
    %v3267 = vld [vmem:[#allocation7 + $0xf0] sm:$0xff]
    %v3268 = vld [vmem:[#allocation7 + $0xf8] sm:$0xff]
    %v3269 = vld [vmem:[#allocation7 + $0x100] sm:$0xff]
    %v3270 = vld [vmem:[#allocation7 + $0x108] sm:$0xff]
    %v3271 = vld [vmem:[#allocation7 + $0x110] sm:$0xff]
    %v3272 = vld [vmem:[#allocation7 + $0x118] sm:$0xff]
    %v3273 = vld [vmem:[#allocation7 + $0x120] sm:$0xff]
    %v3274 = vld [vmem:[#allocation7 + $0x128] sm:$0xff]
    %v3275 = vld [vmem:[#allocation7 + $0x130] sm:$0xff]
    %v3276 = vld [vmem:[#allocation7 + $0x138] sm:$0xff]
    %v3277 = vld [vmem:[#allocation7 + $0x140] sm:$0xff]
    %v3278 = vld [vmem:[#allocation7 + $0x148] sm:$0xff]
    %v3279 = vld [vmem:[#allocation7 + $0x150] sm:$0xff]
    %v3280 = vld [vmem:[#allocation7 + $0x158] sm:$0xff]
    %v3281 = vld [vmem:[#allocation7 + $0x160] sm:$0xff]
    %v3282 = vld [vmem:[#allocation7 + $0x168] sm:$0xff]
    %v3283 = vld [vmem:[#allocation7 + $0x170] sm:$0xff]
    %v3284 = vld [vmem:[#allocation7 + $0x178] sm:$0xff]
    %v3285 = vld [vmem:[#allocation7 + $0x180] sm:$0xff]
    %v3286 = vld [vmem:[#allocation7 + $0x188] sm:$0xff]
    %v3287 = vld [vmem:[#allocation7 + $0x190] sm:$0xff]
    %v3288 = vld [vmem:[#allocation7 + $0x198] sm:$0xff]
    %v3289 = vld [vmem:[#allocation7 + $0x1a0] sm:$0xff]
    %v3290 = vld [vmem:[#allocation7 + $0x1a8] sm:$0xff]
    %v3291 = vld [vmem:[#allocation7 + $0x1b0] sm:$0xff]
    %v3292 = vld [vmem:[#allocation7 + $0x1b8] sm:$0xff]
    %v3293 = vld [vmem:[#allocation7 + $0x1c0] sm:$0xff]
    %v3294 = vld [vmem:[#allocation7 + $0x1c8] sm:$0xff]
    %v3295 = vld [vmem:[#allocation7 + $0x1d0] sm:$0xff]
    %v3296 = vld [vmem:[#allocation7 + $0x1d8] sm:$0xff]
    %v3297 = vld [vmem:[#allocation7 + $0x1e0] sm:$0xff]
    %v3298 = vld [vmem:[#allocation7 + $0x1e8] sm:$0xff]
    %v3299 = vld [vmem:[#allocation7 + $0x1f0] sm:$0xff]
    %v3300 = vld [vmem:[#allocation7 + $0x1f8] sm:$0xff]
    %v3301 = vld [vmem:[#allocation7 + $0x200] sm:$0xff]
    %v3302 = vld [vmem:[#allocation7 + $0x208] sm:$0xff]
    %v3303 = vld [vmem:[#allocation7 + $0x210] sm:$0xff]
    %v3304 = vld [vmem:[#allocation7 + $0x218] sm:$0xff]
    %v3305 = vld [vmem:[#allocation7 + $0x220] sm:$0xff]
    %v3306 = vld [vmem:[#allocation7 + $0x228] sm:$0xff]
    %v3307 = vld [vmem:[#allocation7 + $0x230] sm:$0xff]
    %v3308 = vld [vmem:[#allocation7 + $0x238] sm:$0xff]
    %v3309 = vld [vmem:[#allocation7 + $0x240] sm:$0xff]
    %v3310 = vld [vmem:[#allocation7 + $0x248] sm:$0xff]
    %v3311 = vld [vmem:[#allocation7 + $0x250] sm:$0xff]
    %v3312 = vld [vmem:[#allocation7 + $0x258] sm:$0xff]
    %v3313 = vld [vmem:[#allocation7 + $0x260] sm:$0xff]
    %v3314 = vld [vmem:[#allocation7 + $0x268] sm:$0xff]
    %v3315 = vld [vmem:[#allocation7 + $0x270] sm:$0xff]
    %v3316 = vld [vmem:[#allocation7 + $0x278] sm:$0xff]
    %v3317 = vld [vmem:[#allocation7 + $0x280] sm:$0xff]
    %v3318 = vld [vmem:[#allocation7 + $0x288] sm:$0xff]
    %v3319 = vld [vmem:[#allocation7 + $0x290] sm:$0xff]
    %v3320 = vld [vmem:[#allocation7 + $0x298] sm:$0xff]
    %v3321 = vld [vmem:[#allocation7 + $0x2a0] sm:$0xff]
    %v3322 = vld [vmem:[#allocation7 + $0x2a8] sm:$0xff]
    %v3323 = vld [vmem:[#allocation7 + $0x2b0] sm:$0xff]
    %v3324 = vld [vmem:[#allocation7 + $0x2b8] sm:$0xff]
    %v3325 = vld [vmem:[#allocation7 + $0x2c0] sm:$0xff]
    %v3326 = vld [vmem:[#allocation7 + $0x2c8] sm:$0xff]
    %v3327 = vld [vmem:[#allocation7 + $0x2d0] sm:$0xff]
    %v3328 = vld [vmem:[#allocation7 + $0x2d8] sm:$0xff]
    %v3329 = vld [vmem:[#allocation7 + $0x2e0] sm:$0xff]
    %v3330 = vld [vmem:[#allocation7 + $0x2e8] sm:$0xff]
    %v3331 = vld [vmem:[#allocation7 + $0x2f0] sm:$0xff]
    %v3332 = vld [vmem:[#allocation7 + $0x2f8] sm:$0xff]
    %v3333 = vld [vmem:[#allocation7 + $0x300] sm:$0xff]
    %v3334 = vld [vmem:[#allocation7 + $0x308] sm:$0xff]
    %v3335 = vld [vmem:[#allocation7 + $0x310] sm:$0xff]
    %v3336 = vld [vmem:[#allocation7 + $0x318] sm:$0xff]
    %v3337 = vld [vmem:[#allocation7 + $0x320] sm:$0xff]
    %v3338 = vld [vmem:[#allocation7 + $0x328] sm:$0xff]
    %v3339 = vld [vmem:[#allocation7 + $0x330] sm:$0xff]
    %v3340 = vld [vmem:[#allocation7 + $0x338] sm:$0xff]
    %v3341 = vld [vmem:[#allocation7 + $0x340] sm:$0xff]
    %v3342 = vld [vmem:[#allocation7 + $0x348] sm:$0xff]
    %v3343 = vld [vmem:[#allocation7 + $0x350] sm:$0xff]
    %v3344 = vld [vmem:[#allocation7 + $0x358] sm:$0xff]
    %v3345 = vld [vmem:[#allocation7 + $0x360] sm:$0xff]
    %v3346 = vld [vmem:[#allocation7 + $0x368] sm:$0xff]
    %v3347 = vld [vmem:[#allocation7 + $0x370] sm:$0xff]
    %v3348 = vld [vmem:[#allocation7 + $0x378] sm:$0xff]
    %v3349 = vld [vmem:[#allocation7 + $0x380] sm:$0xff]
    %v3350 = vld [vmem:[#allocation7 + $0x388] sm:$0xff]
    %v3351 = vld [vmem:[#allocation7 + $0x390] sm:$0xff]
    %v3352 = vld [vmem:[#allocation7 + $0x398] sm:$0xff]
    %v3353 = vld [vmem:[#allocation7 + $0x3a0] sm:$0xff]
    %v3354 = vld [vmem:[#allocation7 + $0x3a8] sm:$0xff]
    %v3355 = vld [vmem:[#allocation7 + $0x3b0] sm:$0xff]
    %v3356 = vld [vmem:[#allocation7 + $0x3b8] sm:$0xff]
    %v3357 = vld [vmem:[#allocation7 + $0x3c0] sm:$0xff]
    %v3358 = vld [vmem:[#allocation7 + $0x3c8] sm:$0xff]
    %v3359 = vld [vmem:[#allocation7 + $0x3d0] sm:$0xff]
    %v3360 = vld [vmem:[#allocation7 + $0x3d8] sm:$0xff]
    %v3361 = vld [vmem:[#allocation7 + $0x3e0] sm:$0xff]
    %v3362 = vld [vmem:[#allocation7 + $0x3e8] sm:$0xff]
    %v3363 = vld [vmem:[#allocation7 + $0x3f0] sm:$0xff]
    %v3364 = vld [vmem:[#allocation7 + $0x3f8] sm:$0xff]
    %v3365 = vld [vmem:[#allocation7 + $0x400] sm:$0xff]
    %v3366 = vld [vmem:[#allocation7 + $0x408] sm:$0xff]
    %v3367 = vld [vmem:[#allocation7 + $0x410] sm:$0xff]
    %v3368 = vld [vmem:[#allocation7 + $0x418] sm:$0xff]
    %v3369 = vld [vmem:[#allocation7 + $0x420] sm:$0xff]
    %v3370 = vld [vmem:[#allocation7 + $0x428] sm:$0xff]
    %v3371 = vld [vmem:[#allocation7 + $0x430] sm:$0xff]
    %v3372 = vld [vmem:[#allocation7 + $0x438] sm:$0xff]
    %v3373 = vld [vmem:[#allocation7 + $0x440] sm:$0xff]
    %v3374 = vld [vmem:[#allocation7 + $0x448] sm:$0xff]
    %v3375 = vld [vmem:[#allocation7 + $0x450] sm:$0xff]
    %v3376 = vld [vmem:[#allocation7 + $0x458] sm:$0xff]
    %v3377 = vld [vmem:[#allocation7 + $0x460] sm:$0xff]
    %v3378 = vld [vmem:[#allocation7 + $0x468] sm:$0xff]
    %v3379 = vld [vmem:[#allocation7 + $0x470] sm:$0xff]
    %v3380 = vld [vmem:[#allocation7 + $0x478] sm:$0xff]
    %v3381 = vld [vmem:[#allocation7 + $0x480] sm:$0xff]
    %v3382 = vld [vmem:[#allocation7 + $0x488] sm:$0xff]
    %v3383 = vld [vmem:[#allocation7 + $0x490] sm:$0xff]
    %v3384 = vld [vmem:[#allocation7 + $0x498] sm:$0xff]
    %v3385 = vld [vmem:[#allocation7 + $0x4a0] sm:$0xff]
    %v3386 = vld [vmem:[#allocation7 + $0x4a8] sm:$0xff]
    %v3387 = vld [vmem:[#allocation7 + $0x4b0] sm:$0xff]
    %v3388 = vld [vmem:[#allocation7 + $0x4b8] sm:$0xff]
    %v3389 = vld [vmem:[#allocation7 + $0x4c0] sm:$0xff]
    %v3390 = vld [vmem:[#allocation7 + $0x4c8] sm:$0xff]
    %v3391 = vld [vmem:[#allocation7 + $0x4d0] sm:$0xff]
    %v3392 = vld [vmem:[#allocation7 + $0x4d8] sm:$0xff]
    %v3393 = vld [vmem:[#allocation7 + $0x4e0] sm:$0xff]
    %v3394 = vld [vmem:[#allocation7 + $0x4e8] sm:$0xff]
    %v3395 = vld [vmem:[#allocation7 + $0x4f0] sm:$0xff]
    %v3396 = vld [vmem:[#allocation7 + $0x4f8] sm:$0xff]
    %v3397 = vld [vmem:[#allocation7 + $0x500] sm:$0xff]
    %v3398 = vld [vmem:[#allocation7 + $0x508] sm:$0xff]
    %v3399 = vld [vmem:[#allocation7 + $0x510] sm:$0xff]
    %v3400 = vld [vmem:[#allocation7 + $0x518] sm:$0xff]
    %v3401 = vld [vmem:[#allocation7 + $0x520] sm:$0xff]
    %v3402 = vld [vmem:[#allocation7 + $0x528] sm:$0xff]
    %v3403 = vld [vmem:[#allocation7 + $0x530] sm:$0xff]
    %v3404 = vld [vmem:[#allocation7 + $0x538] sm:$0xff]
    %v3405 = vld [vmem:[#allocation7 + $0x540] sm:$0xff]
    %v3406 = vld [vmem:[#allocation7 + $0x548] sm:$0xff]
    %v3407 = vld [vmem:[#allocation7 + $0x550] sm:$0xff]
    %v3408 = vld [vmem:[#allocation7 + $0x558] sm:$0xff]
    %v3409 = vld [vmem:[#allocation7 + $0x560] sm:$0xff]
    %v3410 = vld [vmem:[#allocation7 + $0x568] sm:$0xff]
    %v3411 = vld [vmem:[#allocation7 + $0x570] sm:$0xff]
    %v3412 = vld [vmem:[#allocation7 + $0x578] sm:$0xff]
    %v3413 = vld [vmem:[#allocation7 + $0x580] sm:$0xff]
    %v3414 = vld [vmem:[#allocation7 + $0x588] sm:$0xff]
    %v3415 = vld [vmem:[#allocation7 + $0x590] sm:$0xff]
    %v3416 = vld [vmem:[#allocation7 + $0x598] sm:$0xff]
    %v3417 = vld [vmem:[#allocation7 + $0x5a0] sm:$0xff]
    %v3418 = vld [vmem:[#allocation7 + $0x5a8] sm:$0xff]
    %v3419 = vld [vmem:[#allocation7 + $0x5b0] sm:$0xff]
    %v3420 = vld [vmem:[#allocation7 + $0x5b8] sm:$0xff]
    %v3421 = vld [vmem:[#allocation7 + $0x5c0] sm:$0xff]
    %v3422 = vld [vmem:[#allocation7 + $0x5c8] sm:$0xff]
    %v3423 = vld [vmem:[#allocation7 + $0x5d0] sm:$0xff]
    %v3424 = vld [vmem:[#allocation7 + $0x5d8] sm:$0xff]
    %v3425 = vld [vmem:[#allocation7 + $0x5e0] sm:$0xff]
    %v3426 = vld [vmem:[#allocation7 + $0x5e8] sm:$0xff]
    %v3427 = vld [vmem:[#allocation7 + $0x5f0] sm:$0xff]
    %v3428 = vld [vmem:[#allocation7 + $0x5f8] sm:$0xff]
    %v3429 = vld [vmem:[%s10 + $0xd] sm:$0x3f]
    %v3431 = vperm.slane %v3429, 0
    %v3432 = vperm.slane %v3429, 1
    %v3433 = vperm.slane %v3429, 2
    %v3434 = vperm.slane %v3429, 3
    %v3435 = vperm.slane %v3429, 4
    %v3436 = vperm.slane %v3429, 5
    %v3635 = vunpack.c.l.b16 %v3237
    %v3636 = vunpack.c.h.b16 %v3237
    %v3637 = vunpack.c.l.b16 %v3238
    %v3638 = vunpack.c.h.b16 %v3238
    %v3639 = vunpack.c.l.b16 %v3239
    %v3640 = vunpack.c.h.b16 %v3239
    %v3641 = vunpack.c.l.b16 %v3240
    %v3642 = vunpack.c.h.b16 %v3240
    %v3643 = vunpack.c.l.b16 %v3241
    %v3644 = vunpack.c.h.b16 %v3241
    %v3645 = vunpack.c.l.b16 %v3242
    %v3646 = vunpack.c.h.b16 %v3242
    %v3647 = vunpack.c.l.b16 %v3243
    %v3648 = vunpack.c.h.b16 %v3243
    %v3649 = vunpack.c.l.b16 %v3244
    %v3650 = vunpack.c.h.b16 %v3244
    %v3651 = vunpack.c.l.b16 %v3245
    %v3652 = vunpack.c.h.b16 %v3245
    %v3653 = vunpack.c.l.b16 %v3246
    %v3654 = vunpack.c.h.b16 %v3246
    %v3655 = vunpack.c.l.b16 %v3247
    %v3656 = vunpack.c.h.b16 %v3247
    %v3657 = vunpack.c.l.b16 %v3248
    %v3658 = vunpack.c.h.b16 %v3248
    %v3659 = vunpack.c.l.b16 %v3249
    %v3660 = vunpack.c.h.b16 %v3249
    %v3661 = vunpack.c.l.b16 %v3250
    %v3662 = vunpack.c.h.b16 %v3250
    %v3663 = vunpack.c.l.b16 %v3251
    %v3664 = vunpack.c.h.b16 %v3251
    %v3665 = vunpack.c.l.b16 %v3252
    %v3666 = vunpack.c.h.b16 %v3252
    %v3667 = vunpack.c.l.b16 %v3253
    %v3668 = vunpack.c.h.b16 %v3253
    %v3669 = vunpack.c.l.b16 %v3254
    %v3670 = vunpack.c.h.b16 %v3254
    %v3671 = vunpack.c.l.b16 %v3255
    %v3672 = vunpack.c.h.b16 %v3255
    %v3673 = vunpack.c.l.b16 %v3256
    %v3674 = vunpack.c.h.b16 %v3256
    %v3675 = vunpack.c.l.b16 %v3257
    %v3676 = vunpack.c.h.b16 %v3257
    %v3677 = vunpack.c.l.b16 %v3258
    %v3678 = vunpack.c.h.b16 %v3258
    %v3679 = vunpack.c.l.b16 %v3259
    %v3680 = vunpack.c.h.b16 %v3259
    %v3681 = vunpack.c.l.b16 %v3260
    %v3682 = vunpack.c.h.b16 %v3260
    %v3683 = vunpack.c.l.b16 %v3261
    %v3684 = vunpack.c.h.b16 %v3261
    %v3685 = vunpack.c.l.b16 %v3262
    %v3686 = vunpack.c.h.b16 %v3262
    %v3687 = vunpack.c.l.b16 %v3263
    %v3688 = vunpack.c.h.b16 %v3263
    %v3689 = vunpack.c.l.b16 %v3264
    %v3690 = vunpack.c.h.b16 %v3264
    %v3691 = vunpack.c.l.b16 %v3265
    %v3692 = vunpack.c.h.b16 %v3265
    %v3693 = vunpack.c.l.b16 %v3266
    %v3694 = vunpack.c.h.b16 %v3266
    %v3695 = vunpack.c.l.b16 %v3267
    %v3696 = vunpack.c.h.b16 %v3267
    %v3697 = vunpack.c.l.b16 %v3268
    %v3698 = vunpack.c.h.b16 %v3268
    %v3699 = vunpack.c.l.b16 %v3269
    %v3700 = vunpack.c.h.b16 %v3269
    %v3701 = vunpack.c.l.b16 %v3270
    %v3702 = vunpack.c.h.b16 %v3270
    %v3703 = vunpack.c.l.b16 %v3271
    %v3704 = vunpack.c.h.b16 %v3271
    %v3705 = vunpack.c.l.b16 %v3272
    %v3706 = vunpack.c.h.b16 %v3272
    %v3707 = vunpack.c.l.b16 %v3273
    %v3708 = vunpack.c.h.b16 %v3273
    %v3709 = vunpack.c.l.b16 %v3274
    %v3710 = vunpack.c.h.b16 %v3274
    %v3711 = vunpack.c.l.b16 %v3275
    %v3712 = vunpack.c.h.b16 %v3275
    %v3713 = vunpack.c.l.b16 %v3276
    %v3714 = vunpack.c.h.b16 %v3276
    %v3715 = vunpack.c.l.b16 %v3277
    %v3716 = vunpack.c.h.b16 %v3277
    %v3717 = vunpack.c.l.b16 %v3278
    %v3718 = vunpack.c.h.b16 %v3278
    %v3719 = vunpack.c.l.b16 %v3279
    %v3720 = vunpack.c.h.b16 %v3279
    %v3721 = vunpack.c.l.b16 %v3280
    %v3722 = vunpack.c.h.b16 %v3280
    %v3723 = vunpack.c.l.b16 %v3281
    %v3724 = vunpack.c.h.b16 %v3281
    %v3725 = vunpack.c.l.b16 %v3282
    %v3726 = vunpack.c.h.b16 %v3282
    %v3727 = vunpack.c.l.b16 %v3283
    %v3728 = vunpack.c.h.b16 %v3283
    %v3729 = vunpack.c.l.b16 %v3284
    %v3730 = vunpack.c.h.b16 %v3284
    %v3731 = vunpack.c.l.b16 %v3285
    %v3732 = vunpack.c.h.b16 %v3285
    %v3733 = vunpack.c.l.b16 %v3286
    %v3734 = vunpack.c.h.b16 %v3286
    %v3735 = vunpack.c.l.b16 %v3287
    %v3736 = vunpack.c.h.b16 %v3287
    %v3737 = vunpack.c.l.b16 %v3288
    %v3738 = vunpack.c.h.b16 %v3288
    %v3739 = vunpack.c.l.b16 %v3289
    %v3740 = vunpack.c.h.b16 %v3289
    %v3741 = vunpack.c.l.b16 %v3290
    %v3742 = vunpack.c.h.b16 %v3290
    %v3743 = vunpack.c.l.b16 %v3291
    %v3744 = vunpack.c.h.b16 %v3291
    %v3745 = vunpack.c.l.b16 %v3292
    %v3746 = vunpack.c.h.b16 %v3292
    %v3747 = vunpack.c.l.b16 %v3293
    %v3748 = vunpack.c.h.b16 %v3293
    %v3749 = vunpack.c.l.b16 %v3294
    %v3750 = vunpack.c.h.b16 %v3294
    %v3751 = vunpack.c.l.b16 %v3295
    %v3752 = vunpack.c.h.b16 %v3295
    %v3753 = vunpack.c.l.b16 %v3296
    %v3754 = vunpack.c.h.b16 %v3296
    %v3755 = vunpack.c.l.b16 %v3297
    %v3756 = vunpack.c.h.b16 %v3297
    %v3757 = vunpack.c.l.b16 %v3298
    %v3758 = vunpack.c.h.b16 %v3298
    %v3759 = vunpack.c.l.b16 %v3299
    %v3760 = vunpack.c.h.b16 %v3299
    %v3761 = vunpack.c.l.b16 %v3300
    %v3762 = vunpack.c.h.b16 %v3300
    %v3763 = vunpack.c.l.b16 %v3301
    %v3764 = vunpack.c.h.b16 %v3301
    %v3765 = vunpack.c.l.b16 %v3302
    %v3766 = vunpack.c.h.b16 %v3302
    %v3767 = vunpack.c.l.b16 %v3303
    %v3768 = vunpack.c.h.b16 %v3303
    %v3769 = vunpack.c.l.b16 %v3304
    %v3770 = vunpack.c.h.b16 %v3304
    %v3771 = vunpack.c.l.b16 %v3305
    %v3772 = vunpack.c.h.b16 %v3305
    %v3773 = vunpack.c.l.b16 %v3306
    %v3774 = vunpack.c.h.b16 %v3306
    %v3775 = vunpack.c.l.b16 %v3307
    %v3776 = vunpack.c.h.b16 %v3307
    %v3777 = vunpack.c.l.b16 %v3308
    %v3778 = vunpack.c.h.b16 %v3308
    %v3779 = vunpack.c.l.b16 %v3309
    %v3780 = vunpack.c.h.b16 %v3309
    %v3781 = vunpack.c.l.b16 %v3310
    %v3782 = vunpack.c.h.b16 %v3310
    %v3783 = vunpack.c.l.b16 %v3311
    %v3784 = vunpack.c.h.b16 %v3311
    %v3785 = vunpack.c.l.b16 %v3312
    %v3786 = vunpack.c.h.b16 %v3312
    %v3787 = vunpack.c.l.b16 %v3313
    %v3788 = vunpack.c.h.b16 %v3313
    %v3789 = vunpack.c.l.b16 %v3314
    %v3790 = vunpack.c.h.b16 %v3314
    %v3791 = vunpack.c.l.b16 %v3315
    %v3792 = vunpack.c.h.b16 %v3315
    %v3793 = vunpack.c.l.b16 %v3316
    %v3794 = vunpack.c.h.b16 %v3316
    %v3795 = vunpack.c.l.b16 %v3317
    %v3796 = vunpack.c.h.b16 %v3317
    %v3797 = vunpack.c.l.b16 %v3318
    %v3798 = vunpack.c.h.b16 %v3318
    %v3799 = vunpack.c.l.b16 %v3319
    %v3800 = vunpack.c.h.b16 %v3319
    %v3801 = vunpack.c.l.b16 %v3320
    %v3802 = vunpack.c.h.b16 %v3320
    %v3803 = vunpack.c.l.b16 %v3321
    %v3804 = vunpack.c.h.b16 %v3321
    %v3805 = vunpack.c.l.b16 %v3322
    %v3806 = vunpack.c.h.b16 %v3322
    %v3807 = vunpack.c.l.b16 %v3323
    %v3808 = vunpack.c.h.b16 %v3323
    %v3809 = vunpack.c.l.b16 %v3324
    %v3810 = vunpack.c.h.b16 %v3324
    %v3811 = vunpack.c.l.b16 %v3325
    %v3812 = vunpack.c.h.b16 %v3325
    %v3813 = vunpack.c.l.b16 %v3326
    %v3814 = vunpack.c.h.b16 %v3326
    %v3815 = vunpack.c.l.b16 %v3327
    %v3816 = vunpack.c.h.b16 %v3327
    %v3817 = vunpack.c.l.b16 %v3328
    %v3818 = vunpack.c.h.b16 %v3328
    %v3819 = vunpack.c.l.b16 %v3329
    %v3820 = vunpack.c.h.b16 %v3329
    %v3821 = vunpack.c.l.b16 %v3330
    %v3822 = vunpack.c.h.b16 %v3330
    %v3823 = vunpack.c.l.b16 %v3331
    %v3824 = vunpack.c.h.b16 %v3331
    %v3825 = vunpack.c.l.b16 %v3332
    %v3826 = vunpack.c.h.b16 %v3332
    %v3827 = vunpack.c.l.b16 %v3333
    %v3828 = vunpack.c.h.b16 %v3333
    %v3829 = vunpack.c.l.b16 %v3334
    %v3830 = vunpack.c.h.b16 %v3334
    %v3831 = vunpack.c.l.b16 %v3335
    %v3832 = vunpack.c.h.b16 %v3335
    %v3833 = vunpack.c.l.b16 %v3336
    %v3834 = vunpack.c.h.b16 %v3336
    %v3835 = vunpack.c.l.b16 %v3337
    %v3836 = vunpack.c.h.b16 %v3337
    %v3837 = vunpack.c.l.b16 %v3338
    %v3838 = vunpack.c.h.b16 %v3338
    %v3839 = vunpack.c.l.b16 %v3339
    %v3840 = vunpack.c.h.b16 %v3339
    %v3841 = vunpack.c.l.b16 %v3340
    %v3842 = vunpack.c.h.b16 %v3340
    %v3843 = vunpack.c.l.b16 %v3341
    %v3844 = vunpack.c.h.b16 %v3341
    %v3845 = vunpack.c.l.b16 %v3342
    %v3846 = vunpack.c.h.b16 %v3342
    %v3847 = vunpack.c.l.b16 %v3343
    %v3848 = vunpack.c.h.b16 %v3343
    %v3849 = vunpack.c.l.b16 %v3344
    %v3850 = vunpack.c.h.b16 %v3344
    %v3851 = vunpack.c.l.b16 %v3345
    %v3852 = vunpack.c.h.b16 %v3345
    %v3853 = vunpack.c.l.b16 %v3346
    %v3854 = vunpack.c.h.b16 %v3346
    %v3855 = vunpack.c.l.b16 %v3347
    %v3856 = vunpack.c.h.b16 %v3347
    %v3857 = vunpack.c.l.b16 %v3348
    %v3858 = vunpack.c.h.b16 %v3348
    %v3859 = vunpack.c.l.b16 %v3349
    %v3860 = vunpack.c.h.b16 %v3349
    %v3861 = vunpack.c.l.b16 %v3350
    %v3862 = vunpack.c.h.b16 %v3350
    %v3863 = vunpack.c.l.b16 %v3351
    %v3864 = vunpack.c.h.b16 %v3351
    %v3865 = vunpack.c.l.b16 %v3352
    %v3866 = vunpack.c.h.b16 %v3352
    %v3867 = vunpack.c.l.b16 %v3353
    %v3868 = vunpack.c.h.b16 %v3353
    %v3869 = vunpack.c.l.b16 %v3354
    %v3870 = vunpack.c.h.b16 %v3354
    %v3871 = vunpack.c.l.b16 %v3355
    %v3872 = vunpack.c.h.b16 %v3355
    %v3873 = vunpack.c.l.b16 %v3356
    %v3874 = vunpack.c.h.b16 %v3356
    %v3875 = vunpack.c.l.b16 %v3357
    %v3876 = vunpack.c.h.b16 %v3357
    %v3877 = vunpack.c.l.b16 %v3358
    %v3878 = vunpack.c.h.b16 %v3358
    %v3879 = vunpack.c.l.b16 %v3359
    %v3880 = vunpack.c.h.b16 %v3359
    %v3881 = vunpack.c.l.b16 %v3360
    %v3882 = vunpack.c.h.b16 %v3360
    %v3883 = vunpack.c.l.b16 %v3361
    %v3884 = vunpack.c.h.b16 %v3361
    %v3885 = vunpack.c.l.b16 %v3362
    %v3886 = vunpack.c.h.b16 %v3362
    %v3887 = vunpack.c.l.b16 %v3363
    %v3888 = vunpack.c.h.b16 %v3363
    %v3889 = vunpack.c.l.b16 %v3364
    %v3890 = vunpack.c.h.b16 %v3364
    %v3891 = vunpack.c.l.b16 %v3365
    %v3892 = vunpack.c.h.b16 %v3365
    %v3893 = vunpack.c.l.b16 %v3366
    %v3894 = vunpack.c.h.b16 %v3366
    %v3895 = vunpack.c.l.b16 %v3367
    %v3896 = vunpack.c.h.b16 %v3367
    %v3897 = vunpack.c.l.b16 %v3368
    %v3898 = vunpack.c.h.b16 %v3368
    %v3899 = vunpack.c.l.b16 %v3369
    %v3900 = vunpack.c.h.b16 %v3369
    %v3901 = vunpack.c.l.b16 %v3370
    %v3902 = vunpack.c.h.b16 %v3370
    %v3903 = vunpack.c.l.b16 %v3371
    %v3904 = vunpack.c.h.b16 %v3371
    %v3905 = vunpack.c.l.b16 %v3372
    %v3906 = vunpack.c.h.b16 %v3372
    %v3907 = vunpack.c.l.b16 %v3373
    %v3908 = vunpack.c.h.b16 %v3373
    %v3909 = vunpack.c.l.b16 %v3374
    %v3910 = vunpack.c.h.b16 %v3374
    %v3911 = vunpack.c.l.b16 %v3375
    %v3912 = vunpack.c.h.b16 %v3375
    %v3913 = vunpack.c.l.b16 %v3376
    %v3914 = vunpack.c.h.b16 %v3376
    %v3915 = vunpack.c.l.b16 %v3377
    %v3916 = vunpack.c.h.b16 %v3377
    %v3917 = vunpack.c.l.b16 %v3378
    %v3918 = vunpack.c.h.b16 %v3378
    %v3919 = vunpack.c.l.b16 %v3379
    %v3920 = vunpack.c.h.b16 %v3379
    %v3921 = vunpack.c.l.b16 %v3380
    %v3922 = vunpack.c.h.b16 %v3380
    %v3923 = vunpack.c.l.b16 %v3381
    %v3924 = vunpack.c.h.b16 %v3381
    %v3925 = vunpack.c.l.b16 %v3382
    %v3926 = vunpack.c.h.b16 %v3382
    %v3927 = vunpack.c.l.b16 %v3383
    %v3928 = vunpack.c.h.b16 %v3383
    %v3929 = vunpack.c.l.b16 %v3384
    %v3930 = vunpack.c.h.b16 %v3384
    %v3931 = vunpack.c.l.b16 %v3385
    %v3932 = vunpack.c.h.b16 %v3385
    %v3933 = vunpack.c.l.b16 %v3386
    %v3934 = vunpack.c.h.b16 %v3386
    %v3935 = vunpack.c.l.b16 %v3387
    %v3936 = vunpack.c.h.b16 %v3387
    %v3937 = vunpack.c.l.b16 %v3388
    %v3938 = vunpack.c.h.b16 %v3388
    %v3939 = vunpack.c.l.b16 %v3389
    %v3940 = vunpack.c.h.b16 %v3389
    %v3941 = vunpack.c.l.b16 %v3390
    %v3942 = vunpack.c.h.b16 %v3390
    %v3943 = vunpack.c.l.b16 %v3391
    %v3944 = vunpack.c.h.b16 %v3391
    %v3945 = vunpack.c.l.b16 %v3392
    %v3946 = vunpack.c.h.b16 %v3392
    %v3947 = vunpack.c.l.b16 %v3393
    %v3948 = vunpack.c.h.b16 %v3393
    %v3949 = vunpack.c.l.b16 %v3394
    %v3950 = vunpack.c.h.b16 %v3394
    %v3951 = vunpack.c.l.b16 %v3395
    %v3952 = vunpack.c.h.b16 %v3395
    %v3953 = vunpack.c.l.b16 %v3396
    %v3954 = vunpack.c.h.b16 %v3396
    %v3955 = vunpack.c.l.b16 %v3397
    %v3956 = vunpack.c.h.b16 %v3397
    %v3957 = vunpack.c.l.b16 %v3398
    %v3958 = vunpack.c.h.b16 %v3398
    %v3959 = vunpack.c.l.b16 %v3399
    %v3960 = vunpack.c.h.b16 %v3399
    %v3961 = vunpack.c.l.b16 %v3400
    %v3962 = vunpack.c.h.b16 %v3400
    %v3963 = vunpack.c.l.b16 %v3401
    %v3964 = vunpack.c.h.b16 %v3401
    %v3965 = vunpack.c.l.b16 %v3402
    %v3966 = vunpack.c.h.b16 %v3402
    %v3967 = vunpack.c.l.b16 %v3403
    %v3968 = vunpack.c.h.b16 %v3403
    %v3969 = vunpack.c.l.b16 %v3404
    %v3970 = vunpack.c.h.b16 %v3404
    %v3971 = vunpack.c.l.b16 %v3405
    %v3972 = vunpack.c.h.b16 %v3405
    %v3973 = vunpack.c.l.b16 %v3406
    %v3974 = vunpack.c.h.b16 %v3406
    %v3975 = vunpack.c.l.b16 %v3407
    %v3976 = vunpack.c.h.b16 %v3407
    %v3977 = vunpack.c.l.b16 %v3408
    %v3978 = vunpack.c.h.b16 %v3408
    %v3979 = vunpack.c.l.b16 %v3409
    %v3980 = vunpack.c.h.b16 %v3409
    %v3981 = vunpack.c.l.b16 %v3410
    %v3982 = vunpack.c.h.b16 %v3410
    %v3983 = vunpack.c.l.b16 %v3411
    %v3984 = vunpack.c.h.b16 %v3411
    %v3985 = vunpack.c.l.b16 %v3412
    %v3986 = vunpack.c.h.b16 %v3412
    %v3987 = vunpack.c.l.b16 %v3413
    %v3988 = vunpack.c.h.b16 %v3413
    %v3989 = vunpack.c.l.b16 %v3414
    %v3990 = vunpack.c.h.b16 %v3414
    %v3991 = vunpack.c.l.b16 %v3415
    %v3992 = vunpack.c.h.b16 %v3415
    %v3993 = vunpack.c.l.b16 %v3416
    %v3994 = vunpack.c.h.b16 %v3416
    %v3995 = vunpack.c.l.b16 %v3417
    %v3996 = vunpack.c.h.b16 %v3417
    %v3997 = vunpack.c.l.b16 %v3418
    %v3998 = vunpack.c.h.b16 %v3418
    %v3999 = vunpack.c.l.b16 %v3419
    %v4000 = vunpack.c.h.b16 %v3419
    %v4001 = vunpack.c.l.b16 %v3420
    %v4002 = vunpack.c.h.b16 %v3420
    %v4003 = vunpack.c.l.b16 %v3421
    %v4004 = vunpack.c.h.b16 %v3421
    %v4005 = vunpack.c.l.b16 %v3422
    %v4006 = vunpack.c.h.b16 %v3422
    %v4007 = vunpack.c.l.b16 %v3423
    %v4008 = vunpack.c.h.b16 %v3423
    %v4009 = vunpack.c.l.b16 %v3424
    %v4010 = vunpack.c.h.b16 %v3424
    %v4011 = vunpack.c.l.b16 %v3425
    %v4012 = vunpack.c.h.b16 %v3425
    %v4013 = vunpack.c.l.b16 %v3426
    %v4014 = vunpack.c.h.b16 %v3426
    %v4015 = vunpack.c.l.b16 %v3427
    %v4016 = vunpack.c.h.b16 %v3427
    %v4017 = vunpack.c.l.b16 %v3428
    %v4018 = vunpack.c.h.b16 %v3428
    %v4019 = vpack.c.b16 %v3641, %v3635
    %v4020 = vpack.c.b16 %v3642, %v3636
    %v4021 = vpack.c.b16 %v3643, %v3637
    %v4022 = vpack.c.b16 %v3644, %v3638
    %v4023 = vpack.c.b16 %v3645, %v3639
    %v4024 = vpack.c.b16 %v3646, %v3640
    %v4025 = vpack.c.b16 %v3653, %v3647
    %v4026 = vpack.c.b16 %v3654, %v3648
    %v4027 = vpack.c.b16 %v3655, %v3649
    %v4028 = vpack.c.b16 %v3656, %v3650
    %v4029 = vpack.c.b16 %v3657, %v3651
    %v4030 = vpack.c.b16 %v3658, %v3652
    %v4031 = vpack.c.b16 %v3665, %v3659
    %v4032 = vpack.c.b16 %v3666, %v3660
    %v4033 = vpack.c.b16 %v3667, %v3661
    %v4034 = vpack.c.b16 %v3668, %v3662
    %v4035 = vpack.c.b16 %v3669, %v3663
    %v4036 = vpack.c.b16 %v3670, %v3664
    %v4037 = vpack.c.b16 %v3677, %v3671
    %v4038 = vpack.c.b16 %v3678, %v3672
    %v4039 = vpack.c.b16 %v3679, %v3673
    %v4040 = vpack.c.b16 %v3680, %v3674
    %v4041 = vpack.c.b16 %v3681, %v3675
    %v4042 = vpack.c.b16 %v3682, %v3676
    %v4043 = vpack.c.b16 %v3689, %v3683
    %v4044 = vpack.c.b16 %v3690, %v3684
    %v4045 = vpack.c.b16 %v3691, %v3685
    %v4046 = vpack.c.b16 %v3692, %v3686
    %v4047 = vpack.c.b16 %v3693, %v3687
    %v4048 = vpack.c.b16 %v3694, %v3688
    %v4049 = vpack.c.b16 %v3701, %v3695
    %v4050 = vpack.c.b16 %v3702, %v3696
    %v4051 = vpack.c.b16 %v3703, %v3697
    %v4052 = vpack.c.b16 %v3704, %v3698
    %v4053 = vpack.c.b16 %v3705, %v3699
    %v4054 = vpack.c.b16 %v3706, %v3700
    %v4055 = vpack.c.b16 %v3713, %v3707
    %v4056 = vpack.c.b16 %v3714, %v3708
    %v4057 = vpack.c.b16 %v3715, %v3709
    %v4058 = vpack.c.b16 %v3716, %v3710
    %v4059 = vpack.c.b16 %v3717, %v3711
    %v4060 = vpack.c.b16 %v3718, %v3712
    %v4061 = vpack.c.b16 %v3725, %v3719
    %v4062 = vpack.c.b16 %v3726, %v3720
    %v4063 = vpack.c.b16 %v3727, %v3721
    %v4064 = vpack.c.b16 %v3728, %v3722
    %v4065 = vpack.c.b16 %v3729, %v3723
    %v4066 = vpack.c.b16 %v3730, %v3724
    %v4067 = vpack.c.b16 %v3737, %v3731
    %v4068 = vpack.c.b16 %v3738, %v3732
    %v4069 = vpack.c.b16 %v3739, %v3733
    %v4070 = vpack.c.b16 %v3740, %v3734
    %v4071 = vpack.c.b16 %v3741, %v3735
    %v4072 = vpack.c.b16 %v3742, %v3736
    %v4073 = vpack.c.b16 %v3749, %v3743
    %v4074 = vpack.c.b16 %v3750, %v3744
    %v4075 = vpack.c.b16 %v3751, %v3745
    %v4076 = vpack.c.b16 %v3752, %v3746
    %v4077 = vpack.c.b16 %v3753, %v3747
    %v4078 = vpack.c.b16 %v3754, %v3748
    %v4079 = vpack.c.b16 %v3761, %v3755
    %v4080 = vpack.c.b16 %v3762, %v3756
    %v4081 = vpack.c.b16 %v3763, %v3757
    %v4082 = vpack.c.b16 %v3764, %v3758
    %v4083 = vpack.c.b16 %v3765, %v3759
    %v4084 = vpack.c.b16 %v3766, %v3760
    %v4085 = vpack.c.b16 %v3773, %v3767
    %v4086 = vpack.c.b16 %v3774, %v3768
    %v4087 = vpack.c.b16 %v3775, %v3769
    %v4088 = vpack.c.b16 %v3776, %v3770
    %v4089 = vpack.c.b16 %v3777, %v3771
    %v4090 = vpack.c.b16 %v3778, %v3772
    %v4091 = vpack.c.b16 %v3785, %v3779
    %v4092 = vpack.c.b16 %v3786, %v3780
    %v4093 = vpack.c.b16 %v3787, %v3781
    %v4094 = vpack.c.b16 %v3788, %v3782
    %v4095 = vpack.c.b16 %v3789, %v3783
    %v4096 = vpack.c.b16 %v3790, %v3784
    %v4097 = vpack.c.b16 %v3797, %v3791
    %v4098 = vpack.c.b16 %v3798, %v3792
    %v4099 = vpack.c.b16 %v3799, %v3793
    %v4100 = vpack.c.b16 %v3800, %v3794
    %v4101 = vpack.c.b16 %v3801, %v3795
    %v4102 = vpack.c.b16 %v3802, %v3796
    %v4103 = vpack.c.b16 %v3809, %v3803
    %v4104 = vpack.c.b16 %v3810, %v3804
    %v4105 = vpack.c.b16 %v3811, %v3805
    %v4106 = vpack.c.b16 %v3812, %v3806
    %v4107 = vpack.c.b16 %v3813, %v3807
    %v4108 = vpack.c.b16 %v3814, %v3808
    %v4109 = vpack.c.b16 %v3821, %v3815
    %v4110 = vpack.c.b16 %v3822, %v3816
    %v4111 = vpack.c.b16 %v3823, %v3817
    %v4112 = vpack.c.b16 %v3824, %v3818
    %v4113 = vpack.c.b16 %v3825, %v3819
    %v4114 = vpack.c.b16 %v3826, %v3820
    %v4115 = vpack.c.b16 %v3833, %v3827
    %v4116 = vpack.c.b16 %v3834, %v3828
    %v4117 = vpack.c.b16 %v3835, %v3829
    %v4118 = vpack.c.b16 %v3836, %v3830
    %v4119 = vpack.c.b16 %v3837, %v3831
    %v4120 = vpack.c.b16 %v3838, %v3832
    %v4121 = vpack.c.b16 %v3845, %v3839
    %v4122 = vpack.c.b16 %v3846, %v3840
    %v4123 = vpack.c.b16 %v3847, %v3841
    %v4124 = vpack.c.b16 %v3848, %v3842
    %v4125 = vpack.c.b16 %v3849, %v3843
    %v4126 = vpack.c.b16 %v3850, %v3844
    %v4127 = vpack.c.b16 %v3857, %v3851
    %v4128 = vpack.c.b16 %v3858, %v3852
    %v4129 = vpack.c.b16 %v3859, %v3853
    %v4130 = vpack.c.b16 %v3860, %v3854
    %v4131 = vpack.c.b16 %v3861, %v3855
    %v4132 = vpack.c.b16 %v3862, %v3856
    %v4133 = vpack.c.b16 %v3869, %v3863
    %v4134 = vpack.c.b16 %v3870, %v3864
    %v4135 = vpack.c.b16 %v3871, %v3865
    %v4136 = vpack.c.b16 %v3872, %v3866
    %v4137 = vpack.c.b16 %v3873, %v3867
    %v4138 = vpack.c.b16 %v3874, %v3868
    %v4139 = vpack.c.b16 %v3881, %v3875
    %v4140 = vpack.c.b16 %v3882, %v3876
    %v4141 = vpack.c.b16 %v3883, %v3877
    %v4142 = vpack.c.b16 %v3884, %v3878
    %v4143 = vpack.c.b16 %v3885, %v3879
    %v4144 = vpack.c.b16 %v3886, %v3880
    %v4145 = vpack.c.b16 %v3893, %v3887
    %v4146 = vpack.c.b16 %v3894, %v3888
    %v4147 = vpack.c.b16 %v3895, %v3889
    %v4148 = vpack.c.b16 %v3896, %v3890
    %v4149 = vpack.c.b16 %v3897, %v3891
    %v4150 = vpack.c.b16 %v3898, %v3892
    %v4151 = vpack.c.b16 %v3905, %v3899
    %v4152 = vpack.c.b16 %v3906, %v3900
    %v4153 = vpack.c.b16 %v3907, %v3901
    %v4154 = vpack.c.b16 %v3908, %v3902
    %v4155 = vpack.c.b16 %v3909, %v3903
    %v4156 = vpack.c.b16 %v3910, %v3904
    %v4157 = vpack.c.b16 %v3917, %v3911
    %v4158 = vpack.c.b16 %v3918, %v3912
    %v4159 = vpack.c.b16 %v3919, %v3913
    %v4160 = vpack.c.b16 %v3920, %v3914
    %v4161 = vpack.c.b16 %v3921, %v3915
    %v4162 = vpack.c.b16 %v3922, %v3916
    %v4163 = vpack.c.b16 %v3929, %v3923
    %v4164 = vpack.c.b16 %v3930, %v3924
    %v4165 = vpack.c.b16 %v3931, %v3925
    %v4166 = vpack.c.b16 %v3932, %v3926
    %v4167 = vpack.c.b16 %v3933, %v3927
    %v4168 = vpack.c.b16 %v3934, %v3928
    %v4169 = vpack.c.b16 %v3941, %v3935
    %v4170 = vpack.c.b16 %v3942, %v3936
    %v4171 = vpack.c.b16 %v3943, %v3937
    %v4172 = vpack.c.b16 %v3944, %v3938
    %v4173 = vpack.c.b16 %v3945, %v3939
    %v4174 = vpack.c.b16 %v3946, %v3940
    %v4175 = vpack.c.b16 %v3953, %v3947
    %v4176 = vpack.c.b16 %v3954, %v3948
    %v4177 = vpack.c.b16 %v3955, %v3949
    %v4178 = vpack.c.b16 %v3956, %v3950
    %v4179 = vpack.c.b16 %v3957, %v3951
    %v4180 = vpack.c.b16 %v3958, %v3952
    %v4181 = vpack.c.b16 %v3965, %v3959
    %v4182 = vpack.c.b16 %v3966, %v3960
    %v4183 = vpack.c.b16 %v3967, %v3961
    %v4184 = vpack.c.b16 %v3968, %v3962
    %v4185 = vpack.c.b16 %v3969, %v3963
    %v4186 = vpack.c.b16 %v3970, %v3964
    %v4187 = vpack.c.b16 %v3977, %v3971
    %v4188 = vpack.c.b16 %v3978, %v3972
    %v4189 = vpack.c.b16 %v3979, %v3973
    %v4190 = vpack.c.b16 %v3980, %v3974
    %v4191 = vpack.c.b16 %v3981, %v3975
    %v4192 = vpack.c.b16 %v3982, %v3976
    %v4193 = vpack.c.b16 %v3989, %v3983
    %v4194 = vpack.c.b16 %v3990, %v3984
    %v4195 = vpack.c.b16 %v3991, %v3985
    %v4196 = vpack.c.b16 %v3992, %v3986
    %v4197 = vpack.c.b16 %v3993, %v3987
    %v4198 = vpack.c.b16 %v3994, %v3988
    %v4199 = vpack.c.b16 %v4001, %v3995
    %v4200 = vpack.c.b16 %v4002, %v3996
    %v4201 = vpack.c.b16 %v4003, %v3997
    %v4202 = vpack.c.b16 %v4004, %v3998
    %v4203 = vpack.c.b16 %v4005, %v3999
    %v4204 = vpack.c.b16 %v4006, %v4000
    %v4205 = vpack.c.b16 %v4013, %v4007
    %v4206 = vpack.c.b16 %v4014, %v4008
    %v4207 = vpack.c.b16 %v4015, %v4009
    %v4208 = vpack.c.b16 %v4016, %v4010
    %v4209 = vpack.c.b16 %v4017, %v4011
    %v4210 = vpack.c.b16 %v4018, %v4012
    %4403 = vmatpush.bf16.msra.mxu0 %v4061
    %4404 = vmatpush.bf16.msra.mxu0 %v4055
    %4405 = vmatpush.bf16.msra.mxu0 %v4049
    %4406 = vmatpush.bf16.msra.mxu0 %v4043
    %4407 = vmatpush.bf16.msra.mxu0 %v4037
    %4408 = vmatpush.bf16.msra.mxu0 %v4031
    %4409 = vmatpush.bf16.msra.mxu0 %v4025
    %4410 = vmatpush.bf16.msra.mxu0 %v4019
    %4411 = vmatmul.bf16.gmra.mxu0 %v3233
    %v4412 = vpop.f32.mrf.mxu0
    %v4413 = vadd.f32 %v3431, %v4412
    %v4414 = vpop.f32.mrf.mxu0
    %v4415 = vadd.f32 %v3431, %v4414
    %4416 = vdwg.mxu0
    %4417 = vmatpush.bf16.msra.mxu0 %v4109
    %4418 = vmatpush.bf16.msra.mxu0 %v4103
    %4419 = vmatpush.bf16.msra.mxu0 %v4097
    %4420 = vmatpush.bf16.msra.mxu0 %v4091
    %4421 = vmatpush.bf16.msra.mxu0 %v4085
    %4422 = vmatpush.bf16.msra.mxu0 %v4079
    %4423 = vmatpush.bf16.msra.mxu0 %v4073
    %4424 = vmatpush.bf16.msra.mxu0 %v4067
    %4425 = vmatmul.bf16.gmra.mxu0 %v3234
    %v4426 = vpop.f32.mrf.mxu0
    %v4427 = vadd.f32 %v4413, %v4426
    %v4428 = vpop.f32.mrf.mxu0
    %v4429 = vadd.f32 %v4415, %v4428
    %4430 = vdwg.mxu0
    %4431 = vmatpush.bf16.msra.mxu0 %v4157
    %4432 = vmatpush.bf16.msra.mxu0 %v4151
    %4433 = vmatpush.bf16.msra.mxu0 %v4145
    %4434 = vmatpush.bf16.msra.mxu0 %v4139
    %4435 = vmatpush.bf16.msra.mxu0 %v4133
    %4436 = vmatpush.bf16.msra.mxu0 %v4127
    %4437 = vmatpush.bf16.msra.mxu0 %v4121
    %4438 = vmatpush.bf16.msra.mxu0 %v4115
    %4439 = vmatmul.bf16.gmra.mxu0 %v3235
    %v4440 = vpop.f32.mrf.mxu0
    %v4441 = vadd.f32 %v4427, %v4440
    %v4442 = vpop.f32.mrf.mxu0
    %v4443 = vadd.f32 %v4429, %v4442
    %4444 = vdwg.mxu0
    %4445 = vmatpush.bf16.msra.mxu0 %v4205
    %4446 = vmatpush.bf16.msra.mxu0 %v4199
    %4447 = vmatpush.bf16.msra.mxu0 %v4193
    %4448 = vmatpush.bf16.msra.mxu0 %v4187
    %4449 = vmatpush.bf16.msra.mxu0 %v4181
    %4450 = vmatpush.bf16.msra.mxu0 %v4175
    %4451 = vmatpush.bf16.msra.mxu0 %v4169
    %4452 = vmatpush.bf16.msra.mxu0 %v4163
    %4453 = vmatmul.bf16.gmra.mxu0 %v3236
    %v4454 = vpop.f32.mrf.mxu0
    %v4455 = vadd.f32 %v4441, %v4454
    %v4456 = vpop.f32.mrf.mxu0
    %v4457 = vadd.f32 %v4443, %v4456
    %4458 = vdwg.mxu0
    %4459 = vmatpush.bf16.msra.mxu0 %v4062
    %4460 = vmatpush.bf16.msra.mxu0 %v4056
    %4461 = vmatpush.bf16.msra.mxu0 %v4050
    %4462 = vmatpush.bf16.msra.mxu0 %v4044
    %4463 = vmatpush.bf16.msra.mxu0 %v4038
    %4464 = vmatpush.bf16.msra.mxu0 %v4032
    %4465 = vmatpush.bf16.msra.mxu0 %v4026
    %4466 = vmatpush.bf16.msra.mxu0 %v4020
    %4467 = vmatmul.bf16.gmra.mxu0 %v3233
    %v4468 = vpop.f32.mrf.mxu0
    %v4469 = vadd.f32 %v3432, %v4468
    %v4470 = vpop.f32.mrf.mxu0
    %v4471 = vadd.f32 %v3432, %v4470
    %4472 = vdwg.mxu0
    %4473 = vmatpush.bf16.msra.mxu0 %v4110
    %4474 = vmatpush.bf16.msra.mxu0 %v4104
    %4475 = vmatpush.bf16.msra.mxu0 %v4098
    %4476 = vmatpush.bf16.msra.mxu0 %v4092
    %4477 = vmatpush.bf16.msra.mxu0 %v4086
    %4478 = vmatpush.bf16.msra.mxu0 %v4080
    %4479 = vmatpush.bf16.msra.mxu0 %v4074
    %4480 = vmatpush.bf16.msra.mxu0 %v4068
    %4481 = vmatmul.bf16.gmra.mxu0 %v3234
    %v4482 = vpop.f32.mrf.mxu0
    %v4483 = vadd.f32 %v4469, %v4482
    %v4484 = vpop.f32.mrf.mxu0
    %v4485 = vadd.f32 %v4471, %v4484
    %4486 = vdwg.mxu0
    %4487 = vmatpush.bf16.msra.mxu0 %v4158
    %4488 = vmatpush.bf16.msra.mxu0 %v4152
    %4489 = vmatpush.bf16.msra.mxu0 %v4146
    %4490 = vmatpush.bf16.msra.mxu0 %v4140
    %4491 = vmatpush.bf16.msra.mxu0 %v4134
    %4492 = vmatpush.bf16.msra.mxu0 %v4128
    %4493 = vmatpush.bf16.msra.mxu0 %v4122
    %4494 = vmatpush.bf16.msra.mxu0 %v4116
    %4495 = vmatmul.bf16.gmra.mxu0 %v3235
    %v4496 = vpop.f32.mrf.mxu0
    %v4497 = vadd.f32 %v4483, %v4496
    %v4498 = vpop.f32.mrf.mxu0
    %v4499 = vadd.f32 %v4485, %v4498
    %4500 = vdwg.mxu0
    %4501 = vmatpush.bf16.msra.mxu0 %v4206
    %4502 = vmatpush.bf16.msra.mxu0 %v4200
    %4503 = vmatpush.bf16.msra.mxu0 %v4194
    %4504 = vmatpush.bf16.msra.mxu0 %v4188
    %4505 = vmatpush.bf16.msra.mxu0 %v4182
    %4506 = vmatpush.bf16.msra.mxu0 %v4176
    %4507 = vmatpush.bf16.msra.mxu0 %v4170
    %4508 = vmatpush.bf16.msra.mxu0 %v4164
    %4509 = vmatmul.bf16.gmra.mxu0 %v3236
    %v4510 = vpop.f32.mrf.mxu0
    %v4511 = vadd.f32 %v4497, %v4510
    %v4512 = vpop.f32.mrf.mxu0
    %v4513 = vadd.f32 %v4499, %v4512
    %4514 = vdwg.mxu0
    %4515 = vmatpush.bf16.msra.mxu0 %v4063
    %4516 = vmatpush.bf16.msra.mxu0 %v4057
    %4517 = vmatpush.bf16.msra.mxu0 %v4051
    %4518 = vmatpush.bf16.msra.mxu0 %v4045
    %4519 = vmatpush.bf16.msra.mxu0 %v4039
    %4520 = vmatpush.bf16.msra.mxu0 %v4033
    %4521 = vmatpush.bf16.msra.mxu0 %v4027
    %4522 = vmatpush.bf16.msra.mxu0 %v4021
    %4523 = vmatmul.bf16.gmra.mxu0 %v3233
    %v4524 = vpop.f32.mrf.mxu0
    %v4525 = vadd.f32 %v3433, %v4524
    %v4526 = vpop.f32.mrf.mxu0
    %v4527 = vadd.f32 %v3433, %v4526
    %4528 = vdwg.mxu0
    %4529 = vmatpush.bf16.msra.mxu0 %v4111
    %4530 = vmatpush.bf16.msra.mxu0 %v4105
    %4531 = vmatpush.bf16.msra.mxu0 %v4099
    %4532 = vmatpush.bf16.msra.mxu0 %v4093
    %4533 = vmatpush.bf16.msra.mxu0 %v4087
    %4534 = vmatpush.bf16.msra.mxu0 %v4081
    %4535 = vmatpush.bf16.msra.mxu0 %v4075
    %4536 = vmatpush.bf16.msra.mxu0 %v4069
    %4537 = vmatmul.bf16.gmra.mxu0 %v3234
    %v4538 = vpop.f32.mrf.mxu0
    %v4539 = vadd.f32 %v4525, %v4538
    %v4540 = vpop.f32.mrf.mxu0
    %v4541 = vadd.f32 %v4527, %v4540
    %4542 = vdwg.mxu0
    %4543 = vmatpush.bf16.msra.mxu0 %v4159
    %4544 = vmatpush.bf16.msra.mxu0 %v4153
    %4545 = vmatpush.bf16.msra.mxu0 %v4147
    %4546 = vmatpush.bf16.msra.mxu0 %v4141
    %4547 = vmatpush.bf16.msra.mxu0 %v4135
    %4548 = vmatpush.bf16.msra.mxu0 %v4129
    %4549 = vmatpush.bf16.msra.mxu0 %v4123
    %4550 = vmatpush.bf16.msra.mxu0 %v4117
    %4551 = vmatmul.bf16.gmra.mxu0 %v3235
    %v4552 = vpop.f32.mrf.mxu0
    %v4553 = vadd.f32 %v4539, %v4552
    %v4554 = vpop.f32.mrf.mxu0
    %v4555 = vadd.f32 %v4541, %v4554
    %4556 = vdwg.mxu0
    %4557 = vmatpush.bf16.msra.mxu0 %v4207
    %4558 = vmatpush.bf16.msra.mxu0 %v4201
    %4559 = vmatpush.bf16.msra.mxu0 %v4195
    %4560 = vmatpush.bf16.msra.mxu0 %v4189
    %4561 = vmatpush.bf16.msra.mxu0 %v4183
    %4562 = vmatpush.bf16.msra.mxu0 %v4177
    %4563 = vmatpush.bf16.msra.mxu0 %v4171
    %4564 = vmatpush.bf16.msra.mxu0 %v4165
    %4565 = vmatmul.bf16.gmra.mxu0 %v3236
    %v4566 = vpop.f32.mrf.mxu0
    %v4567 = vadd.f32 %v4553, %v4566
    %v4568 = vpop.f32.mrf.mxu0
    %v4569 = vadd.f32 %v4555, %v4568
    %4570 = vdwg.mxu0
    %4571 = vmatpush.bf16.msra.mxu0 %v4064
    %4572 = vmatpush.bf16.msra.mxu0 %v4058
    %4573 = vmatpush.bf16.msra.mxu0 %v4052
    %4574 = vmatpush.bf16.msra.mxu0 %v4046
    %4575 = vmatpush.bf16.msra.mxu0 %v4040
    %4576 = vmatpush.bf16.msra.mxu0 %v4034
    %4577 = vmatpush.bf16.msra.mxu0 %v4028
    %4578 = vmatpush.bf16.msra.mxu0 %v4022
    %4579 = vmatmul.bf16.gmra.mxu0 %v3233
    %v4580 = vpop.f32.mrf.mxu0
    %v4581 = vadd.f32 %v3434, %v4580
    %v4582 = vpop.f32.mrf.mxu0
    %v4583 = vadd.f32 %v3434, %v4582
    %4584 = vdwg.mxu0
    %4585 = vmatpush.bf16.msra.mxu0 %v4112
    %4586 = vmatpush.bf16.msra.mxu0 %v4106
    %4587 = vmatpush.bf16.msra.mxu0 %v4100
    %4588 = vmatpush.bf16.msra.mxu0 %v4094
    %4589 = vmatpush.bf16.msra.mxu0 %v4088
    %4590 = vmatpush.bf16.msra.mxu0 %v4082
    %4591 = vmatpush.bf16.msra.mxu0 %v4076
    %4592 = vmatpush.bf16.msra.mxu0 %v4070
    %4593 = vmatmul.bf16.gmra.mxu0 %v3234
    %v4594 = vpop.f32.mrf.mxu0
    %v4595 = vadd.f32 %v4581, %v4594
    %v4596 = vpop.f32.mrf.mxu0
    %v4597 = vadd.f32 %v4583, %v4596
    %4598 = vdwg.mxu0
    %4599 = vmatpush.bf16.msra.mxu0 %v4160
    %4600 = vmatpush.bf16.msra.mxu0 %v4154
    %4601 = vmatpush.bf16.msra.mxu0 %v4148
    %4602 = vmatpush.bf16.msra.mxu0 %v4142
    %4603 = vmatpush.bf16.msra.mxu0 %v4136
    %4604 = vmatpush.bf16.msra.mxu0 %v4130
    %4605 = vmatpush.bf16.msra.mxu0 %v4124
    %4606 = vmatpush.bf16.msra.mxu0 %v4118
    %4607 = vmatmul.bf16.gmra.mxu0 %v3235
    %v4608 = vpop.f32.mrf.mxu0
    %v4609 = vadd.f32 %v4595, %v4608
    %v4610 = vpop.f32.mrf.mxu0
    %v4611 = vadd.f32 %v4597, %v4610
    %4612 = vdwg.mxu0
    %4613 = vmatpush.bf16.msra.mxu0 %v4208
    %4614 = vmatpush.bf16.msra.mxu0 %v4202
    %4615 = vmatpush.bf16.msra.mxu0 %v4196
    %4616 = vmatpush.bf16.msra.mxu0 %v4190
    %4617 = vmatpush.bf16.msra.mxu0 %v4184
    %4618 = vmatpush.bf16.msra.mxu0 %v4178
    %4619 = vmatpush.bf16.msra.mxu0 %v4172
    %4620 = vmatpush.bf16.msra.mxu0 %v4166
    %4621 = vmatmul.bf16.gmra.mxu0 %v3236
    %v4622 = vpop.f32.mrf.mxu0
    %v4623 = vadd.f32 %v4609, %v4622
    %v4624 = vpop.f32.mrf.mxu0
    %v4625 = vadd.f32 %v4611, %v4624
    %4626 = vdwg.mxu0
    %4627 = vmatpush.bf16.msra.mxu0 %v4065
    %4628 = vmatpush.bf16.msra.mxu0 %v4059
    %4629 = vmatpush.bf16.msra.mxu0 %v4053
    %4630 = vmatpush.bf16.msra.mxu0 %v4047
    %4631 = vmatpush.bf16.msra.mxu0 %v4041
    %4632 = vmatpush.bf16.msra.mxu0 %v4035
    %4633 = vmatpush.bf16.msra.mxu0 %v4029
    %4634 = vmatpush.bf16.msra.mxu0 %v4023
    %4635 = vmatmul.bf16.gmra.mxu0 %v3233
    %v4636 = vpop.f32.mrf.mxu0
    %v4637 = vadd.f32 %v3435, %v4636
    %v4638 = vpop.f32.mrf.mxu0
    %v4639 = vadd.f32 %v3435, %v4638
    %4640 = vdwg.mxu0
    %4641 = vmatpush.bf16.msra.mxu0 %v4113
    %4642 = vmatpush.bf16.msra.mxu0 %v4107
    %4643 = vmatpush.bf16.msra.mxu0 %v4101
    %4644 = vmatpush.bf16.msra.mxu0 %v4095
    %4645 = vmatpush.bf16.msra.mxu0 %v4089
    %4646 = vmatpush.bf16.msra.mxu0 %v4083
    %4647 = vmatpush.bf16.msra.mxu0 %v4077
    %4648 = vmatpush.bf16.msra.mxu0 %v4071
    %4649 = vmatmul.bf16.gmra.mxu0 %v3234
    %v4650 = vpop.f32.mrf.mxu0
    %v4651 = vadd.f32 %v4637, %v4650
    %v4652 = vpop.f32.mrf.mxu0
    %v4653 = vadd.f32 %v4639, %v4652
    %4654 = vdwg.mxu0
    %4655 = vmatpush.bf16.msra.mxu0 %v4161
    %4656 = vmatpush.bf16.msra.mxu0 %v4155
    %4657 = vmatpush.bf16.msra.mxu0 %v4149
    %4658 = vmatpush.bf16.msra.mxu0 %v4143
    %4659 = vmatpush.bf16.msra.mxu0 %v4137
    %4660 = vmatpush.bf16.msra.mxu0 %v4131
    %4661 = vmatpush.bf16.msra.mxu0 %v4125
    %4662 = vmatpush.bf16.msra.mxu0 %v4119
    %4663 = vmatmul.bf16.gmra.mxu0 %v3235
    %v4664 = vpop.f32.mrf.mxu0
    %v4665 = vadd.f32 %v4651, %v4664
    %v4666 = vpop.f32.mrf.mxu0
    %v4667 = vadd.f32 %v4653, %v4666
    %4668 = vdwg.mxu0
    %4669 = vmatpush.bf16.msra.mxu0 %v4209
    %4670 = vmatpush.bf16.msra.mxu0 %v4203
    %4671 = vmatpush.bf16.msra.mxu0 %v4197
    %4672 = vmatpush.bf16.msra.mxu0 %v4191
    %4673 = vmatpush.bf16.msra.mxu0 %v4185
    %4674 = vmatpush.bf16.msra.mxu0 %v4179
    %4675 = vmatpush.bf16.msra.mxu0 %v4173
    %4676 = vmatpush.bf16.msra.mxu0 %v4167
    %4677 = vmatmul.bf16.gmra.mxu0 %v3236
    %v4678 = vpop.f32.mrf.mxu0
    %v4679 = vadd.f32 %v4665, %v4678
    %v4680 = vpop.f32.mrf.mxu0
    %v4681 = vadd.f32 %v4667, %v4680
    %4682 = vdwg.mxu0
    %4683 = vmatpush.bf16.msra.mxu0 %v4066
    %4684 = vmatpush.bf16.msra.mxu0 %v4060
    %4685 = vmatpush.bf16.msra.mxu0 %v4054
    %4686 = vmatpush.bf16.msra.mxu0 %v4048
    %4687 = vmatpush.bf16.msra.mxu0 %v4042
    %4688 = vmatpush.bf16.msra.mxu0 %v4036
    %4689 = vmatpush.bf16.msra.mxu0 %v4030
    %4690 = vmatpush.bf16.msra.mxu0 %v4024
    %4691 = vmatmul.bf16.gmra.mxu0 %v3233
    %v4692 = vpop.f32.mrf.mxu0
    %v4693 = vadd.f32 %v3436, %v4692
    %v4694 = vpop.f32.mrf.mxu0
    %v4695 = vadd.f32 %v3436, %v4694
    %4696 = vdwg.mxu0
    %4697 = vmatpush.bf16.msra.mxu0 %v4114
    %4698 = vmatpush.bf16.msra.mxu0 %v4108
    %4699 = vmatpush.bf16.msra.mxu0 %v4102
    %4700 = vmatpush.bf16.msra.mxu0 %v4096
    %4701 = vmatpush.bf16.msra.mxu0 %v4090
    %4702 = vmatpush.bf16.msra.mxu0 %v4084
    %4703 = vmatpush.bf16.msra.mxu0 %v4078
    %4704 = vmatpush.bf16.msra.mxu0 %v4072
    %4705 = vmatmul.bf16.gmra.mxu0 %v3234
    %v4706 = vpop.f32.mrf.mxu0
    %v4707 = vadd.f32 %v4693, %v4706
    %v4708 = vpop.f32.mrf.mxu0
    %v4709 = vadd.f32 %v4695, %v4708
    %4710 = vdwg.mxu0
    %4711 = vmatpush.bf16.msra.mxu0 %v4162
    %4712 = vmatpush.bf16.msra.mxu0 %v4156
    %4713 = vmatpush.bf16.msra.mxu0 %v4150
    %4714 = vmatpush.bf16.msra.mxu0 %v4144
    %4715 = vmatpush.bf16.msra.mxu0 %v4138
    %4716 = vmatpush.bf16.msra.mxu0 %v4132
    %4717 = vmatpush.bf16.msra.mxu0 %v4126
    %4718 = vmatpush.bf16.msra.mxu0 %v4120
    %4719 = vmatmul.bf16.gmra.mxu0 %v3235
    %v4720 = vpop.f32.mrf.mxu0
    %v4721 = vadd.f32 %v4707, %v4720
    %v4722 = vpop.f32.mrf.mxu0
    %v4723 = vadd.f32 %v4709, %v4722
    %4724 = vdwg.mxu0
    %4725 = vmatpush.bf16.msra.mxu0 %v4210
    %4726 = vmatpush.bf16.msra.mxu0 %v4204
    %4727 = vmatpush.bf16.msra.mxu0 %v4198
    %4728 = vmatpush.bf16.msra.mxu0 %v4192
    %4729 = vmatpush.bf16.msra.mxu0 %v4186
    %4730 = vmatpush.bf16.msra.mxu0 %v4180
    %4731 = vmatpush.bf16.msra.mxu0 %v4174
    %4732 = vmatpush.bf16.msra.mxu0 %v4168
    %4733 = vmatmul.bf16.gmra.mxu0 %v3236
    %v4734 = vpop.f32.mrf.mxu0
    %v4735 = vadd.f32 %v4721, %v4734
    %v4736 = vpop.f32.mrf.mxu0
    %v4737 = vadd.f32 %v4723, %v4736
    %4738 = vdwg.mxu0
    %4739 = vst [vmem:[%s12] sm:$0xff] %v4455
    %4740 = vst [vmem:[%s12 + $0x8] sm:$0xff] %v4511
    %4741 = vst [vmem:[%s12 + $0x10] sm:$0xff] %v4567
    %4742 = vst [vmem:[%s12 + $0x18] sm:$0xff] %v4623
    %4743 = vst [vmem:[%s12 + $0x20] sm:$0xff] %v4679
    %4744 = vst [vmem:[%s12 + $0x28] sm:$0xff] %v4735
    %4745 = vst [vmem:[%s12 + $0x30] sm:$0xff] %v4457
    %4746 = vst [vmem:[%s12 + $0x38] sm:$0xff] %v4513
    %4747 = vst [vmem:[%s12 + $0x40] sm:$0xff] %v4569
    %4748 = vst [vmem:[%s12 + $0x48] sm:$0xff] %v4625
    %4749 = vst [vmem:[%s12 + $0x50] sm:$0xff] %v4681
    %4750 = vst [vmem:[%s12 + $0x58] sm:$0xff] %v4737
    %v4751 = vld [vmem:[%s7] sm:$0xf]
    %v4752 = vld [vmem:[%s7 + $0x4] sm:$0xf]
    %v4753 = vld [vmem:[%s7 + $0x8] sm:$0xf]
    %v4754 = vld [vmem:[%s7 + $0xc] sm:$0xf]
    %v4755 = vld [vmem:[%s7 + $0x10] sm:$0xf]
    %v4756 = vld [vmem:[%s7 + $0x14] sm:$0xf]
    %v4757 = vld [vmem:[%s7 + $0x18] sm:$0xf]
    %v4758 = vld [vmem:[%s7 + $0x1c] sm:$0xf]
    %v4759 = vld [vmem:[%s7 + $0x20] sm:$0xf]
    %v4760 = vld [vmem:[%s7 + $0x24] sm:$0xf]
    %v4761 = vld [vmem:[%s7 + $0x28] sm:$0xf]
    %v4762 = vld [vmem:[%s7 + $0x2c] sm:$0xf]
    %v4763 = vld [vmem:[%s7 + $0x30] sm:$0xf]
    %v4764 = vld [vmem:[%s7 + $0x34] sm:$0xf]
    %v4765 = vld [vmem:[%s7 + $0x38] sm:$0xf]
    %v4766 = vld [vmem:[%s7 + $0x3c] sm:$0xf]
    %v4767 = vld [vmem:[%s10 + $0x13] sm:$0x1]
    %v4769 = vperm.slane %v4767, 0
    %v4787 = vunpack.c.l.b16 %v4751
    %v4788 = vunpack.c.l.b16 %v4752
    %v4789 = vunpack.c.l.b16 %v4753
    %v4790 = vunpack.c.l.b16 %v4754
    %v4791 = vunpack.c.l.b16 %v4755
    %v4792 = vunpack.c.l.b16 %v4756
    %v4793 = vunpack.c.l.b16 %v4757
    %v4794 = vunpack.c.l.b16 %v4758
    %v4795 = vunpack.c.l.b16 %v4759
    %v4796 = vunpack.c.l.b16 %v4760
    %v4797 = vunpack.c.l.b16 %v4761
    %v4798 = vunpack.c.l.b16 %v4762
    %v4799 = vunpack.c.l.b16 %v4763
    %v4800 = vunpack.c.l.b16 %v4764
    %v4801 = vunpack.c.l.b16 %v4765
    %v4802 = vunpack.c.l.b16 %v4766
    %v4803 = vpack.c.b16 %v4788, %v4787
    %v4804 = vpack.c.b16 %v4790, %v4789
    %v4805 = vpack.c.b16 %v4792, %v4791
    %v4806 = vpack.c.b16 %v4794, %v4793
    %v4807 = vpack.c.b16 %v4796, %v4795
    %v4808 = vpack.c.b16 %v4798, %v4797
    %v4809 = vpack.c.b16 %v4800, %v4799
    %v4810 = vpack.c.b16 %v4802, %v4801
    %4819 = vmatpush.bf16.msra.mxu0 %v4810
    %4820 = vmatpush.bf16.msra.mxu0 %v4809
    %4821 = vmatpush.bf16.msra.mxu0 %v4808
    %4822 = vmatpush.bf16.msra.mxu0 %v4807
    %4823 = vmatpush.bf16.msra.mxu0 %v4806
    %4824 = vmatpush.bf16.msra.mxu0 %v4805
    %4825 = vmatpush.bf16.msra.mxu0 %v4804
    %4826 = vmatpush.bf16.msra.mxu0 %v4803
    %4827 = vmatmul.bf16.gmra.mxu0 %v2582
    %v4828 = vpop.f32.mrf.mxu0
    %v4829 = vadd.f32 %v4769, %v4828
    %v4830 = vpop.f32.mrf.mxu0
    %v4831 = vadd.f32 %v4769, %v4830
    %4832 = vdwg.mxu0
    %vm4833 = vcmask 523264
    %v4834 = vsel %vm4833, %v4829, 0.0
    %4835 = vadd.xlane.f32.xlu0 %v4834
    %v4836 = vpop.xlane.xlu0 %4835
    %v4837 = vsel %vm4833, %v4831, 0.0
    %4838 = vadd.xlane.f32.xlu0 %v4837
    %v4839 = vpop.xlane.xlu0 %4838
    %v4840 = vrcp.pop 64.0
    %v4841 = vmul.f32 64.0, %v4840
    %v4842 = vsub.f32 1.0, %v4841
    %v4843 = vmul.f32 %v4840, %v4842
    %v4844 = vadd.f32 %v4840, %v4843
    %vm4845 = vweird.f32 %v4840
    %v4846 = vsel %vm4845, %v4840, %v4844
    %v4847 = vmul.f32 %v4836, %v4846
    %v4848 = vmul.f32 %v4839, %v4846
    %v4849 = vsub.f32 %v4829, %v4847
    %v4850 = vsub.f32 %v4831, %v4848
    %v4851 = vmul.f32 %v4849, %v4849
    %v4852 = vmul.f32 %v4850, %v4850
    %v4853 = vsel %vm4833, %v4851, 0.0
    %4854 = vadd.xlane.f32.xlu0 %v4853
    %v4855 = vpop.xlane.xlu0 %4854
    %v4856 = vsel %vm4833, %v4852, 0.0
    %4857 = vadd.xlane.f32.xlu0 %v4856
    %v4858 = vpop.xlane.xlu0 %4857
    %v4859 = vmul.f32 %v4855, %v4846
    %v4860 = vmul.f32 %v4858, %v4846
    %v4861 = vadd.f32 %v4859, 1e-05
    %v4862 = vadd.f32 %v4860, 1e-05
    %v4863 = vrsqrt.pop %v4861
    %v4864 = vmul.f32 %v4863, %v4861
    %v4865 = vmul.f32 %v4864, %v4863
    %v4866 = vmul.f32 0.5, %v4865
    %v4867 = vsub.f32 1.5, %v4866
    %v4868 = vmul.f32 %v4863, %v4867
    %vm4869 = vweird.f32 %v4861
    %vm4870 = vweird.f32 %v4863
    %vm4871 = vmor %vm4869, %vm4870
    %v4872 = vsel %vm4871, %v4863, %v4868
    %v4873 = vrsqrt.pop %v4862
    %v4874 = vmul.f32 %v4873, %v4862
    %v4875 = vmul.f32 %v4874, %v4873
    %v4876 = vmul.f32 0.5, %v4875
    %v4877 = vsub.f32 1.5, %v4876
    %v4878 = vmul.f32 %v4873, %v4877
    %vm4879 = vweird.f32 %v4862
    %vm4880 = vweird.f32 %v4873
    %vm4881 = vmor %vm4879, %vm4880
    %v4882 = vsel %vm4881, %v4873, %v4878
    %v4883 = vmul.f32 %v4849, %v4872
    %v4884 = vmul.f32 %v4850, %v4882
    %v4885 = vld [vmem:[%s10 + $0x24] sm:$0x1]
    %v4887 = vperm.slane %v4885, 0
    %v4889 = vmul.f32 %v4883, %v4887
    %v4890 = vmul.f32 %v4884, %v4887
    %v4891 = vld [vmem:[%s10 + $0x25] sm:$0x1]
    %v4893 = vperm.slane %v4891, 0
    %v4895 = vadd.f32 %v4889, %v4893
    %v4896 = vadd.f32 %v4890, %v4893
    %v4897 = vmax.f32 %v4895, 0.0
    %v4898 = vmax.f32 %v4896, 0.0
    %v4899 = vpack.c.bf16 %v4898, %v4897
    %v4900 = vld [vmem:[#allocation9] sm:$0xf]
    %v4901 = vld [vmem:[#allocation9 + $0x4] sm:$0xf]
    %v4902 = vld [vmem:[#allocation9 + $0x8] sm:$0xf]
    %v4903 = vld [vmem:[#allocation9 + $0xc] sm:$0xf]
    %v4904 = vld [vmem:[#allocation9 + $0x10] sm:$0xf]
    %v4905 = vld [vmem:[#allocation9 + $0x14] sm:$0xf]
    %v4906 = vld [vmem:[#allocation9 + $0x18] sm:$0xf]
    %v4907 = vld [vmem:[#allocation9 + $0x1c] sm:$0xf]
    %v4908 = vld [vmem:[%s10 + $0x14] sm:$0x1]
    %v4910 = vperm.slane %v4908, 0
    %v4920 = vunpack.c.l.b16 %v4900
    %v4921 = vunpack.c.l.b16 %v4901
    %v4922 = vunpack.c.l.b16 %v4902
    %v4923 = vunpack.c.l.b16 %v4903
    %v4924 = vunpack.c.l.b16 %v4904
    %v4925 = vunpack.c.l.b16 %v4905
    %v4926 = vunpack.c.l.b16 %v4906
    %v4927 = vunpack.c.l.b16 %v4907
    %v4928 = vpack.c.b16 %v4921, %v4920
    %v4929 = vpack.c.b16 %v4923, %v4922
    %v4930 = vpack.c.b16 %v4925, %v4924
    %v4931 = vpack.c.b16 %v4927, %v4926
    %v4937 = vsel %vm4833, %v4899, 0
    %4939 = vmatpush.bf16.msra.mxu0 0
    %4940 = vmatpush.bf16.msra.mxu0 0
    %4941 = vmatpush.bf16.msra.mxu0 0
    %4942 = vmatpush.bf16.msra.mxu0 0
    %4943 = vmatpush.bf16.msra.mxu0 %v4931
    %4944 = vmatpush.bf16.msra.mxu0 %v4930
    %4945 = vmatpush.bf16.msra.mxu0 %v4929
    %4946 = vmatpush.bf16.msra.mxu0 %v4928
    %4947 = vmatmul.bf16.gmra.mxu0 %v4937
    %v4948 = vpop.f32.mrf.mxu0
    %v4949 = vadd.f32 %v4910, %v4948
    %v4950 = vpop.f32.mrf.mxu0
    %v4951 = vadd.f32 %v4910, %v4950
    %4952 = vdwg.mxu0
    %v4953 = vsel %vm4833, %v4949, 0.0
    %4954 = vadd.xlane.f32.xlu0 %v4953
    %v4955 = vpop.xlane.xlu0 %4954
    %v4956 = vsel %vm4833, %v4951, 0.0
    %4957 = vadd.xlane.f32.xlu0 %v4956
    %v4958 = vpop.xlane.xlu0 %4957
    %v4959 = vmul.f32 %v4955, %v4846
    %v4960 = vmul.f32 %v4958, %v4846
    %v4961 = vsub.f32 %v4949, %v4959
    %v4962 = vsub.f32 %v4951, %v4960
    %v4963 = vmul.f32 %v4961, %v4961
    %v4964 = vmul.f32 %v4962, %v4962
    %v4965 = vsel %vm4833, %v4963, 0.0
    %4966 = vadd.xlane.f32.xlu0 %v4965
    %v4967 = vpop.xlane.xlu0 %4966
    %v4968 = vsel %vm4833, %v4964, 0.0
    %4969 = vadd.xlane.f32.xlu0 %v4968
    %v4970 = vpop.xlane.xlu0 %4969
    %v4971 = vmul.f32 %v4967, %v4846
    %v4972 = vmul.f32 %v4970, %v4846
    %v4973 = vadd.f32 %v4971, 1e-05
    %v4974 = vadd.f32 %v4972, 1e-05
    %v4975 = vrsqrt.pop %v4973
    %v4976 = vmul.f32 %v4975, %v4973
    %v4977 = vmul.f32 %v4976, %v4975
    %v4978 = vmul.f32 0.5, %v4977
    %v4979 = vsub.f32 1.5, %v4978
    %v4980 = vmul.f32 %v4975, %v4979
    %vm4981 = vweird.f32 %v4973
    %vm4982 = vweird.f32 %v4975
    %vm4983 = vmor %vm4981, %vm4982
    %v4984 = vsel %vm4983, %v4975, %v4980
    %v4985 = vrsqrt.pop %v4974
    %v4986 = vmul.f32 %v4985, %v4974
    %v4987 = vmul.f32 %v4986, %v4985
    %v4988 = vmul.f32 0.5, %v4987
    %v4989 = vsub.f32 1.5, %v4988
    %v4990 = vmul.f32 %v4985, %v4989
    %vm4991 = vweird.f32 %v4974
    %vm4992 = vweird.f32 %v4985
    %vm4993 = vmor %vm4991, %vm4992
    %v4994 = vsel %vm4993, %v4985, %v4990
    %v4995 = vmul.f32 %v4961, %v4984
    %v4996 = vmul.f32 %v4962, %v4994
    %v4997 = vld [vmem:[%s10 + $0x26] sm:$0x1]
    %v4999 = vperm.slane %v4997, 0
    %v5001 = vmul.f32 %v4995, %v4999
    %v5002 = vmul.f32 %v4996, %v4999
    %v5003 = vld [vmem:[%s10 + $0x27] sm:$0x1]
    %v5005 = vperm.slane %v5003, 0
    %v5007 = vadd.f32 %v5001, %v5005
    %v5008 = vadd.f32 %v5002, %v5005
    %v5009 = vmax.f32 %v5007, 0.0
    %v5010 = vmax.f32 %v5008, 0.0
    %v5011 = vpack.c.bf16 %v5010, %v5009
    %v5012 = vld [vmem:[#allocation10] sm:$0xf]
    %v5013 = vld [vmem:[#allocation10 + $0x4] sm:$0xf]
    %v5014 = vld [vmem:[#allocation10 + $0x8] sm:$0xf]
    %v5015 = vld [vmem:[#allocation10 + $0xc] sm:$0xf]
    %v5016 = vld [vmem:[#allocation10 + $0x10] sm:$0xf]
    %v5017 = vld [vmem:[#allocation10 + $0x14] sm:$0xf]
    %v5018 = vld [vmem:[#allocation10 + $0x18] sm:$0xf]
    %v5019 = vld [vmem:[#allocation10 + $0x1c] sm:$0xf]
    %v5020 = vld [vmem:[%s10 + $0x15] sm:$0x1]
    %v5022 = vperm.slane %v5020, 0
    %v5032 = vunpack.c.l.b16 %v5012
    %v5033 = vunpack.c.l.b16 %v5013
    %v5034 = vunpack.c.l.b16 %v5014
    %v5035 = vunpack.c.l.b16 %v5015
    %v5036 = vunpack.c.l.b16 %v5016
    %v5037 = vunpack.c.l.b16 %v5017
    %v5038 = vunpack.c.l.b16 %v5018
    %v5039 = vunpack.c.l.b16 %v5019
    %v5040 = vpack.c.b16 %v5033, %v5032
    %v5041 = vpack.c.b16 %v5035, %v5034
    %v5042 = vpack.c.b16 %v5037, %v5036
    %v5043 = vpack.c.b16 %v5039, %v5038
    %v5049 = vsel %vm4833, %v5011, 0
    %5051 = vmatpush.bf16.msra.mxu0 0
    %5052 = vmatpush.bf16.msra.mxu0 0
    %5053 = vmatpush.bf16.msra.mxu0 0
    %5054 = vmatpush.bf16.msra.mxu0 0
    %5055 = vmatpush.bf16.msra.mxu0 %v5043
    %5056 = vmatpush.bf16.msra.mxu0 %v5042
    %5057 = vmatpush.bf16.msra.mxu0 %v5041
    %5058 = vmatpush.bf16.msra.mxu0 %v5040
    %5059 = vmatmul.bf16.gmra.mxu0 %v5049
    %v5060 = vpop.f32.mrf.mxu0
    %v5061 = vadd.f32 %v5022, %v5060
    %v5062 = vpop.f32.mrf.mxu0
    %v5063 = vadd.f32 %v5022, %v5062
    %5064 = vdwg.mxu0
    %5065 = vst [vmem:[%s11] sm:$0xff] %v5061
    %5066 = vst [vmem:[%s11 + $0x8] sm:$0xff] %v5063
    // Predicated region
    $region70: #{sae_classifier_forward.1} parent=1 // pred_check
      _
    $region71: #{sae_classifier_forward.1} parent=1 // pred_check_branch
      %5068 = sbr.rel (0) target = $region73
    $region72: #{sae_classifier_forward.1} parent=1 // pred_region
      _
    $region73: #{sae_classifier_forward.1} parent=1 // pred_fallthru
      _
    // Predicated region
    $region74: #{sae_classifier_forward.1} parent=1 // pred_check
      _
    $region75: #{sae_classifier_forward.1} parent=1 // pred_check_branch
      %5070 = sbr.rel (0) target = $region77
    $region76: #{sae_classifier_forward.1} parent=1 // pred_region
      _
    $region77: #{sae_classifier_forward.1} parent=1 // pred_fallthru
      _
    // Predicated region
    $region78: #{sae_classifier_forward.1} parent=1 // pred_check
      _
    $region79: #{sae_classifier_forward.1} parent=1 // pred_check_branch
      %5072 = sbr.rel (0) target = $region81
    $region80: #{sae_classifier_forward.1} parent=1 // pred_region
      _
    $region81: #{sae_classifier_forward.1} parent=1 // pred_fallthru
      _
    // Predicated region
    $region82: #{sae_classifier_forward.1} parent=1 // pred_check
      _
    $region83: #{sae_classifier_forward.1} parent=1 // pred_check_branch
      %5074 = sbr.rel (0) target = $region85
    $region84: #{sae_classifier_forward.1} parent=1 // pred_region
      _
    $region85: #{sae_classifier_forward.1} parent=1 // pred_fallthru
      _
    %5075 = vsyncpa [#allocation3], 1
    %5076 = vsyncpa [#allocation5], 1
    %5077 = vsyncpa [#allocation8], 1
    %5078 = vsyncpa [#allocation11], 1

</llo_original>
